<compile_context>
chip_gen: v7x
topology: tpu7x:2x2x1
jax: 0.10.0
libtpu: 0.0.40
codegen_flags: <defaults>
</compile_context>

<pallas_src>
import jax
import jax.numpy as jnp
from jax import lax
from jax.experimental import pallas as pl
from jax.experimental.pallas import tpu as pltpu

EPS = 1e-5
LANE = 128


def _round_up(v, m):
    return ((v + m - 1) // m) * m


def _pad_last(v, n):
    return jnp.pad(v, (0, n - v.shape[0]))


# ----------------------------- Pallas kernels ------------------------------

def bnrelu_conv3x3_s2_kernel(xph_ref, scale_ref, shift_ref, w_ref, b_ref,
                             o_ref, psum_ref, psq_ref, zph):
    # xph_ref : (4, H2, W2, Cp) f32 stride-2 phase split of one image:
    #           xph[2*qr+qc, a, b, :] = x[2a+qr, 2b+qc, :]
    # scale/shift : (1, Cp) folded BN1 affine (training-mode batch stats)
    # w_ref   : (9, Cp, C2p) bf16 conv taps, tap index = 3*dy + dx
    # b_ref   : (1, C2p) f32
    # o_ref   : (1, H2*W2, C2p) bf16 lane-dense output slab
    # psum/psq: (1, 1, C2p) f32 per-image sum / sum-of-squares of the conv
    #           output *before bias* (bias-centered BN2 statistics)
    # zph     : (4, H2+1, W2+1, Cp) f32 scratch = phase view of the
    #           zero-padded activations.
    _, H2, W2, Cp = xph_ref.shape
    C2p = o_ref.shape[-1]

    # fused BN + ReLU in f32 (pointwise -> commutes with the phase relayout)
    z = jnp.maximum(xph_ref[...] * scale_ref[...] + shift_ref[...], 0.0)

    # zero only the halo strips; the interior is fully rewritten below.
    # Kept per-iteration on purpose (megacore-safe under "parallel" sharding).
    zph[:, 0:1, :, :] = jnp.zeros((4, 1, W2 + 1, Cp), jnp.float32)
    zph[:, H2:H2 + 1, :, :] = jnp.zeros((4, 1, W2 + 1, Cp), jnp.float32)
    zph[:, :, 0:1, :] = jnp.zeros((4, H2 + 1, 1, Cp), jnp.float32)
    zph[:, :, W2:W2 + 1, :] = jnp.zeros((4, H2 + 1, 1, Cp), jnp.float32)

    # scatter the four input phases into the padded phase buffer
    # (input phase (qr,qc) lands in pad-phase ((qr+1)%2,(qc+1)%2) shifted by
    #  ((qr+1)//2,(qc+1)//2) because of the +1 padding offset)
    zph[3, 0:H2, 0:W2, :] = z[0]          # (qr,qc) = (0,0)
    zph[2, 0:H2, 1:W2 + 1, :] = z[1]      # (0,1)
    zph[1, 1:H2 + 1, 0:W2, :] = z[2]      # (1,0)
    zph[0, 1:H2 + 1, 1:W2 + 1, :] = z[3]  # (1,1)

    # 9 per-tap matmuls (K = Cp >= 128) accumulated in f32 — every 3x3/stride-2
    # tap is a contiguous window of one phase; no im2col patch materialized.
    acc = None
    for dy in range(3):
        for dx in range(3):
            ph = 2 * (dy % 2) + (dx % 2)
            win = zph[ph, dy // 2:dy // 2 + H2, dx // 2:dx // 2 + W2, :]
            lhs = win.reshape(H2 * W2, Cp).astype(jnp.bfloat16)
            d = jnp.dot(lhs, w_ref[3 * dy + dx],
                        preferred_element_type=jnp.float32)
            acc = d if acc is None else acc + d

    out = acc + b_ref[...]
    o_ref[...] = out.reshape(1, H2 * W2, C2p).astype(o_ref.dtype)
    psum_ref[...] = jnp.sum(acc, axis=0, keepdims=True).reshape(1, 1, C2p)
    psq_ref[...] = jnp.sum(acc * acc, axis=0, keepdims=True).reshape(1, 1, C2p)


def bnrelu_conv3x3_s1_kernel(r_ref, scale_ref, shift_ref, w_ref, b_ref,
                             o_ref, zbuf):
    # r_ref : (1, H2*W2, C2p) bf16 lane-dense intermediate
    # scale/shift : (1, C2p) f32 folded BN2 affine
    # w_ref : (9, C2p, C2p) bf16; b_ref : (1, C2p) f32
    # o_ref : (1, H2*W2, C2p) f32
    # zbuf  : (H2+2, W2+2, C2p) f32 zero-padded activation scratch
    H2 = zbuf.shape[0] - 2
    W2 = zbuf.shape[1] - 2
    C2p = o_ref.shape[-1]

    z = jnp.maximum(r_ref[0].astype(jnp.float32) * scale_ref[...]
                    + shift_ref[...], 0.0)

    # halo-only zeroing (per-iteration, megacore-safe), then interior write
    zbuf[0:1, :, :] = jnp.zeros((1, W2 + 2, C2p), jnp.float32)
    zbuf[H2 + 1:H2 + 2, :, :] = jnp.zeros((1, W2 + 2, C2p), jnp.float32)
    zbuf[:, 0:1, :] = jnp.zeros((H2 + 2, 1, C2p), jnp.float32)
    zbuf[:, W2 + 1:W2 + 2, :] = jnp.zeros((H2 + 2, 1, C2p), jnp.float32)
    zbuf[1:H2 + 1, 1:W2 + 1, :] = z.reshape(H2, W2, C2p)

    # 9 per-tap matmuls accumulated in f32
    acc = None
    for dy in range(3):
        for dx in range(3):
            win = zbuf[dy:dy + H2, dx:dx + W2, :]
            lhs = win.reshape(H2 * W2, C2p).astype(jnp.bfloat16)
            d = jnp.dot(lhs, w_ref[3 * dy + dx],
                        preferred_element_type=jnp.float32)
            acc = d if acc is None else acc + d

    o_ref[...] = (acc + b_ref[...]).reshape(1, H2 * W2, C2p)


# ------------------------------ block wrapper ------------------------------

def _vmem_limit(block_bytes, scratch_bytes, temp_bytes):
    est = 2 * block_bytes + scratch_bytes + temp_bytes + (2 << 20)
    return int(min(96 << 20, max(16 << 20, est)))


def preact_reduction_block(x_nchw, p):
    x = x_nchw.astype(jnp.float32)
    N, C, H, W = x.shape
    assert H % 2 == 0 and W % 2 == 0, "stride-2 phase split expects even H, W"
    H2, W2 = H // 2, W // 2
    M = H2 * W2
    C2 = p["bias1"].shape[0]
    Cp = _round_up(C, LANE)        # lane-dense input channels
    C2p = _round_up(C2, LANE)      # lane-dense output channels

    # --- BN1 (training-mode batch stats) folded into scale/shift -----------
    m1 = jnp.mean(x, axis=(0, 2, 3))
    v1 = jnp.var(x, axis=(0, 2, 3))
    inv1 = p["g1"] / jnp.sqrt(v1 + EPS)
    s1 = _pad_last(inv1, Cp).reshape(1, Cp)          # padded channels: scale 0
    t1 = _pad_last(p["b1"] - m1 * inv1, Cp).reshape(1, Cp)   # shift 0 -> z = 0

    # --- single fused relayout: NCHW -> stride-2 phase split, channels last,
    #     zero-padded to the 128-lane width ---------------------------------
    # xph[n*4 + 2*qr + qc, a, b, c] = x[n, c, 2a+qr, 2b+qc]
    xph = x.reshape(N, C, H2, 2, W2, 2).transpose(0, 3, 5, 2, 4, 1)
    xph = xph.reshape(N * 4, H2, W2, C)
    xph = jnp.pad(xph, ((0, 0), (0, 0), (0, 0), (0, Cp - C)))

    # lane-padded bf16 weights, tap-major (9, Cp, C2p)
    w1 = jnp.zeros((3, 3, Cp, C2p), jnp.float32)
    w1 = w1.at[:, :, :C, :C2].set(p["w1_hwio"])
    w1 = w1.reshape(9, Cp, C2p).astype(jnp.bfloat16)
    bias1 = _pad_last(p["bias1"], C2p)

    blk1 = (4 * H2 * W2 * Cp * 4 + 2 * Cp * 4 + 9 * Cp * C2p * 2
            + C2p * 4 + M * C2p * 2 + 2 * C2p * 4)
    vmem1 = _vmem_limit(blk1, 4 * (H2 + 1) * (W2 + 1) * Cp * 4, 6 * M * Cp * 4)
    cost1 = pl.CostEstimate(
        flops=2 * N * M * 9 * Cp * C2p, transcendentals=0,
        bytes_accessed=(N * 4 * M * Cp * 4 + 9 * Cp * C2p * 2
                        + N * M * C2p * 2 + 2 * N * C2p * 4))

    # NOTE: constant operands (scale/shift/w/bias) have constant index_maps,
    # so they are only fetched once; single-buffering (pl.Buffered(1)) would
    # additionally halve their VMEM footprint for large channel counts.
    r, psum, psq = pl.pallas_call(
        bnrelu_conv3x3_s2_kernel,
        grid=(N,),
        in_specs=[
            pl.BlockSpec((4, H2, W2, Cp), lambda n: (n, 0, 0, 0)),
            pl.BlockSpec((1, Cp), lambda n: (0, 0)),
            pl.BlockSpec((1, Cp), lambda n: (0, 0)),
            pl.BlockSpec((9, Cp, C2p), lambda n: (0, 0, 0)),
            pl.BlockSpec((1, C2p), lambda n: (0, 0)),
        ],
        out_specs=[
            pl.BlockSpec((1, M, C2p), lambda n: (n, 0, 0)),
            pl.BlockSpec((1, 1, C2p), lambda n: (n, 0, 0)),
            pl.BlockSpec((1, 1, C2p), lambda n: (n, 0, 0)),
        ],
        out_shape=[
            jax.ShapeDtypeStruct((N, M, C2p), jnp.bfloat16),
            jax.ShapeDtypeStruct((N, 1, C2p), jnp.float32),
            jax.ShapeDtypeStruct((N, 1, C2p), jnp.float32),
        ],
        scratch_shapes=[pltpu.VMEM((4, H2 + 1, W2 + 1, Cp), jnp.float32)],
        compiler_params=pltpu.CompilerParams(
            dimension_semantics=("parallel",), vmem_limit_bytes=vmem1),
        cost_estimate=cost1,
    )(xph, s1, t1, w1, bias1.reshape(1, C2p))

    # --- BN2 statistics from the bias-centered kernel partial sums ---------
    cnt = N * M
    mean_c = jnp.sum(psum, axis=(0, 1)) / cnt           # E[conv1 - bias1]
    m2 = mean_c + bias1
    v2 = jnp.maximum(jnp.sum(psq, axis=(0, 1)) / cnt - mean_c * mean_c, 0.0)
    g2 = _pad_last(p["g2"], C2p)                        # padded channels -> 0
    b2 = _pad_last(p["b2"], C2p)
    s2 = g2 / jnp.sqrt(v2 + EPS)
    t2 = b2 - m2 * s2

    w2 = jnp.zeros((3, 3, C2p, C2p), jnp.float32)
    w2 = w2.at[:, :, :C2, :C2].set(p["w2_hwio"])
    w2 = w2.reshape(9, C2p, C2p).astype(jnp.bfloat16)
    bias2 = _pad_last(p["bias2"], C2p)

    blk2 = (M * C2p * 2 + 2 * C2p * 4 + 9 * C2p * C2p * 2 + C2p * 4
            + M * C2p * 4)
    vmem2 = _vmem_limit(blk2, (H2 + 2) * (W2 + 2) * C2p * 4, 6 * M * C2p * 4)
    cost2 = pl.CostEstimate(
        flops=2 * N * M * 9 * C2p * C2p, transcendentals=0,
        bytes_accessed=(N * M * C2p * 2 + 9 * C2p * C2p * 2
                        + N * M * C2p * 4))

    out = pl.pallas_call(
        bnrelu_conv3x3_s1_kernel,
        grid=(N,),
        in_specs=[
            pl.BlockSpec((1, M, C2p), lambda n: (n, 0, 0)),
            pl.BlockSpec((1, C2p), lambda n: (0, 0)),
            pl.BlockSpec((1, C2p), lambda n: (0, 0)),
            pl.BlockSpec((9, C2p, C2p), lambda n: (0, 0, 0)),
            pl.BlockSpec((1, C2p), lambda n: (0, 0)),
        ],
        out_specs=pl.BlockSpec((1, M, C2p), lambda n: (n, 0, 0)),
        out_shape=jax.ShapeDtypeStruct((N, M, C2p), jnp.float32),
        scratch_shapes=[pltpu.VMEM((H2 + 2, W2 + 2, C2p), jnp.float32)],
        compiler_params=pltpu.CompilerParams(
            dimension_semantics=("parallel",), vmem_limit_bytes=vmem2),
        cost_estimate=cost2,
    )(r, s2.reshape(1, C2p), t2.reshape(1, C2p), w2, bias2.reshape(1, C2p))

    # lane-dense (N, H2*W2, C2p) slab -> NCHW, drop channel padding
    out = out[:, :, :C2].reshape(N, H2, W2, C2).transpose(0, 3, 1, 2)
    return out


# --------------------------- pure-JAX reference ----------------------------

def ref_block(x_nchw, p):
    x = jnp.transpose(x_nchw, (0, 2, 3, 1)).astype(jnp.float32)
    m1 = x.mean(axis=(0, 1, 2))
    v1 = x.var(axis=(0, 1, 2))
    z = jnp.maximum((x - m1) / jnp.sqrt(v1 + EPS) * p["g1"] + p["b1"], 0.0)
    r = lax.conv_general_dilated(
        z, p["w1_hwio"], window_strides=(2, 2), padding=((1, 1), (1, 1)),
        dimension_numbers=("NHWC", "HWIO", "NHWC")) + p["bias1"]
    m2 = r.mean(axis=(0, 1, 2))
    v2 = r.var(axis=(0, 1, 2))
    z2 = jnp.maximum((r - m2) / jnp.sqrt(v2 + EPS) * p["g2"] + p["b2"], 0.0)
    out = lax.conv_general_dilated(
        z2, p["w2_hwio"], window_strides=(1, 1), padding=((1, 1), (1, 1)),
        dimension_numbers=("NHWC", "HWIO", "NHWC")) + p["bias2"]
    return jnp.transpose(out, (0, 3, 1, 2))


# ------------------------------- param init --------------------------------

def init_params(key, c_in):
    c_out = 2 * c_in
    ks = jax.random.split(key, 8)
    w1_hwio = jax.random.normal(ks[2], (3, 3, c_in, c_out),
                                jnp.float32) / jnp.sqrt(9 * c_in)
    w2_hwio = jax.random.normal(ks[6], (3, 3, c_out, c_out),
                                jnp.float32) / jnp.sqrt(9 * c_out)
    return dict(
        g1=1.0 + 0.1 * jax.random.normal(ks[0], (c_in,), jnp.float32),
        b1=0.1 * jax.random.normal(ks[1], (c_in,), jnp.float32),
        w1_hwio=w1_hwio,
        bias1=0.1 * jax.random.normal(ks[3], (c_out,), jnp.float32),
        g2=1.0 + 0.1 * jax.random.normal(ks[4], (c_out,), jnp.float32),
        b2=0.1 * jax.random.normal(ks[5], (c_out,), jnp.float32),
        w2_hwio=w2_hwio,
        bias2=0.1 * jax.random.normal(ks[7], (c_out,), jnp.float32),
    )


# ----------------------------------- main -----------------------------------

if __name__ == "__main__":
    N, C, H, W = 2, 4, 16, 16

    key = jax.random.PRNGKey(0)
    kx, kp = jax.random.split(key)
    x = jax.random.normal(kx, (N, C, H, W), jnp.float32)   # NCHW
    params = init_params(kp, C)

    y = jax.block_until_ready(jax.jit(preact_reduction_block)(x, params))
    y_ref = jax.block_until_ready(jax.jit(ref_block)(x, params))

    assert y.shape == (N, 2 * C, H // 2, W // 2), y.shape
    max_err = float(jnp.max(jnp.abs(y - y_ref)))
    # bf16 matmul operands + bf16 intermediate -> relaxed tolerance vs f32 ref
    assert jnp.allclose(y, y_ref, atol=5e-2, rtol=5e-2), max_err

    print("KERNEL_OK")
</pallas_src>

<mosaic_0001>
module attributes {stable_mosaic.version = 11 : i64} {
  func.func @bnrelu_conv3x3_s1_kernel(%arg0: i32, %arg1: memref<1x64x128xbf16, #tpu.memory_space<vmem>>, %arg2: memref<1x128xf32, #tpu.memory_space<vmem>>, %arg3: memref<1x128xf32, #tpu.memory_space<vmem>>, %arg4: memref<9x128x128xbf16, #tpu.memory_space<vmem>>, %arg5: memref<1x128xf32, #tpu.memory_space<vmem>>, %arg6: memref<1x64x128xf32, #tpu.memory_space<vmem>>, %arg7: memref<10x10x128xf32, #tpu.memory_space<vmem>>) attributes {dimension_semantics = [#tpu.dimension_semantics<parallel>], iteration_bounds = array<i64: 2>, scalar_prefetch = 0 : i64, scratch_operands = 1 : i64, tpu.core_type = #tpu.core_type<tc>, window_params = [{transform_indices = @transform_0, window_bounds = array<i64: 1, 64, 128>}, {pipeline_mode = #tpu.pipeline_mode<synchronous>, transform_indices = @transform_1, window_bounds = array<i64: 1, 128>}, {pipeline_mode = #tpu.pipeline_mode<synchronous>, transform_indices = @transform_2, window_bounds = array<i64: 1, 128>}, {pipeline_mode = #tpu.pipeline_mode<synchronous>, transform_indices = @transform_3, window_bounds = array<i64: 9, 128, 128>}, {pipeline_mode = #tpu.pipeline_mode<synchronous>, transform_indices = @transform_4, window_bounds = array<i64: 1, 128>}, {transform_indices = @transform_5, window_bounds = array<i64: 1, 64, 128>}]} {
    %c0 = arith.constant 0 : index
    %c0_0 = arith.constant 0 : index
    %c0_1 = arith.constant 0 : index
    %0 = vector.load %arg1[%c0, %c0_0, %c0_1] : memref<1x64x128xbf16, #tpu.memory_space<vmem>>, vector<1x64x128xbf16>
    %1 = vector.shape_cast %0 : vector<1x64x128xbf16> to vector<64x128xbf16>
    %2 = arith.extf %1 : vector<64x128xbf16> to vector<64x128xf32>
    %c0_2 = arith.constant 0 : index
    %c0_3 = arith.constant 0 : index
    %3 = vector.load %arg2[%c0_2, %c0_3] : memref<1x128xf32, #tpu.memory_space<vmem>>, vector<1x128xf32>
    %4 = vector.broadcast %3 : vector<1x128xf32> to vector<64x128xf32>
    %5 = arith.mulf %2, %4 : vector<64x128xf32>
    %c0_4 = arith.constant 0 : index
    %c0_5 = arith.constant 0 : index
    %6 = vector.load %arg3[%c0_4, %c0_5] : memref<1x128xf32, #tpu.memory_space<vmem>>, vector<1x128xf32>
    %7 = vector.broadcast %6 : vector<1x128xf32> to vector<64x128xf32>
    %8 = arith.addf %5, %7 : vector<64x128xf32>
    %cst = arith.constant 0.000000e+00 : f32
    %9 = vector.broadcast %cst : f32 to vector<64x128xf32>
    %10 = arith.maximumf %8, %9 : vector<64x128xf32>
    %cst_6 = arith.constant 0.000000e+00 : f32
    %11 = vector.broadcast %cst_6 : f32 to vector<1x10x128xf32>
    %c0_7 = arith.constant 0 : index
    %c0_8 = arith.constant 0 : index
    %c0_9 = arith.constant 0 : index
    %12 = vector.load %arg7[%c0_7, %c0_8, %c0_9] : memref<10x10x128xf32, #tpu.memory_space<vmem>>, vector<1x10x128xf32>
    tpu.vector_store %arg7[%c0_7, %c0_8, %c0_9], %11 {strides = array<i32>} : memref<10x10x128xf32, #tpu.memory_space<vmem>>, vector<1x10x128xf32>,
    %cst_10 = arith.constant 0.000000e+00 : f32
    %13 = vector.broadcast %cst_10 : f32 to vector<1x10x128xf32>
    %c9 = arith.constant 9 : index
    %c0_11 = arith.constant 0 : index
    %c0_12 = arith.constant 0 : index
    %14 = vector.load %arg7[%c9, %c0_11, %c0_12] : memref<10x10x128xf32, #tpu.memory_space<vmem>>, vector<1x10x128xf32>
    tpu.vector_store %arg7[%c9, %c0_11, %c0_12], %13 {strides = array<i32>} : memref<10x10x128xf32, #tpu.memory_space<vmem>>, vector<1x10x128xf32>,
    %cst_13 = arith.constant 0.000000e+00 : f32
    %15 = vector.broadcast %cst_13 : f32 to vector<10x1x128xf32>
    %c0_14 = arith.constant 0 : index
    %c0_15 = arith.constant 0 : index
    %c0_16 = arith.constant 0 : index
    %16 = vector.load %arg7[%c0_14, %c0_15, %c0_16] : memref<10x10x128xf32, #tpu.memory_space<vmem>>, vector<10x1x128xf32>
    tpu.vector_store %arg7[%c0_14, %c0_15, %c0_16], %15 {strides = array<i32>} : memref<10x10x128xf32, #tpu.memory_space<vmem>>, vector<10x1x128xf32>,
    %cst_17 = arith.constant 0.000000e+00 : f32
    %17 = vector.broadcast %cst_17 : f32 to vector<10x1x128xf32>
    %c0_18 = arith.constant 0 : index
    %c9_19 = arith.constant 9 : index
    %c0_20 = arith.constant 0 : index
    %18 = vector.load %arg7[%c0_18, %c9_19, %c0_20] : memref<10x10x128xf32, #tpu.memory_space<vmem>>, vector<10x1x128xf32>
    tpu.vector_store %arg7[%c0_18, %c9_19, %c0_20], %17 {strides = array<i32>} : memref<10x10x128xf32, #tpu.memory_space<vmem>>, vector<10x1x128xf32>,
    %19 = vector.shape_cast %10 : vector<64x128xf32> to vector<8x8x128xf32>
    %c1 = arith.constant 1 : index
    %c1_21 = arith.constant 1 : index
    %c0_22 = arith.constant 0 : index
    %20 = vector.load %arg7[%c1, %c1_21, %c0_22] : memref<10x10x128xf32, #tpu.memory_space<vmem>>, vector<8x8x128xf32>
    tpu.vector_store %arg7[%c1, %c1_21, %c0_22], %19 {strides = array<i32>} : memref<10x10x128xf32, #tpu.memory_space<vmem>>, vector<8x8x128xf32>,
    %c0_23 = arith.constant 0 : index
    %c0_24 = arith.constant 0 : index
    %c0_25 = arith.constant 0 : index
    %21 = vector.load %arg7[%c0_23, %c0_24, %c0_25] : memref<10x10x128xf32, #tpu.memory_space<vmem>>, vector<8x8x128xf32>
    %22 = vector.shape_cast %21 : vector<8x8x128xf32> to vector<64x128xf32>
    %23 = arith.truncf %22 : vector<64x128xf32> to vector<64x128xbf16>
    %c0_26 = arith.constant 0 : index
    %c0_27 = arith.constant 0 : index
    %c0_28 = arith.constant 0 : index
    %24 = vector.load %arg4[%c0_26, %c0_27, %c0_28] : memref<9x128x128xbf16, #tpu.memory_space<vmem>>, vector<1x128x128xbf16>
    %25 = vector.shape_cast %24 : vector<1x128x128xbf16> to vector<128x128xbf16>
    %cst_29 = arith.constant dense<0.000000e+00> : vector<64x128xf32>
    %26 = tpu.matmul %23, %25, %cst_29 {dimension_numbers = #tpu.dot_dimension_numbers<[1], [0], [0], [1], [0, 0, 1, 1], [], []>} : vector<64x128xbf16>, vector<128x128xbf16>, vector<64x128xf32> -> vector<64x128xf32>
    %c0_30 = arith.constant 0 : index
    %c1_31 = arith.constant 1 : index
    %c0_32 = arith.constant 0 : index
    %27 = vector.load %arg7[%c0_30, %c1_31, %c0_32] : memref<10x10x128xf32, #tpu.memory_space<vmem>>, vector<8x8x128xf32>
    %28 = vector.shape_cast %27 : vector<8x8x128xf32> to vector<64x128xf32>
    %29 = arith.truncf %28 : vector<64x128xf32> to vector<64x128xbf16>
    %c1_33 = arith.constant 1 : index
    %c0_34 = arith.constant 0 : index
    %c0_35 = arith.constant 0 : index
    %30 = vector.load %arg4[%c1_33, %c0_34, %c0_35] : memref<9x128x128xbf16, #tpu.memory_space<vmem>>, vector<1x128x128xbf16>
    %31 = vector.shape_cast %30 : vector<1x128x128xbf16> to vector<128x128xbf16>
    %cst_36 = arith.constant dense<0.000000e+00> : vector<64x128xf32>
    %32 = tpu.matmul %29, %31, %cst_36 {dimension_numbers = #tpu.dot_dimension_numbers<[1], [0], [0], [1], [0, 0, 1, 1], [], []>} : vector<64x128xbf16>, vector<128x128xbf16>, vector<64x128xf32> -> vector<64x128xf32>
    %33 = arith.addf %26, %32 : vector<64x128xf32>
    %c0_37 = arith.constant 0 : index
    %c2 = arith.constant 2 : index
    %c0_38 = arith.constant 0 : index
    %34 = vector.load %arg7[%c0_37, %c2, %c0_38] : memref<10x10x128xf32, #tpu.memory_space<vmem>>, vector<8x8x128xf32>
    %35 = vector.shape_cast %34 : vector<8x8x128xf32> to vector<64x128xf32>
    %36 = arith.truncf %35 : vector<64x128xf32> to vector<64x128xbf16>
    %c2_39 = arith.constant 2 : index
    %c0_40 = arith.constant 0 : index
    %c0_41 = arith.constant 0 : index
    %37 = vector.load %arg4[%c2_39, %c0_40, %c0_41] : memref<9x128x128xbf16, #tpu.memory_space<vmem>>, vector<1x128x128xbf16>
    %38 = vector.shape_cast %37 : vector<1x128x128xbf16> to vector<128x128xbf16>
    %cst_42 = arith.constant dense<0.000000e+00> : vector<64x128xf32>
    %39 = tpu.matmul %36, %38, %cst_42 {dimension_numbers = #tpu.dot_dimension_numbers<[1], [0], [0], [1], [0, 0, 1, 1], [], []>} : vector<64x128xbf16>, vector<128x128xbf16>, vector<64x128xf32> -> vector<64x128xf32>
    %40 = arith.addf %33, %39 : vector<64x128xf32>
    %c1_43 = arith.constant 1 : index
    %c0_44 = arith.constant 0 : index
    %c0_45 = arith.constant 0 : index
    %41 = vector.load %arg7[%c1_43, %c0_44, %c0_45] : memref<10x10x128xf32, #tpu.memory_space<vmem>>, vector<8x8x128xf32>
    %42 = vector.shape_cast %41 : vector<8x8x128xf32> to vector<64x128xf32>
    %43 = arith.truncf %42 : vector<64x128xf32> to vector<64x128xbf16>
    %c3 = arith.constant 3 : index
    %c0_46 = arith.constant 0 : index
    %c0_47 = arith.constant 0 : index
    %44 = vector.load %arg4[%c3, %c0_46, %c0_47] : memref<9x128x128xbf16, #tpu.memory_space<vmem>>, vector<1x128x128xbf16>
    %45 = vector.shape_cast %44 : vector<1x128x128xbf16> to vector<128x128xbf16>
    %cst_48 = arith.constant dense<0.000000e+00> : vector<64x128xf32>
    %46 = tpu.matmul %43, %45, %cst_48 {dimension_numbers = #tpu.dot_dimension_numbers<[1], [0], [0], [1], [0, 0, 1, 1], [], []>} : vector<64x128xbf16>, vector<128x128xbf16>, vector<64x128xf32> -> vector<64x128xf32>
    %47 = arith.addf %40, %46 : vector<64x128xf32>
    %c1_49 = arith.constant 1 : index
    %c1_50 = arith.constant 1 : index
    %c0_51 = arith.constant 0 : index
    %48 = vector.load %arg7[%c1_49, %c1_50, %c0_51] : memref<10x10x128xf32, #tpu.memory_space<vmem>>, vector<8x8x128xf32>
    %49 = vector.shape_cast %48 : vector<8x8x128xf32> to vector<64x128xf32>
    %50 = arith.truncf %49 : vector<64x128xf32> to vector<64x128xbf16>
    %c4 = arith.constant 4 : index
    %c0_52 = arith.constant 0 : index
    %c0_53 = arith.constant 0 : index
    %51 = vector.load %arg4[%c4, %c0_52, %c0_53] : memref<9x128x128xbf16, #tpu.memory_space<vmem>>, vector<1x128x128xbf16>
    %52 = vector.shape_cast %51 : vector<1x128x128xbf16> to vector<128x128xbf16>
    %cst_54 = arith.constant dense<0.000000e+00> : vector<64x128xf32>
    %53 = tpu.matmul %50, %52, %cst_54 {dimension_numbers = #tpu.dot_dimension_numbers<[1], [0], [0], [1], [0, 0, 1, 1], [], []>} : vector<64x128xbf16>, vector<128x128xbf16>, vector<64x128xf32> -> vector<64x128xf32>
    %54 = arith.addf %47, %53 : vector<64x128xf32>
    %c1_55 = arith.constant 1 : index
    %c2_56 = arith.constant 2 : index
    %c0_57 = arith.constant 0 : index
    %55 = vector.load %arg7[%c1_55, %c2_56, %c0_57] : memref<10x10x128xf32, #tpu.memory_space<vmem>>, vector<8x8x128xf32>
    %56 = vector.shape_cast %55 : vector<8x8x128xf32> to vector<64x128xf32>
    %57 = arith.truncf %56 : vector<64x128xf32> to vector<64x128xbf16>
    %c5 = arith.constant 5 : index
    %c0_58 = arith.constant 0 : index
    %c0_59 = arith.constant 0 : index
    %58 = vector.load %arg4[%c5, %c0_58, %c0_59] : memref<9x128x128xbf16, #tpu.memory_space<vmem>>, vector<1x128x128xbf16>
    %59 = vector.shape_cast %58 : vector<1x128x128xbf16> to vector<128x128xbf16>
    %cst_60 = arith.constant dense<0.000000e+00> : vector<64x128xf32>
    %60 = tpu.matmul %57, %59, %cst_60 {dimension_numbers = #tpu.dot_dimension_numbers<[1], [0], [0], [1], [0, 0, 1, 1], [], []>} : vector<64x128xbf16>, vector<128x128xbf16>, vector<64x128xf32> -> vector<64x128xf32>
    %61 = arith.addf %54, %60 : vector<64x128xf32>
    %c2_61 = arith.constant 2 : index
    %c0_62 = arith.constant 0 : index
    %c0_63 = arith.constant 0 : index
    %62 = vector.load %arg7[%c2_61, %c0_62, %c0_63] : memref<10x10x128xf32, #tpu.memory_space<vmem>>, vector<8x8x128xf32>
    %63 = vector.shape_cast %62 : vector<8x8x128xf32> to vector<64x128xf32>
    %64 = arith.truncf %63 : vector<64x128xf32> to vector<64x128xbf16>
    %c6 = arith.constant 6 : index
    %c0_64 = arith.constant 0 : index
    %c0_65 = arith.constant 0 : index
    %65 = vector.load %arg4[%c6, %c0_64, %c0_65] : memref<9x128x128xbf16, #tpu.memory_space<vmem>>, vector<1x128x128xbf16>
    %66 = vector.shape_cast %65 : vector<1x128x128xbf16> to vector<128x128xbf16>
    %cst_66 = arith.constant dense<0.000000e+00> : vector<64x128xf32>
    %67 = tpu.matmul %64, %66, %cst_66 {dimension_numbers = #tpu.dot_dimension_numbers<[1], [0], [0], [1], [0, 0, 1, 1], [], []>} : vector<64x128xbf16>, vector<128x128xbf16>, vector<64x128xf32> -> vector<64x128xf32>
    %68 = arith.addf %61, %67 : vector<64x128xf32>
    %c2_67 = arith.constant 2 : index
    %c1_68 = arith.constant 1 : index
    %c0_69 = arith.constant 0 : index
    %69 = vector.load %arg7[%c2_67, %c1_68, %c0_69] : memref<10x10x128xf32, #tpu.memory_space<vmem>>, vector<8x8x128xf32>
    %70 = vector.shape_cast %69 : vector<8x8x128xf32> to vector<64x128xf32>
    %71 = arith.truncf %70 : vector<64x128xf32> to vector<64x128xbf16>
    %c7 = arith.constant 7 : index
    %c0_70 = arith.constant 0 : index
    %c0_71 = arith.constant 0 : index
    %72 = vector.load %arg4[%c7, %c0_70, %c0_71] : memref<9x128x128xbf16, #tpu.memory_space<vmem>>, vector<1x128x128xbf16>
    %73 = vector.shape_cast %72 : vector<1x128x128xbf16> to vector<128x128xbf16>
    %cst_72 = arith.constant dense<0.000000e+00> : vector<64x128xf32>
    %74 = tpu.matmul %71, %73, %cst_72 {dimension_numbers = #tpu.dot_dimension_numbers<[1], [0], [0], [1], [0, 0, 1, 1], [], []>} : vector<64x128xbf16>, vector<128x128xbf16>, vector<64x128xf32> -> vector<64x128xf32>
    %75 = arith.addf %68, %74 : vector<64x128xf32>
    %c2_73 = arith.constant 2 : index
    %c2_74 = arith.constant 2 : index
    %c0_75 = arith.constant 0 : index
    %76 = vector.load %arg7[%c2_73, %c2_74, %c0_75] : memref<10x10x128xf32, #tpu.memory_space<vmem>>, vector<8x8x128xf32>
    %77 = vector.shape_cast %76 : vector<8x8x128xf32> to vector<64x128xf32>
    %78 = arith.truncf %77 : vector<64x128xf32> to vector<64x128xbf16>
    %c8 = arith.constant 8 : index
    %c0_76 = arith.constant 0 : index
    %c0_77 = arith.constant 0 : index
    %79 = vector.load %arg4[%c8, %c0_76, %c0_77] : memref<9x128x128xbf16, #tpu.memory_space<vmem>>, vector<1x128x128xbf16>
    %80 = vector.shape_cast %79 : vector<1x128x128xbf16> to vector<128x128xbf16>
    %cst_78 = arith.constant dense<0.000000e+00> : vector<64x128xf32>
    %81 = tpu.matmul %78, %80, %cst_78 {dimension_numbers = #tpu.dot_dimension_numbers<[1], [0], [0], [1], [0, 0, 1, 1], [], []>} : vector<64x128xbf16>, vector<128x128xbf16>, vector<64x128xf32> -> vector<64x128xf32>
    %82 = arith.addf %75, %81 : vector<64x128xf32>
    %c0_79 = arith.constant 0 : index
    %c0_80 = arith.constant 0 : index
    %83 = vector.load %arg5[%c0_79, %c0_80] : memref<1x128xf32, #tpu.memory_space<vmem>>, vector<1x128xf32>
    %84 = vector.broadcast %83 : vector<1x128xf32> to vector<64x128xf32>
    %85 = arith.addf %82, %84 : vector<64x128xf32>
    %86 = vector.shape_cast %85 : vector<64x128xf32> to vector<1x64x128xf32>
    %c0_81 = arith.constant 0 : index
    %c0_82 = arith.constant 0 : index
    %c0_83 = arith.constant 0 : index
    %87 = vector.load %arg6[%c0_81, %c0_82, %c0_83] : memref<1x64x128xf32, #tpu.memory_space<vmem>>, vector<1x64x128xf32>
    tpu.vector_store %arg6[%c0_81, %c0_82, %c0_83], %86 {strides = array<i32>} : memref<1x64x128xf32, #tpu.memory_space<vmem>>, vector<1x64x128xf32>,
    return
  }
  func.func @transform_0(%arg0: i32) -> (i32, i32, i32) {
    %c0_i32 = arith.constant 0 : i32
    %c0_i32_0 = arith.constant 0 : i32
    %c0_i32_1 = arith.constant 0 : i32
    return %arg0, %c0_i32, %c0_i32_0 : i32, i32, i32
  }
  func.func @transform_1(%arg0: i32) -> (i32, i32) {
    %c0_i32 = arith.constant 0 : i32
    %c0_i32_0 = arith.constant 0 : i32
    %c0_i32_1 = arith.constant 0 : i32
    return %c0_i32, %c0_i32_0 : i32, i32
  }
  func.func @transform_2(%arg0: i32) -> (i32, i32) {
    %c0_i32 = arith.constant 0 : i32
    %c0_i32_0 = arith.constant 0 : i32
    %c0_i32_1 = arith.constant 0 : i32
    return %c0_i32, %c0_i32_0 : i32, i32
  }
  func.func @transform_3(%arg0: i32) -> (i32, i32, i32) {
    %c0_i32 = arith.constant 0 : i32
    %c0_i32_0 = arith.constant 0 : i32
    %c0_i32_1 = arith.constant 0 : i32
    %c0_i32_2 = arith.constant 0 : i32
    return %c0_i32, %c0_i32_0, %c0_i32_1 : i32, i32, i32
  }
  func.func @transform_4(%arg0: i32) -> (i32, i32) {
    %c0_i32 = arith.constant 0 : i32
    %c0_i32_0 = arith.constant 0 : i32
    %c0_i32_1 = arith.constant 0 : i32
    return %c0_i32, %c0_i32_0 : i32, i32
  }
  func.func @transform_5(%arg0: i32) -> (i32, i32, i32) {
    %c0_i32 = arith.constant 0 : i32
    %c0_i32_0 = arith.constant 0 : i32
    %c0_i32_1 = arith.constant 0 : i32
    return %arg0, %c0_i32, %c0_i32_0 : i32, i32, i32
  }
}

module attributes {stable_mosaic.version = 11 : i64} {
  func.func @bnrelu_conv3x3_s2_kernel(%arg0: i32, %arg1: memref<4x8x8x128xf32, #tpu.memory_space<vmem>>, %arg2: memref<1x128xf32, #tpu.memory_space<vmem>>, %arg3: memref<1x128xf32, #tpu.memory_space<vmem>>, %arg4: memref<9x128x128xbf16, #tpu.memory_space<vmem>>, %arg5: memref<1x128xf32, #tpu.memory_space<vmem>>, %arg6: memref<1x64x128xbf16, #tpu.memory_space<vmem>>, %arg7: memref<1x1x128xf32, #tpu.memory_space<vmem>>, %arg8: memref<1x1x128xf32, #tpu.memory_space<vmem>>, %arg9: memref<4x9x9x128xf32, #tpu.memory_space<vmem>>) attributes {dimension_semantics = [#tpu.dimension_semantics<parallel>], iteration_bounds = array<i64: 2>, scalar_prefetch = 0 : i64, scratch_operands = 1 : i64, tpu.core_type = #tpu.core_type<tc>, window_params = [{transform_indices = @transform_0, window_bounds = array<i64: 4, 8, 8, 128>}, {pipeline_mode = #tpu.pipeline_mode<synchronous>, transform_indices = @transform_1, window_bounds = array<i64: 1, 128>}, {pipeline_mode = #tpu.pipeline_mode<synchronous>, transform_indices = @transform_2, window_bounds = array<i64: 1, 128>}, {pipeline_mode = #tpu.pipeline_mode<synchronous>, transform_indices = @transform_3, window_bounds = array<i64: 9, 128, 128>}, {pipeline_mode = #tpu.pipeline_mode<synchronous>, transform_indices = @transform_4, window_bounds = array<i64: 1, 128>}, {transform_indices = @transform_5, window_bounds = array<i64: 1, 64, 128>}, {transform_indices = @transform_6, window_bounds = array<i64: 1, 1, 128>}, {transform_indices = @transform_7, window_bounds = array<i64: 1, 1, 128>}]} {
    %c0 = arith.constant 0 : index
    %c0_0 = arith.constant 0 : index
    %c0_1 = arith.constant 0 : index
    %c0_2 = arith.constant 0 : index
    %0 = vector.load %arg1[%c0, %c0_0, %c0_1, %c0_2] : memref<4x8x8x128xf32, #tpu.memory_space<vmem>>, vector<4x8x8x128xf32>
    %c0_3 = arith.constant 0 : index
    %c0_4 = arith.constant 0 : index
    %1 = vector.load %arg2[%c0_3, %c0_4] : memref<1x128xf32, #tpu.memory_space<vmem>>, vector<1x128xf32>
    %2 = vector.shape_cast %1 : vector<1x128xf32> to vector<1x1x1x128xf32>
    %3 = vector.broadcast %2 : vector<1x1x1x128xf32> to vector<4x8x8x128xf32>
    %4 = arith.mulf %0, %3 : vector<4x8x8x128xf32>
    %c0_5 = arith.constant 0 : index
    %c0_6 = arith.constant 0 : index
    %5 = vector.load %arg3[%c0_5, %c0_6] : memref<1x128xf32, #tpu.memory_space<vmem>>, vector<1x128xf32>
    %6 = vector.shape_cast %5 : vector<1x128xf32> to vector<1x1x1x128xf32>
    %7 = vector.broadcast %6 : vector<1x1x1x128xf32> to vector<4x8x8x128xf32>
    %8 = arith.addf %4, %7 : vector<4x8x8x128xf32>
    %cst = arith.constant 0.000000e+00 : f32
    %9 = vector.broadcast %cst : f32 to vector<4x8x8x128xf32>
    %10 = arith.maximumf %8, %9 : vector<4x8x8x128xf32>
    %cst_7 = arith.constant 0.000000e+00 : f32
    %11 = vector.broadcast %cst_7 : f32 to vector<4x1x9x128xf32>
    %c0_8 = arith.constant 0 : index
    %c0_9 = arith.constant 0 : index
    %c0_10 = arith.constant 0 : index
    %c0_11 = arith.constant 0 : index
    %12 = vector.load %arg9[%c0_8, %c0_9, %c0_10, %c0_11] : memref<4x9x9x128xf32, #tpu.memory_space<vmem>>, vector<4x1x9x128xf32>
    tpu.vector_store %arg9[%c0_8, %c0_9, %c0_10, %c0_11], %11 {strides = array<i32>} : memref<4x9x9x128xf32, #tpu.memory_space<vmem>>, vector<4x1x9x128xf32>,
    %cst_12 = arith.constant 0.000000e+00 : f32
    %13 = vector.broadcast %cst_12 : f32 to vector<4x1x9x128xf32>
    %c0_13 = arith.constant 0 : index
    %c8 = arith.constant 8 : index
    %c0_14 = arith.constant 0 : index
    %c0_15 = arith.constant 0 : index
    %14 = vector.load %arg9[%c0_13, %c8, %c0_14, %c0_15] : memref<4x9x9x128xf32, #tpu.memory_space<vmem>>, vector<4x1x9x128xf32>
    tpu.vector_store %arg9[%c0_13, %c8, %c0_14, %c0_15], %13 {strides = array<i32>} : memref<4x9x9x128xf32, #tpu.memory_space<vmem>>, vector<4x1x9x128xf32>,
    %cst_16 = arith.constant 0.000000e+00 : f32
    %15 = vector.broadcast %cst_16 : f32 to vector<4x9x1x128xf32>
    %c0_17 = arith.constant 0 : index
    %c0_18 = arith.constant 0 : index
    %c0_19 = arith.constant 0 : index
    %c0_20 = arith.constant 0 : index
    %16 = vector.load %arg9[%c0_17, %c0_18, %c0_19, %c0_20] : memref<4x9x9x128xf32, #tpu.memory_space<vmem>>, vector<4x9x1x128xf32>
    tpu.vector_store %arg9[%c0_17, %c0_18, %c0_19, %c0_20], %15 {strides = array<i32>} : memref<4x9x9x128xf32, #tpu.memory_space<vmem>>, vector<4x9x1x128xf32>,
    %cst_21 = arith.constant 0.000000e+00 : f32
    %17 = vector.broadcast %cst_21 : f32 to vector<4x9x1x128xf32>
    %c0_22 = arith.constant 0 : index
    %c0_23 = arith.constant 0 : index
    %c8_24 = arith.constant 8 : index
    %c0_25 = arith.constant 0 : index
    %18 = vector.load %arg9[%c0_22, %c0_23, %c8_24, %c0_25] : memref<4x9x9x128xf32, #tpu.memory_space<vmem>>, vector<4x9x1x128xf32>
    tpu.vector_store %arg9[%c0_22, %c0_23, %c8_24, %c0_25], %17 {strides = array<i32>} : memref<4x9x9x128xf32, #tpu.memory_space<vmem>>, vector<4x9x1x128xf32>,
    %19 = vector.extract_strided_slice %10 {offsets = [0, 0, 0, 0], sizes = [1, 8, 8, 128], strides = [1, 1, 1, 1]} : vector<4x8x8x128xf32> to vector<1x8x8x128xf32>
    %20 = vector.shape_cast %19 : vector<1x8x8x128xf32> to vector<8x8x128xf32>
    %c3 = arith.constant 3 : index
    %c0_26 = arith.constant 0 : index
    %c0_27 = arith.constant 0 : index
    %c0_28 = arith.constant 0 : index
    %21 = vector.load %arg9[%c3, %c0_26, %c0_27, %c0_28] : memref<4x9x9x128xf32, #tpu.memory_space<vmem>>, vector<1x8x8x128xf32>
    %22 = vector.shape_cast %21 : vector<1x8x8x128xf32> to vector<8x8x128xf32>
    %23 = vector.shape_cast %20 : vector<8x8x128xf32> to vector<1x8x8x128xf32>
    tpu.vector_store %arg9[%c3, %c0_26, %c0_27, %c0_28], %23 {strides = array<i32>} : memref<4x9x9x128xf32, #tpu.memory_space<vmem>>, vector<1x8x8x128xf32>,
    %24 = vector.extract_strided_slice %10 {offsets = [1, 0, 0, 0], sizes = [1, 8, 8, 128], strides = [1, 1, 1, 1]} : vector<4x8x8x128xf32> to vector<1x8x8x128xf32>
    %25 = vector.shape_cast %24 : vector<1x8x8x128xf32> to vector<8x8x128xf32>
    %c2 = arith.constant 2 : index
    %c0_29 = arith.constant 0 : index
    %c1 = arith.constant 1 : index
    %c0_30 = arith.constant 0 : index
    %26 = vector.load %arg9[%c2, %c0_29, %c1, %c0_30] : memref<4x9x9x128xf32, #tpu.memory_space<vmem>>, vector<1x8x8x128xf32>
    %27 = vector.shape_cast %26 : vector<1x8x8x128xf32> to vector<8x8x128xf32>
    %28 = vector.shape_cast %25 : vector<8x8x128xf32> to vector<1x8x8x128xf32>
    tpu.vector_store %arg9[%c2, %c0_29, %c1, %c0_30], %28 {strides = array<i32>} : memref<4x9x9x128xf32, #tpu.memory_space<vmem>>, vector<1x8x8x128xf32>,
    %29 = vector.extract_strided_slice %10 {offsets = [2, 0, 0, 0], sizes = [1, 8, 8, 128], strides = [1, 1, 1, 1]} : vector<4x8x8x128xf32> to vector<1x8x8x128xf32>
    %30 = vector.shape_cast %29 : vector<1x8x8x128xf32> to vector<8x8x128xf32>
    %c1_31 = arith.constant 1 : index
    %c1_32 = arith.constant 1 : index
    %c0_33 = arith.constant 0 : index
    %c0_34 = arith.constant 0 : index
    %31 = vector.load %arg9[%c1_31, %c1_32, %c0_33, %c0_34] : memref<4x9x9x128xf32, #tpu.memory_space<vmem>>, vector<1x8x8x128xf32>
    %32 = vector.shape_cast %31 : vector<1x8x8x128xf32> to vector<8x8x128xf32>
    %33 = vector.shape_cast %30 : vector<8x8x128xf32> to vector<1x8x8x128xf32>
    tpu.vector_store %arg9[%c1_31, %c1_32, %c0_33, %c0_34], %33 {strides = array<i32>} : memref<4x9x9x128xf32, #tpu.memory_space<vmem>>, vector<1x8x8x128xf32>,
    %34 = vector.extract_strided_slice %10 {offsets = [3, 0, 0, 0], sizes = [1, 8, 8, 128], strides = [1, 1, 1, 1]} : vector<4x8x8x128xf32> to vector<1x8x8x128xf32>
    %35 = vector.shape_cast %34 : vector<1x8x8x128xf32> to vector<8x8x128xf32>
    %c0_35 = arith.constant 0 : index
    %c1_36 = arith.constant 1 : index
    %c1_37 = arith.constant 1 : index
    %c0_38 = arith.constant 0 : index
    %36 = vector.load %arg9[%c0_35, %c1_36, %c1_37, %c0_38] : memref<4x9x9x128xf32, #tpu.memory_space<vmem>>, vector<1x8x8x128xf32>
    %37 = vector.shape_cast %36 : vector<1x8x8x128xf32> to vector<8x8x128xf32>
    %38 = vector.shape_cast %35 : vector<8x8x128xf32> to vector<1x8x8x128xf32>
    tpu.vector_store %arg9[%c0_35, %c1_36, %c1_37, %c0_38], %38 {strides = array<i32>} : memref<4x9x9x128xf32, #tpu.memory_space<vmem>>, vector<1x8x8x128xf32>,
    %c0_39 = arith.constant 0 : index
    %c0_40 = arith.constant 0 : index
    %c0_41 = arith.constant 0 : index
    %c0_42 = arith.constant 0 : index
    %39 = vector.load %arg9[%c0_39, %c0_40, %c0_41, %c0_42] : memref<4x9x9x128xf32, #tpu.memory_space<vmem>>, vector<1x8x8x128xf32>
    %40 = vector.shape_cast %39 : vector<1x8x8x128xf32> to vector<8x8x128xf32>
    %41 = vector.shape_cast %40 : vector<8x8x128xf32> to vector<64x128xf32>
    %42 = arith.truncf %41 : vector<64x128xf32> to vector<64x128xbf16>
    %c0_43 = arith.constant 0 : index
    %c0_44 = arith.constant 0 : index
    %c0_45 = arith.constant 0 : index
    %43 = vector.load %arg4[%c0_43, %c0_44, %c0_45] : memref<9x128x128xbf16, #tpu.memory_space<vmem>>, vector<1x128x128xbf16>
    %44 = vector.shape_cast %43 : vector<1x128x128xbf16> to vector<128x128xbf16>
    %cst_46 = arith.constant dense<0.000000e+00> : vector<64x128xf32>
    %45 = tpu.matmul %42, %44, %cst_46 {dimension_numbers = #tpu.dot_dimension_numbers<[1], [0], [0], [1], [0, 0, 1, 1], [], []>} : vector<64x128xbf16>, vector<128x128xbf16>, vector<64x128xf32> -> vector<64x128xf32>
    %c1_47 = arith.constant 1 : index
    %c0_48 = arith.constant 0 : index
    %c0_49 = arith.constant 0 : index
    %c0_50 = arith.constant 0 : index
    %46 = vector.load %arg9[%c1_47, %c0_48, %c0_49, %c0_50] : memref<4x9x9x128xf32, #tpu.memory_space<vmem>>, vector<1x8x8x128xf32>
    %47 = vector.shape_cast %46 : vector<1x8x8x128xf32> to vector<8x8x128xf32>
    %48 = vector.shape_cast %47 : vector<8x8x128xf32> to vector<64x128xf32>
    %49 = arith.truncf %48 : vector<64x128xf32> to vector<64x128xbf16>
    %c1_51 = arith.constant 1 : index
    %c0_52 = arith.constant 0 : index
    %c0_53 = arith.constant 0 : index
    %50 = vector.load %arg4[%c1_51, %c0_52, %c0_53] : memref<9x128x128xbf16, #tpu.memory_space<vmem>>, vector<1x128x128xbf16>
    %51 = vector.shape_cast %50 : vector<1x128x128xbf16> to vector<128x128xbf16>
    %cst_54 = arith.constant dense<0.000000e+00> : vector<64x128xf32>
    %52 = tpu.matmul %49, %51, %cst_54 {dimension_numbers = #tpu.dot_dimension_numbers<[1], [0], [0], [1], [0, 0, 1, 1], [], []>} : vector<64x128xbf16>, vector<128x128xbf16>, vector<64x128xf32> -> vector<64x128xf32>
    %53 = arith.addf %45, %52 : vector<64x128xf32>
    %c0_55 = arith.constant 0 : index
    %c0_56 = arith.constant 0 : index
    %c1_57 = arith.constant 1 : index
    %c0_58 = arith.constant 0 : index
    %54 = vector.load %arg9[%c0_55, %c0_56, %c1_57, %c0_58] : memref<4x9x9x128xf32, #tpu.memory_space<vmem>>, vector<1x8x8x128xf32>
    %55 = vector.shape_cast %54 : vector<1x8x8x128xf32> to vector<8x8x128xf32>
    %56 = vector.shape_cast %55 : vector<8x8x128xf32> to vector<64x128xf32>
    %57 = arith.truncf %56 : vector<64x128xf32> to vector<64x128xbf16>
    %c2_59 = arith.constant 2 : index
    %c0_60 = arith.constant 0 : index
    %c0_61 = arith.constant 0 : index
    %58 = vector.load %arg4[%c2_59, %c0_60, %c0_61] : memref<9x128x128xbf16, #tpu.memory_space<vmem>>, vector<1x128x128xbf16>
    %59 = vector.shape_cast %58 : vector<1x128x128xbf16> to vector<128x128xbf16>
    %cst_62 = arith.constant dense<0.000000e+00> : vector<64x128xf32>
    %60 = tpu.matmul %57, %59, %cst_62 {dimension_numbers = #tpu.dot_dimension_numbers<[1], [0], [0], [1], [0, 0, 1, 1], [], []>} : vector<64x128xbf16>, vector<128x128xbf16>, vector<64x128xf32> -> vector<64x128xf32>
    %61 = arith.addf %53, %60 : vector<64x128xf32>
    %c2_63 = arith.constant 2 : index
    %c0_64 = arith.constant 0 : index
    %c0_65 = arith.constant 0 : index
    %c0_66 = arith.constant 0 : index
    %62 = vector.load %arg9[%c2_63, %c0_64, %c0_65, %c0_66] : memref<4x9x9x128xf32, #tpu.memory_space<vmem>>, vector<1x8x8x128xf32>
    %63 = vector.shape_cast %62 : vector<1x8x8x128xf32> to vector<8x8x128xf32>
    %64 = vector.shape_cast %63 : vector<8x8x128xf32> to vector<64x128xf32>
    %65 = arith.truncf %64 : vector<64x128xf32> to vector<64x128xbf16>
    %c3_67 = arith.constant 3 : index
    %c0_68 = arith.constant 0 : index
    %c0_69 = arith.constant 0 : index
    %66 = vector.load %arg4[%c3_67, %c0_68, %c0_69] : memref<9x128x128xbf16, #tpu.memory_space<vmem>>, vector<1x128x128xbf16>
    %67 = vector.shape_cast %66 : vector<1x128x128xbf16> to vector<128x128xbf16>
    %cst_70 = arith.constant dense<0.000000e+00> : vector<64x128xf32>
    %68 = tpu.matmul %65, %67, %cst_70 {dimension_numbers = #tpu.dot_dimension_numbers<[1], [0], [0], [1], [0, 0, 1, 1], [], []>} : vector<64x128xbf16>, vector<128x128xbf16>, vector<64x128xf32> -> vector<64x128xf32>
    %69 = arith.addf %61, %68 : vector<64x128xf32>
    %c3_71 = arith.constant 3 : index
    %c0_72 = arith.constant 0 : index
    %c0_73 = arith.constant 0 : index
    %c0_74 = arith.constant 0 : index
    %70 = vector.load %arg9[%c3_71, %c0_72, %c0_73, %c0_74] : memref<4x9x9x128xf32, #tpu.memory_space<vmem>>, vector<1x8x8x128xf32>
    %71 = vector.shape_cast %70 : vector<1x8x8x128xf32> to vector<8x8x128xf32>
    %72 = vector.shape_cast %71 : vector<8x8x128xf32> to vector<64x128xf32>
    %73 = arith.truncf %72 : vector<64x128xf32> to vector<64x128xbf16>
    %c4 = arith.constant 4 : index
    %c0_75 = arith.constant 0 : index
    %c0_76 = arith.constant 0 : index
    %74 = vector.load %arg4[%c4, %c0_75, %c0_76] : memref<9x128x128xbf16, #tpu.memory_space<vmem>>, vector<1x128x128xbf16>
    %75 = vector.shape_cast %74 : vector<1x128x128xbf16> to vector<128x128xbf16>
    %cst_77 = arith.constant dense<0.000000e+00> : vector<64x128xf32>
    %76 = tpu.matmul %73, %75, %cst_77 {dimension_numbers = #tpu.dot_dimension_numbers<[1], [0], [0], [1], [0, 0, 1, 1], [], []>} : vector<64x128xbf16>, vector<128x128xbf16>, vector<64x128xf32> -> vector<64x128xf32>
    %77 = arith.addf %69, %76 : vector<64x128xf32>
    %c2_78 = arith.constant 2 : index
    %c0_79 = arith.constant 0 : index
    %c1_80 = arith.constant 1 : index
    %c0_81 = arith.constant 0 : index
    %78 = vector.load %arg9[%c2_78, %c0_79, %c1_80, %c0_81] : memref<4x9x9x128xf32, #tpu.memory_space<vmem>>, vector<1x8x8x128xf32>
    %79 = vector.shape_cast %78 : vector<1x8x8x128xf32> to vector<8x8x128xf32>
    %80 = vector.shape_cast %79 : vector<8x8x128xf32> to vector<64x128xf32>
    %81 = arith.truncf %80 : vector<64x128xf32> to vector<64x128xbf16>
    %c5 = arith.constant 5 : index
    %c0_82 = arith.constant 0 : index
    %c0_83 = arith.constant 0 : index
    %82 = vector.load %arg4[%c5, %c0_82, %c0_83] : memref<9x128x128xbf16, #tpu.memory_space<vmem>>, vector<1x128x128xbf16>
    %83 = vector.shape_cast %82 : vector<1x128x128xbf16> to vector<128x128xbf16>
    %cst_84 = arith.constant dense<0.000000e+00> : vector<64x128xf32>
    %84 = tpu.matmul %81, %83, %cst_84 {dimension_numbers = #tpu.dot_dimension_numbers<[1], [0], [0], [1], [0, 0, 1, 1], [], []>} : vector<64x128xbf16>, vector<128x128xbf16>, vector<64x128xf32> -> vector<64x128xf32>
    %85 = arith.addf %77, %84 : vector<64x128xf32>
    %c0_85 = arith.constant 0 : index
    %c1_86 = arith.constant 1 : index
    %c0_87 = arith.constant 0 : index
    %c0_88 = arith.constant 0 : index
    %86 = vector.load %arg9[%c0_85, %c1_86, %c0_87, %c0_88] : memref<4x9x9x128xf32, #tpu.memory_space<vmem>>, vector<1x8x8x128xf32>
    %87 = vector.shape_cast %86 : vector<1x8x8x128xf32> to vector<8x8x128xf32>
    %88 = vector.shape_cast %87 : vector<8x8x128xf32> to vector<64x128xf32>
    %89 = arith.truncf %88 : vector<64x128xf32> to vector<64x128xbf16>
    %c6 = arith.constant 6 : index
    %c0_89 = arith.constant 0 : index
    %c0_90 = arith.constant 0 : index
    %90 = vector.load %arg4[%c6, %c0_89, %c0_90] : memref<9x128x128xbf16, #tpu.memory_space<vmem>>, vector<1x128x128xbf16>
    %91 = vector.shape_cast %90 : vector<1x128x128xbf16> to vector<128x128xbf16>
    %cst_91 = arith.constant dense<0.000000e+00> : vector<64x128xf32>
    %92 = tpu.matmul %89, %91, %cst_91 {dimension_numbers = #tpu.dot_dimension_numbers<[1], [0], [0], [1], [0, 0, 1, 1], [], []>} : vector<64x128xbf16>, vector<128x128xbf16>, vector<64x128xf32> -> vector<64x128xf32>
    %93 = arith.addf %85, %92 : vector<64x128xf32>
    %c1_92 = arith.constant 1 : index
    %c1_93 = arith.constant 1 : index
    %c0_94 = arith.constant 0 : index
    %c0_95 = arith.constant 0 : index
    %94 = vector.load %arg9[%c1_92, %c1_93, %c0_94, %c0_95] : memref<4x9x9x128xf32, #tpu.memory_space<vmem>>, vector<1x8x8x128xf32>
    %95 = vector.shape_cast %94 : vector<1x8x8x128xf32> to vector<8x8x128xf32>
    %96 = vector.shape_cast %95 : vector<8x8x128xf32> to vector<64x128xf32>
    %97 = arith.truncf %96 : vector<64x128xf32> to vector<64x128xbf16>
    %c7 = arith.constant 7 : index
    %c0_96 = arith.constant 0 : index
    %c0_97 = arith.constant 0 : index
    %98 = vector.load %arg4[%c7, %c0_96, %c0_97] : memref<9x128x128xbf16, #tpu.memory_space<vmem>>, vector<1x128x128xbf16>
    %99 = vector.shape_cast %98 : vector<1x128x128xbf16> to vector<128x128xbf16>
    %cst_98 = arith.constant dense<0.000000e+00> : vector<64x128xf32>
    %100 = tpu.matmul %97, %99, %cst_98 {dimension_numbers = #tpu.dot_dimension_numbers<[1], [0], [0], [1], [0, 0, 1, 1], [], []>} : vector<64x128xbf16>, vector<128x128xbf16>, vector<64x128xf32> -> vector<64x128xf32>
    %101 = arith.addf %93, %100 : vector<64x128xf32>
    %c0_99 = arith.constant 0 : index
    %c1_100 = arith.constant 1 : index
    %c1_101 = arith.constant 1 : index
    %c0_102 = arith.constant 0 : index
    %102 = vector.load %arg9[%c0_99, %c1_100, %c1_101, %c0_102] : memref<4x9x9x128xf32, #tpu.memory_space<vmem>>, vector<1x8x8x128xf32>
    %103 = vector.shape_cast %102 : vector<1x8x8x128xf32> to vector<8x8x128xf32>
    %104 = vector.shape_cast %103 : vector<8x8x128xf32> to vector<64x128xf32>
    %105 = arith.truncf %104 : vector<64x128xf32> to vector<64x128xbf16>
    %c8_103 = arith.constant 8 : index
    %c0_104 = arith.constant 0 : index
    %c0_105 = arith.constant 0 : index
    %106 = vector.load %arg4[%c8_103, %c0_104, %c0_105] : memref<9x128x128xbf16, #tpu.memory_space<vmem>>, vector<1x128x128xbf16>
    %107 = vector.shape_cast %106 : vector<1x128x128xbf16> to vector<128x128xbf16>
    %cst_106 = arith.constant dense<0.000000e+00> : vector<64x128xf32>
    %108 = tpu.matmul %105, %107, %cst_106 {dimension_numbers = #tpu.dot_dimension_numbers<[1], [0], [0], [1], [0, 0, 1, 1], [], []>} : vector<64x128xbf16>, vector<128x128xbf16>, vector<64x128xf32> -> vector<64x128xf32>
    %109 = arith.addf %101, %108 : vector<64x128xf32>
    %c0_107 = arith.constant 0 : index
    %c0_108 = arith.constant 0 : index
    %110 = vector.load %arg5[%c0_107, %c0_108] : memref<1x128xf32, #tpu.memory_space<vmem>>, vector<1x128xf32>
    %111 = vector.broadcast %110 : vector<1x128xf32> to vector<64x128xf32>
    %112 = arith.addf %109, %111 : vector<64x128xf32>
    %113 = vector.shape_cast %112 : vector<64x128xf32> to vector<1x64x128xf32>
    %114 = arith.truncf %113 : vector<1x64x128xf32> to vector<1x64x128xbf16>
    %c0_109 = arith.constant 0 : index
    %c0_110 = arith.constant 0 : index
    %c0_111 = arith.constant 0 : index
    %115 = vector.load %arg6[%c0_109, %c0_110, %c0_111] : memref<1x64x128xbf16, #tpu.memory_space<vmem>>, vector<1x64x128xbf16>
    tpu.vector_store %arg6[%c0_109, %c0_110, %c0_111], %114 {strides = array<i32>} : memref<1x64x128xbf16, #tpu.memory_space<vmem>>, vector<1x64x128xbf16>,
    %cst_112 = arith.constant dense<0.000000e+00> : vector<128xf32>
    %116 = vector.multi_reduction <add>, %109, %cst_112 [0] : vector<64x128xf32> to vector<128xf32>
    %117 = vector.shape_cast %116 : vector<128xf32> to vector<1x128xf32>
    %118 = vector.shape_cast %117 : vector<1x128xf32> to vector<1x1x128xf32>
    %c0_113 = arith.constant 0 : index
    %c0_114 = arith.constant 0 : index
    %c0_115 = arith.constant 0 : index
    %119 = vector.load %arg7[%c0_113, %c0_114, %c0_115] : memref<1x1x128xf32, #tpu.memory_space<vmem>>, vector<1x1x128xf32>
    tpu.vector_store %arg7[%c0_113, %c0_114, %c0_115], %118 {strides = array<i32>} : memref<1x1x128xf32, #tpu.memory_space<vmem>>, vector<1x1x128xf32>,
    %120 = arith.mulf %109, %109 : vector<64x128xf32>
    %cst_116 = arith.constant dense<0.000000e+00> : vector<128xf32>
    %121 = vector.multi_reduction <add>, %120, %cst_116 [0] : vector<64x128xf32> to vector<128xf32>
    %122 = vector.shape_cast %121 : vector<128xf32> to vector<1x128xf32>
    %123 = vector.shape_cast %122 : vector<1x128xf32> to vector<1x1x128xf32>
    %c0_117 = arith.constant 0 : index
    %c0_118 = arith.constant 0 : index
    %c0_119 = arith.constant 0 : index
    %124 = vector.load %arg8[%c0_117, %c0_118, %c0_119] : memref<1x1x128xf32, #tpu.memory_space<vmem>>, vector<1x1x128xf32>
    tpu.vector_store %arg8[%c0_117, %c0_118, %c0_119], %123 {strides = array<i32>} : memref<1x1x128xf32, #tpu.memory_space<vmem>>, vector<1x1x128xf32>,
    return
  }
  func.func @transform_0(%arg0: i32) -> (i32, i32, i32, i32) {
    %c0_i32 = arith.constant 0 : i32
    %c0_i32_0 = arith.constant 0 : i32
    %c0_i32_1 = arith.constant 0 : i32
    %c0_i32_2 = arith.constant 0 : i32
    return %arg0, %c0_i32, %c0_i32_0, %c0_i32_1 : i32, i32, i32, i32
  }
  func.func @transform_1(%arg0: i32) -> (i32, i32) {
    %c0_i32 = arith.constant 0 : i32
    %c0_i32_0 = arith.constant 0 : i32
    %c0_i32_1 = arith.constant 0 : i32
    return %c0_i32, %c0_i32_0 : i32, i32
  }
  func.func @transform_2(%arg0: i32) -> (i32, i32) {
    %c0_i32 = arith.constant 0 : i32
    %c0_i32_0 = arith.constant 0 : i32
    %c0_i32_1 = arith.constant 0 : i32
    return %c0_i32, %c0_i32_0 : i32, i32
  }
  func.func @transform_3(%arg0: i32) -> (i32, i32, i32) {
    %c0_i32 = arith.constant 0 : i32
    %c0_i32_0 = arith.constant 0 : i32
    %c0_i32_1 = arith.constant 0 : i32
    %c0_i32_2 = arith.constant 0 : i32
    return %c0_i32, %c0_i32_0, %c0_i32_1 : i32, i32, i32
  }
  func.func @transform_4(%arg0: i32) -> (i32, i32) {
    %c0_i32 = arith.constant 0 : i32
    %c0_i32_0 = arith.constant 0 : i32
    %c0_i32_1 = arith.constant 0 : i32
    return %c0_i32, %c0_i32_0 : i32, i32
  }
  func.func @transform_5(%arg0: i32) -> (i32, i32, i32) {
    %c0_i32 = arith.constant 0 : i32
    %c0_i32_0 = arith.constant 0 : i32
    %c0_i32_1 = arith.constant 0 : i32
    return %arg0, %c0_i32, %c0_i32_0 : i32, i32, i32
  }
  func.func @transform_6(%arg0: i32) -> (i32, i32, i32) {
    %c0_i32 = arith.constant 0 : i32
    %c0_i32_0 = arith.constant 0 : i32
    %c0_i32_1 = arith.constant 0 : i32
    return %arg0, %c0_i32, %c0_i32_0 : i32, i32, i32
  }
  func.func @transform_7(%arg0: i32) -> (i32, i32, i32) {
    %c0_i32 = arith.constant 0 : i32
    %c0_i32_0 = arith.constant 0 : i32
    %c0_i32_1 = arith.constant 0 : i32
    return %arg0, %c0_i32, %c0_i32_0 : i32, i32, i32
  }
}

</mosaic_0001>

<llo_original>
// kernel: preact_reduction_block.3
$region0: #{preact_reduction_block.3}
  #allocation0 [shape = 'u32[]', space=smem, size = 0x4, offset = 0x4, fixed_abs, tag = 'smem constant byte address 0x4 - core index']
  #allocation1 [shape = 'u32[144,128]{1,0:T(1,128)}', space=vmem, size = 0x12000, scoped, tag = 'internal scratch']
  #allocation2 [shape = 'f32[10,10,128]{2,1,0:T(8,128)}', space=vmem, size = 0x14000, scoped, tag = 'scratch operand']
  %s0 = inlined_call_operand.vmem [shape: bf16[2,64,128], index: 0, kind: input, shape index: {}]
  %s1 = inlined_call_operand.vmem [shape: f32[1,128], index: 1, kind: input, shape index: {}]
  %s2 = inlined_call_operand.vmem [shape: f32[1,128], index: 2, kind: input, shape index: {}]
  %s3 = inlined_call_operand.vmem [shape: bf16[9,128,128], index: 3, kind: input, shape index: {}]
  %s4 = inlined_call_operand.vmem [shape: f32[1,128], index: 4, kind: input, shape index: {}]
  %s5 = inlined_call_operand.vmem [shape: f32[2,64,128], index: 5, kind: output, shape index: {}]
  %s6 = sld [smem:[#allocation0]]
  $region53: #{preact_reduction_block.3} parent=0
    _
  %s8 = ssub.s32 1, %s6
  %s9 = scalar_select 0, %s8, %s6
  loop: start=0, step=1, limit=4
  $region2: #{preact_reduction_block.3} parent=0 // loop_pre_header
    _
  $region3: #{preact_reduction_block.3} parent=0 // loop_header
    %s11 = sphi 0, %s15
    %p12 = scmp.ge.s32.totalorder %s11, 4
    %s21 = sphi 0, %s23
    %s24 = sphi 0, %s21
    %s25 = sphi 0, %s24
    %s41 = sphi 0, %s25
    %s45 = sphi 0, %s45
    %s47 = sphi 0, %s45
    %s48 = sphi 0, %s47
    %s62 = sphi 0, %s48
    %s66 = sphi 0, %s66
    %s68 = sphi 0, %s66
    %s69 = sphi 0, %s68
    %s83 = sphi 0, %s69
    %s87 = sphi 0, %s87
    %s89 = sphi 0, %s87
    %s90 = sphi 0, %s89
    %s104 = sphi 0, %s90
    %s108 = sphi 0, %s108
    %s110 = sphi 0, %s108
    %s111 = sphi 0, %s110
    %s125 = sphi 0, %s111
    %s131 = sphi 0, %s133
    %s134 = sphi 0, %s131
    %s135 = sphi 0, %s134
    %s151 = sphi 0, %s135
  $region4: #{preact_reduction_block.3} parent=0 // loop_header_branch
    %14 = sbr.rel (%p12) target = $region8
  $region5: #{preact_reduction_block.3} parent=0 // loop_body
    %s16 = ssub.s32 %s11, 1
    %s17 = ssub.s32 %s11, 2
    %s18 = sadd.s32 %s11, 1
    %s19 = ssub.s32 %s11, %s18
    %p20 = scmp.eq.s32.totalorder %s19, 0
    %s22 = sadd.s32 %s21, 1
    %s23 = scalar_select %p20, %s21, %s22
    %p26 = pneg %p20
    %p27 = scmp.eq.s32.totalorder %s11, 1
    %p28 = por %p26, %p27
    %p29 = scmp.ne.s32.totalorder %s21, %s24
    %p30 = scmp.eq.s32.totalorder %s11, 0
    %p31 = por %p29, %p30
    %p32 = scmp.ne.s32.totalorder %s21, %s24
    %p33 = scmp.eq.s32.totalorder %s16, 1
    %p34 = por %p32, %p33
    %p35 = scmp.ne.s32.totalorder %s24, %s25
    %p36 = scmp.eq.s32.totalorder %s16, 0
    %p37 = por %p35, %p36
    %p38 = scmp.ne.s32.totalorder %s24, %s25
    %p39 = scmp.eq.s32.totalorder %s17, 1
    %p40 = por %p38, %p39
    %p42 = scmp.ne.s32.totalorder %s25, %s41
    %p43 = scmp.eq.s32.totalorder %s17, 0
    %p44 = por %p42, %p43
    %s46 = sadd.s32 %s45, 1
    %p49 = scmp.eq.s32.totalorder %s11, 1
    %p50 = scmp.ne.s32.totalorder %s45, %s47
    %p51 = scmp.eq.s32.totalorder %s11, 0
    %p52 = por %p50, %p51
    %p53 = scmp.ne.s32.totalorder %s45, %s47
    %p54 = scmp.eq.s32.totalorder %s16, 1
    %p55 = por %p53, %p54
    %p56 = scmp.ne.s32.totalorder %s47, %s48
    %p57 = scmp.eq.s32.totalorder %s16, 0
    %p58 = por %p56, %p57
    %p59 = scmp.ne.s32.totalorder %s47, %s48
    %p60 = scmp.eq.s32.totalorder %s17, 1
    %p61 = por %p59, %p60
    %p63 = scmp.ne.s32.totalorder %s48, %s62
    %p64 = scmp.eq.s32.totalorder %s17, 0
    %p65 = por %p63, %p64
    %s67 = sadd.s32 %s66, 1
    %p70 = scmp.eq.s32.totalorder %s11, 1
    %p71 = scmp.ne.s32.totalorder %s66, %s68
    %p72 = scmp.eq.s32.totalorder %s11, 0
    %p73 = por %p71, %p72
    %p74 = scmp.ne.s32.totalorder %s66, %s68
    %p75 = scmp.eq.s32.totalorder %s16, 1
    %p76 = por %p74, %p75
    %p77 = scmp.ne.s32.totalorder %s68, %s69
    %p78 = scmp.eq.s32.totalorder %s16, 0
    %p79 = por %p77, %p78
    %p80 = scmp.ne.s32.totalorder %s68, %s69
    %p81 = scmp.eq.s32.totalorder %s17, 1
    %p82 = por %p80, %p81
    %p84 = scmp.ne.s32.totalorder %s69, %s83
    %p85 = scmp.eq.s32.totalorder %s17, 0
    %p86 = por %p84, %p85
    %s88 = sadd.s32 %s87, 1
    %p91 = scmp.eq.s32.totalorder %s11, 1
    %p92 = scmp.ne.s32.totalorder %s87, %s89
    %p93 = scmp.eq.s32.totalorder %s11, 0
    %p94 = por %p92, %p93
    %p95 = scmp.ne.s32.totalorder %s87, %s89
    %p96 = scmp.eq.s32.totalorder %s16, 1
    %p97 = por %p95, %p96
    %p98 = scmp.ne.s32.totalorder %s89, %s90
    %p99 = scmp.eq.s32.totalorder %s16, 0
    %p100 = por %p98, %p99
    %p101 = scmp.ne.s32.totalorder %s89, %s90
    %p102 = scmp.eq.s32.totalorder %s17, 1
    %p103 = por %p101, %p102
    %p105 = scmp.ne.s32.totalorder %s90, %s104
    %p106 = scmp.eq.s32.totalorder %s17, 0
    %p107 = por %p105, %p106
    %s109 = sadd.s32 %s108, 1
    %p112 = scmp.eq.s32.totalorder %s11, 1
    %p113 = scmp.ne.s32.totalorder %s108, %s110
    %p114 = scmp.eq.s32.totalorder %s11, 0
    %p115 = por %p113, %p114
    %p116 = scmp.ne.s32.totalorder %s108, %s110
    %p117 = scmp.eq.s32.totalorder %s16, 1
    %p118 = por %p116, %p117
    %p119 = scmp.ne.s32.totalorder %s110, %s111
    %p120 = scmp.eq.s32.totalorder %s16, 0
    %p121 = por %p119, %p120
    %p122 = scmp.ne.s32.totalorder %s110, %s111
    %p123 = scmp.eq.s32.totalorder %s17, 1
    %p124 = por %p122, %p123
    %p126 = scmp.ne.s32.totalorder %s111, %s125
    %p127 = scmp.eq.s32.totalorder %s17, 0
    %p128 = por %p126, %p127
    %s129 = ssub.s32 %s11, %s18
    %p130 = scmp.eq.s32.totalorder %s129, 0
    %s132 = sadd.s32 %s131, 1
    %s133 = scalar_select %p130, %s131, %s132
    %p136 = pneg %p130
    %p137 = scmp.eq.s32.totalorder %s11, 1
    %p138 = por %p136, %p137
    %p139 = scmp.ne.s32.totalorder %s131, %s134
    %p140 = scmp.eq.s32.totalorder %s11, 0
    %p141 = por %p139, %p140
    %p142 = scmp.ne.s32.totalorder %s131, %s134
    %p143 = scmp.eq.s32.totalorder %s16, 1
    %p144 = por %p142, %p143
    %p145 = scmp.ne.s32.totalorder %s134, %s135
    %p146 = scmp.eq.s32.totalorder %s16, 0
    %p147 = por %p145, %p146
    %p148 = scmp.ne.s32.totalorder %s134, %s135
    %p149 = scmp.eq.s32.totalorder %s17, 1
    %p150 = por %p148, %p149
    %p152 = scmp.ne.s32.totalorder %s135, %s151
    %p153 = scmp.eq.s32.totalorder %s17, 0
    %p154 = por %p152, %p153
    %p155 = scmp.le.s32.totalorder 1, %s11
    %p156 = scmp.lt.s32.totalorder %s11, 3
    %p157 = pnand %p155, %p156
    %p158 = pneg %p157
    // Predicated region
    $region9: #{preact_reduction_block.3} parent=5 // pred_check
      _
    $region10: #{preact_reduction_block.3} parent=5 // pred_check_branch
      %160 = sbr.rel (%p157) target = $region12
    $region11: #{preact_reduction_block.3} parent=5 // pred_region
      %s161 = ssub.s32 %s11, 1
      // Predicated region
      $region13: #{preact_reduction_block.3} parent=11 // pred_check
        %p162 = pneg %p58
      $region14: #{preact_reduction_block.3} parent=11 // pred_check_branch
        %164 = sbr.rel (%p162) target = $region16
      $region15: #{preact_reduction_block.3} parent=11 // pred_region
        _
      $region16: #{preact_reduction_block.3} parent=11 // pred_fallthru
        _
      // Predicated region
      $region17: #{preact_reduction_block.3} parent=11 // pred_check
        %p165 = pneg %p79
      $region18: #{preact_reduction_block.3} parent=11 // pred_check_branch
        %167 = sbr.rel (%p165) target = $region20
      $region19: #{preact_reduction_block.3} parent=11 // pred_region
        _
      $region20: #{preact_reduction_block.3} parent=11 // pred_fallthru
        _
      // Predicated region
      $region21: #{preact_reduction_block.3} parent=11 // pred_check
        %p168 = pneg %p100
      $region22: #{preact_reduction_block.3} parent=11 // pred_check_branch
        %170 = sbr.rel (%p168) target = $region24
      $region23: #{preact_reduction_block.3} parent=11 // pred_region
        _
      $region24: #{preact_reduction_block.3} parent=11 // pred_fallthru
        _
      // Predicated region
      $region25: #{preact_reduction_block.3} parent=11 // pred_check
        %p171 = pneg %p121
      $region26: #{preact_reduction_block.3} parent=11 // pred_check_branch
        %173 = sbr.rel (%p171) target = $region28
      $region27: #{preact_reduction_block.3} parent=11 // pred_region
        _
      $region28: #{preact_reduction_block.3} parent=11 // pred_fallthru
        _
    $region12: #{preact_reduction_block.3} parent=5 // pred_fallthru
      _
    %p174 = scmp.lt.s32.totalorder %s11, 2
    // Predicated region
    $region29: #{preact_reduction_block.3} parent=5 // pred_check
      %p175 = pneg %p174
    $region30: #{preact_reduction_block.3} parent=5 // pred_check_branch
      %177 = sbr.rel (%p175) target = $region32
    $region31: #{preact_reduction_block.3} parent=5 // pred_region
      // Predicated region
      $region33: #{preact_reduction_block.3} parent=31 // pred_check
        %p178 = pneg %p31
      $region34: #{preact_reduction_block.3} parent=31 // pred_check_branch
        %180 = sbr.rel (%p178) target = $region36
      $region35: #{preact_reduction_block.3} parent=31 // pred_region
        %p181 = scmp.lt.s32.totalorder %s11, 1
        %s182 = scalar_select %p181, %s11, 1
        %s183 = smul.addr %s182, 8
        %s184 = smul.addr %s183, 4
        %s185 = scalar_lea.vmem %s0, %s184
      $region36: #{preact_reduction_block.3} parent=31 // pred_fallthru
        _
    $region32: #{preact_reduction_block.3} parent=5 // pred_fallthru
      _
    %p186 = scmp.le.s32.totalorder 1, %s11
    %p187 = scmp.lt.s32.totalorder %s11, 3
    %p188 = pnand %p186, %p187
    %p189 = pneg %p188
    // Predicated region
    $region37: #{preact_reduction_block.3} parent=5 // pred_check
      _
    $region38: #{preact_reduction_block.3} parent=5 // pred_check_branch
      %191 = sbr.rel (%p188) target = $region40
    $region39: #{preact_reduction_block.3} parent=5 // pred_region
      %s192 = ssub.s32 %s11, 1
      %p193 = scmp.lt.s32.totalorder %s16, 1
      %s194 = scalar_select %p193, %s16, 1
      %s195 = smul.addr %s194, 8
      %s196 = smul.addr %s195, 4
      %s197 = scalar_lea.vmem %s0, %s196
      %p198 = pneg %p37
      %p199 = pneg %p34
      %p200 = pneg %p58
      %p201 = pneg %p55
      %p202 = pneg %p79
      %p203 = pneg %p76
      %p204 = pneg %p100
      %p205 = pneg %p97
      %p206 = pneg %p121
      %p207 = pneg %p118
      %p208 = pneg %p147
      %p209 = pneg %p144
      %p210 = scmp.lt.s32.totalorder %s16, 1
      %s211 = scalar_select %p210, %s16, 1
      %s212 = smul.addr %s211, 8
      %s213 = smul.addr %s212, 8
      %s214 = scalar_lea.vmem %s5, %s213
      %p215 = scmp.lt.s32.totalorder %s16, 1
      %s216 = scalar_select %p215, %s16, 1
      %s217 = smul.addr %s216, 8
      %s218 = smul.addr %s217, 4
      %s219 = scalar_lea.vmem %s0, %s218
      %p220 = scmp.lt.s32.totalorder %s16, 1
      %s221 = scalar_select %p220, %s16, 1
      %s222 = smul.addr %s221, 8
      %s223 = smul.addr %s222, 8
      %s224 = scalar_lea.vmem %s5, %s223
      %v226 = vld [vmem:[%s219] sm:$0xf]
      %v227 = vld [vmem:[%s219 + $0x4] sm:$0xf]
      %v228 = vld [vmem:[%s219 + $0x8] sm:$0xf]
      %v229 = vld [vmem:[%s219 + $0xc] sm:$0xf]
      %v230 = vld [vmem:[%s219 + $0x10] sm:$0xf]
      %v231 = vld [vmem:[%s219 + $0x14] sm:$0xf]
      %v232 = vld [vmem:[%s219 + $0x18] sm:$0xf]
      %v233 = vld [vmem:[%s219 + $0x1c] sm:$0xf]
      %v234 = vunpack.c.l.bf16 %v226
      %v235 = vunpack.c.l.bf16 %v227
      %v236 = vunpack.c.l.bf16 %v228
      %v237 = vunpack.c.l.bf16 %v229
      %v238 = vunpack.c.l.bf16 %v230
      %v239 = vunpack.c.l.bf16 %v231
      %v240 = vunpack.c.l.bf16 %v232
      %v241 = vunpack.c.l.bf16 %v233
      %v242 = vld [vmem:[%s1] sm:$0x1]
      %v244 = vlaneseq
      %v245 = vshrl.u32 %v244, 7
      %v246 = vsub.s32 0, %v245
      %v247 = vrot.slane %v242, %v246
      %v249 = vmul.f32 %v234, %v247
      %v250 = vmul.f32 %v235, %v247
      %v251 = vmul.f32 %v236, %v247
      %v252 = vmul.f32 %v237, %v247
      %v253 = vmul.f32 %v238, %v247
      %v254 = vmul.f32 %v239, %v247
      %v255 = vmul.f32 %v240, %v247
      %v256 = vmul.f32 %v241, %v247
      %v257 = vld [vmem:[%s2] sm:$0x1]
      %v259 = vlaneseq
      %v260 = vshrl.u32 %v259, 7
      %v261 = vsub.s32 0, %v260
      %v262 = vrot.slane %v257, %v261
      %v264 = vadd.f32 %v249, %v262
      %v265 = vadd.f32 %v250, %v262
      %v266 = vadd.f32 %v251, %v262
      %v267 = vadd.f32 %v252, %v262
      %v268 = vadd.f32 %v253, %v262
      %v269 = vadd.f32 %v254, %v262
      %v270 = vadd.f32 %v255, %v262
      %v271 = vadd.f32 %v256, %v262
      %v272 = vmax.f32 %v264, 0.0
      %v273 = vmax.f32 %v265, 0.0
      %v274 = vmax.f32 %v266, 0.0
      %v275 = vmax.f32 %v267, 0.0
      %v276 = vmax.f32 %v268, 0.0
      %v277 = vmax.f32 %v269, 0.0
      %v278 = vmax.f32 %v270, 0.0
      %v279 = vmax.f32 %v271, 0.0
      %280 = vst [vmem:[#allocation2] sm:$0xff] 0.0
      %281 = vst [vmem:[#allocation2 + $0x8] sm:$0x3] 0.0
      %s282 = scalar_lea.vmem [#allocation2], 144
      %283 = vst [vmem:[%s282] sm:$0xff] 0.0
      %284 = vst [vmem:[%s282 + $0x8] sm:$0x3] 0.0
      %285 = vst [vmem:[#allocation2] sm:$0x1] 0.0
      %286 = vst [vmem:[#allocation2 + $0x10] sm:$0x1] 0.0
      %287 = vst [vmem:[#allocation2 + $0x20] sm:$0x1] 0.0
      %288 = vst [vmem:[#allocation2 + $0x30] sm:$0x1] 0.0
      %289 = vst [vmem:[#allocation2 + $0x40] sm:$0x1] 0.0
      %290 = vst [vmem:[#allocation2 + $0x50] sm:$0x1] 0.0
      %291 = vst [vmem:[#allocation2 + $0x60] sm:$0x1] 0.0
      %292 = vst [vmem:[#allocation2 + $0x70] sm:$0x1] 0.0
      %293 = vst [vmem:[#allocation2 + $0x80] sm:$0x1] 0.0
      %294 = vst [vmem:[#allocation2 + $0x90] sm:$0x1] 0.0
      %295 = vst [vmem:[#allocation2 + $0x9] sm:$0x1] 0.0
      %296 = vst [vmem:[#allocation2 + $0x19] sm:$0x1] 0.0
      %297 = vst [vmem:[#allocation2 + $0x29] sm:$0x1] 0.0
      %298 = vst [vmem:[#allocation2 + $0x39] sm:$0x1] 0.0
      %299 = vst [vmem:[#allocation2 + $0x49] sm:$0x1] 0.0
      %300 = vst [vmem:[#allocation2 + $0x59] sm:$0x1] 0.0
      %301 = vst [vmem:[#allocation2 + $0x69] sm:$0x1] 0.0
      %302 = vst [vmem:[#allocation2 + $0x79] sm:$0x1] 0.0
      %303 = vst [vmem:[#allocation2 + $0x89] sm:$0x1] 0.0
      %304 = vst [vmem:[#allocation2 + $0x99] sm:$0x1] 0.0
      %s305 = scalar_lea.vmem [#allocation2], 16
      %306 = vst [vmem:[%s305 + $0x1] sm:$0xff] %v272
      %307 = vst [vmem:[%s305 + $0x11] sm:$0xff] %v273
      %308 = vst [vmem:[%s305 + $0x21] sm:$0xff] %v274
      %309 = vst [vmem:[%s305 + $0x31] sm:$0xff] %v275
      %310 = vst [vmem:[%s305 + $0x41] sm:$0xff] %v276
      %311 = vst [vmem:[%s305 + $0x51] sm:$0xff] %v277
      %312 = vst [vmem:[%s305 + $0x61] sm:$0xff] %v278
      %313 = vst [vmem:[%s305 + $0x71] sm:$0xff] %v279
      %v314 = vld [vmem:[#allocation2] sm:$0xff]
      %v315 = vld [vmem:[#allocation2 + $0x10] sm:$0xff]
      %v316 = vld [vmem:[#allocation2 + $0x20] sm:$0xff]
      %v317 = vld [vmem:[#allocation2 + $0x30] sm:$0xff]
      %v318 = vld [vmem:[#allocation2 + $0x40] sm:$0xff]
      %v319 = vld [vmem:[#allocation2 + $0x50] sm:$0xff]
      %v320 = vld [vmem:[#allocation2 + $0x60] sm:$0xff]
      %v321 = vld [vmem:[#allocation2 + $0x70] sm:$0xff]
      %v322 = vpack.c.bf16 %v315, %v314
      %v323 = vpack.c.bf16 %v317, %v316
      %v324 = vpack.c.bf16 %v319, %v318
      %v325 = vpack.c.bf16 %v321, %v320
      %v326 = vld [vmem:[%s3] sm:$0xf]
      %v327 = vld [vmem:[%s3 + $0x4] sm:$0xf]
      %v328 = vld [vmem:[%s3 + $0x8] sm:$0xf]
      %v329 = vld [vmem:[%s3 + $0xc] sm:$0xf]
      %v330 = vld [vmem:[%s3 + $0x10] sm:$0xf]
      %v331 = vld [vmem:[%s3 + $0x14] sm:$0xf]
      %v332 = vld [vmem:[%s3 + $0x18] sm:$0xf]
      %v333 = vld [vmem:[%s3 + $0x1c] sm:$0xf]
      %v334 = vld [vmem:[%s3 + $0x20] sm:$0xf]
      %v335 = vld [vmem:[%s3 + $0x24] sm:$0xf]
      %v336 = vld [vmem:[%s3 + $0x28] sm:$0xf]
      %v337 = vld [vmem:[%s3 + $0x2c] sm:$0xf]
      %v338 = vld [vmem:[%s3 + $0x30] sm:$0xf]
      %v339 = vld [vmem:[%s3 + $0x34] sm:$0xf]
      %v340 = vld [vmem:[%s3 + $0x38] sm:$0xf]
      %v341 = vld [vmem:[%s3 + $0x3c] sm:$0xf]
      %v342 = vld [vmem:[#allocation2 + $0x1] sm:$0xff]
      %v343 = vld [vmem:[#allocation2 + $0x11] sm:$0xff]
      %v344 = vld [vmem:[#allocation2 + $0x21] sm:$0xff]
      %v345 = vld [vmem:[#allocation2 + $0x31] sm:$0xff]
      %v346 = vld [vmem:[#allocation2 + $0x41] sm:$0xff]
      %v347 = vld [vmem:[#allocation2 + $0x51] sm:$0xff]
      %v348 = vld [vmem:[#allocation2 + $0x61] sm:$0xff]
      %v349 = vld [vmem:[#allocation2 + $0x71] sm:$0xff]
      %v350 = vpack.c.bf16 %v343, %v342
      %v351 = vpack.c.bf16 %v345, %v344
      %v352 = vpack.c.bf16 %v347, %v346
      %v353 = vpack.c.bf16 %v349, %v348
      %s354 = scalar_lea.vmem %s3, 64
      %v355 = vld [vmem:[%s354] sm:$0xf]
      %v356 = vld [vmem:[%s354 + $0x4] sm:$0xf]
      %v357 = vld [vmem:[%s354 + $0x8] sm:$0xf]
      %v358 = vld [vmem:[%s354 + $0xc] sm:$0xf]
      %v359 = vld [vmem:[%s354 + $0x10] sm:$0xf]
      %v360 = vld [vmem:[%s354 + $0x14] sm:$0xf]
      %v361 = vld [vmem:[%s354 + $0x18] sm:$0xf]
      %v362 = vld [vmem:[%s354 + $0x1c] sm:$0xf]
      %v363 = vld [vmem:[%s354 + $0x20] sm:$0xf]
      %v364 = vld [vmem:[%s354 + $0x24] sm:$0xf]
      %v365 = vld [vmem:[%s354 + $0x28] sm:$0xf]
      %v366 = vld [vmem:[%s354 + $0x2c] sm:$0xf]
      %v367 = vld [vmem:[%s354 + $0x30] sm:$0xf]
      %v368 = vld [vmem:[%s354 + $0x34] sm:$0xf]
      %v369 = vld [vmem:[%s354 + $0x38] sm:$0xf]
      %v370 = vld [vmem:[%s354 + $0x3c] sm:$0xf]
      %v387 = vunpack.c.l.b16 %v355
      %v388 = vunpack.c.l.b16 %v356
      %v389 = vunpack.c.l.b16 %v357
      %v390 = vunpack.c.l.b16 %v358
      %v391 = vunpack.c.l.b16 %v359
      %v392 = vunpack.c.l.b16 %v360
      %v393 = vunpack.c.l.b16 %v361
      %v394 = vunpack.c.l.b16 %v362
      %v395 = vunpack.c.l.b16 %v363
      %v396 = vunpack.c.l.b16 %v364
      %v397 = vunpack.c.l.b16 %v365
      %v398 = vunpack.c.l.b16 %v366
      %v399 = vunpack.c.l.b16 %v367
      %v400 = vunpack.c.l.b16 %v368
      %v401 = vunpack.c.l.b16 %v369
      %v402 = vunpack.c.l.b16 %v370
      %v403 = vpack.c.b16 %v388, %v387
      %v404 = vpack.c.b16 %v390, %v389
      %v405 = vpack.c.b16 %v392, %v391
      %v406 = vpack.c.b16 %v394, %v393
      %v407 = vpack.c.b16 %v396, %v395
      %v408 = vpack.c.b16 %v398, %v397
      %v409 = vpack.c.b16 %v400, %v399
      %v410 = vpack.c.b16 %v402, %v401
      %419 = vmatprep.subr.bf16.mxu0 0
      %420 = vmatpush1.bf16.msra.mxu0 %v403
      %421 = vmatprep.subr.bf16.mxu0 0
      %422 = vmatpush1.bf16.msra.mxu0 %v404
      %423 = vmatprep.subr.bf16.mxu0 0
      %424 = vmatpush1.bf16.msra.mxu0 %v405
      %425 = vmatprep.subr.bf16.mxu0 0
      %426 = vmatpush1.bf16.msra.mxu0 %v406
      %427 = vmatprep.subr.bf16.mxu0 0
      %428 = vmatpush1.bf16.msra.mxu0 %v407
      %429 = vmatprep.subr.bf16.mxu0 0
      %430 = vmatpush1.bf16.msra.mxu0 %v408
      %431 = vmatprep.subr.bf16.mxu0 0
      %432 = vmatpush1.bf16.msra.mxu0 %v409
      %433 = vmatprep.subr.bf16.mxu0 0
      %434 = vmatpush1.bf16.msra.mxu0 %v410
      %435 = vmatprep.subr.bf16.mxu0 0
      %436 = vmatpush1.bf16.msra.mxu0 0
      %437 = vmatprep.subr.bf16.mxu0 0
      %438 = vmatpush1.bf16.msra.mxu0 0
      %439 = vmatprep.subr.bf16.mxu0 0
      %440 = vmatpush1.bf16.msra.mxu0 0
      %441 = vmatprep.subr.bf16.mxu0 0
      %442 = vmatpush1.bf16.msra.mxu0 0
      %443 = vmatprep.subr.bf16.mxu0 0
      %444 = vmatpush1.bf16.msra.mxu0 0
      %445 = vmatprep.subr.bf16.mxu0 0
      %446 = vmatpush1.bf16.msra.mxu0 0
      %447 = vmatprep.subr.bf16.mxu0 0
      %448 = vmatpush1.bf16.msra.mxu0 0
      %449 = vmatprep.subr.bf16.mxu0 0
      %450 = vmatpush1.bf16.msra.mxu0 0
      %451 = vmatprep.mubr.bf16.mxu0 0
      %452 = vmatmul.mubr.bf16.gmra.mrb[0].mxu0 %v350
      %v453 = vpop.f32.mrb[0].mxu0
      %v454 = vadd.f32 0.0, %v453
      %v455 = vpop.f32.mrb[0].mxu0
      %v456 = vpop.f32.mrb[0].mxu0
      %v457 = vadd.f32 0.0, %v456
      %v458 = vpop.f32.mrb[0].mxu0
      %459 = vmatprep.mubr.bf16.mxu0 0
      %460 = vmatmul.mubr.bf16.gmra.mrb[0].mxu0 %v351
      %v461 = vpop.f32.mrb[0].mxu0
      %v462 = vadd.f32 0.0, %v461
      %v463 = vpop.f32.mrb[0].mxu0
      %v464 = vpop.f32.mrb[0].mxu0
      %v465 = vadd.f32 0.0, %v464
      %v466 = vpop.f32.mrb[0].mxu0
      %467 = vmatprep.mubr.bf16.mxu0 0
      %468 = vmatmul.mubr.bf16.gmra.mrb[0].mxu0 %v352
      %v469 = vpop.f32.mrb[0].mxu0
      %v470 = vadd.f32 0.0, %v469
      %v471 = vpop.f32.mrb[0].mxu0
      %v472 = vpop.f32.mrb[0].mxu0
      %v473 = vadd.f32 0.0, %v472
      %v474 = vpop.f32.mrb[0].mxu0
      %475 = vmatprep.mubr.bf16.mxu0 0
      %476 = vmatmul.mubr.bf16.gmra.mrb[0].mxu0 %v353
      %v477 = vpop.f32.mrb[0].mxu0
      %v478 = vadd.f32 0.0, %v477
      %v479 = vpop.f32.mrb[0].mxu0
      %v480 = vpop.f32.mrb[0].mxu0
      %v481 = vadd.f32 0.0, %v480
      %v482 = vpop.f32.mrb[0].mxu0
      %483 = vdwg.mxu0
      %v500 = vunpack.c.l.b16 %v326
      %v501 = vunpack.c.l.b16 %v327
      %v502 = vunpack.c.l.b16 %v328
      %v503 = vunpack.c.l.b16 %v329
      %v504 = vunpack.c.l.b16 %v330
      %v505 = vunpack.c.l.b16 %v331
      %v506 = vunpack.c.l.b16 %v332
      %v507 = vunpack.c.l.b16 %v333
      %v508 = vunpack.c.l.b16 %v334
      %v509 = vunpack.c.l.b16 %v335
      %v510 = vunpack.c.l.b16 %v336
      %v511 = vunpack.c.l.b16 %v337
      %v512 = vunpack.c.l.b16 %v338
      %v513 = vunpack.c.l.b16 %v339
      %v514 = vunpack.c.l.b16 %v340
      %v515 = vunpack.c.l.b16 %v341
      %v516 = vpack.c.b16 %v501, %v500
      %v517 = vpack.c.b16 %v503, %v502
      %v518 = vpack.c.b16 %v505, %v504
      %v519 = vpack.c.b16 %v507, %v506
      %v520 = vpack.c.b16 %v509, %v508
      %v521 = vpack.c.b16 %v511, %v510
      %v522 = vpack.c.b16 %v513, %v512
      %v523 = vpack.c.b16 %v515, %v514
      %532 = vmatprep.subr.bf16.mxu0 0
      %533 = vmatpush1.bf16.msra.mxu0 %v516
      %534 = vmatprep.subr.bf16.mxu0 0
      %535 = vmatpush1.bf16.msra.mxu0 %v517
      %536 = vmatprep.subr.bf16.mxu0 0
      %537 = vmatpush1.bf16.msra.mxu0 %v518
      %538 = vmatprep.subr.bf16.mxu0 0
      %539 = vmatpush1.bf16.msra.mxu0 %v519
      %540 = vmatprep.subr.bf16.mxu0 0
      %541 = vmatpush1.bf16.msra.mxu0 %v520
      %542 = vmatprep.subr.bf16.mxu0 0
      %543 = vmatpush1.bf16.msra.mxu0 %v521
      %544 = vmatprep.subr.bf16.mxu0 0
      %545 = vmatpush1.bf16.msra.mxu0 %v522
      %546 = vmatprep.subr.bf16.mxu0 0
      %547 = vmatpush1.bf16.msra.mxu0 %v523
      %548 = vmatprep.subr.bf16.mxu0 0
      %549 = vmatpush1.bf16.msra.mxu0 0
      %550 = vmatprep.subr.bf16.mxu0 0
      %551 = vmatpush1.bf16.msra.mxu0 0
      %552 = vmatprep.subr.bf16.mxu0 0
      %553 = vmatpush1.bf16.msra.mxu0 0
      %554 = vmatprep.subr.bf16.mxu0 0
      %555 = vmatpush1.bf16.msra.mxu0 0
      %556 = vmatprep.subr.bf16.mxu0 0
      %557 = vmatpush1.bf16.msra.mxu0 0
      %558 = vmatprep.subr.bf16.mxu0 0
      %559 = vmatpush1.bf16.msra.mxu0 0
      %560 = vmatprep.subr.bf16.mxu0 0
      %561 = vmatpush1.bf16.msra.mxu0 0
      %562 = vmatprep.subr.bf16.mxu0 0
      %563 = vmatpush1.bf16.msra.mxu0 0
      %564 = vmatprep.mubr.bf16.mxu0 0
      %565 = vmatmul.mubr.bf16.gmra.mrb[0].mxu0 %v322
      %v566 = vpop.f32.mrb[0].mxu0
      %v567 = vadd.f32 %v454, %v566
      %v568 = vpop.f32.mrb[0].mxu0
      %v569 = vpop.f32.mrb[0].mxu0
      %v570 = vadd.f32 %v457, %v569
      %v571 = vpop.f32.mrb[0].mxu0
      %572 = vmatprep.mubr.bf16.mxu0 0
      %573 = vmatmul.mubr.bf16.gmra.mrb[0].mxu0 %v323
      %v574 = vpop.f32.mrb[0].mxu0
      %v575 = vadd.f32 %v462, %v574
      %v576 = vpop.f32.mrb[0].mxu0
      %v577 = vpop.f32.mrb[0].mxu0
      %v578 = vadd.f32 %v465, %v577
      %v579 = vpop.f32.mrb[0].mxu0
      %580 = vmatprep.mubr.bf16.mxu0 0
      %581 = vmatmul.mubr.bf16.gmra.mrb[0].mxu0 %v324
      %v582 = vpop.f32.mrb[0].mxu0
      %v583 = vadd.f32 %v470, %v582
      %v584 = vpop.f32.mrb[0].mxu0
      %v585 = vpop.f32.mrb[0].mxu0
      %v586 = vadd.f32 %v473, %v585
      %v587 = vpop.f32.mrb[0].mxu0
      %588 = vmatprep.mubr.bf16.mxu0 0
      %589 = vmatmul.mubr.bf16.gmra.mrb[0].mxu0 %v325
      %v590 = vpop.f32.mrb[0].mxu0
      %v591 = vadd.f32 %v478, %v590
      %v592 = vpop.f32.mrb[0].mxu0
      %v593 = vpop.f32.mrb[0].mxu0
      %v594 = vadd.f32 %v481, %v593
      %v595 = vpop.f32.mrb[0].mxu0
      %596 = vdwg.mxu0
      %v597 = vld [vmem:[#allocation2 + $0x2] sm:$0xff]
      %v598 = vld [vmem:[#allocation2 + $0x12] sm:$0xff]
      %v599 = vld [vmem:[#allocation2 + $0x22] sm:$0xff]
      %v600 = vld [vmem:[#allocation2 + $0x32] sm:$0xff]
      %v601 = vld [vmem:[#allocation2 + $0x42] sm:$0xff]
      %v602 = vld [vmem:[#allocation2 + $0x52] sm:$0xff]
      %v603 = vld [vmem:[#allocation2 + $0x62] sm:$0xff]
      %v604 = vld [vmem:[#allocation2 + $0x72] sm:$0xff]
      %v605 = vpack.c.bf16 %v598, %v597
      %v606 = vpack.c.bf16 %v600, %v599
      %v607 = vpack.c.bf16 %v602, %v601
      %v608 = vpack.c.bf16 %v604, %v603
      %s609 = scalar_lea.vmem %s3, 128
      %v610 = vld [vmem:[%s609] sm:$0xf]
      %v611 = vld [vmem:[%s609 + $0x4] sm:$0xf]
      %v612 = vld [vmem:[%s609 + $0x8] sm:$0xf]
      %v613 = vld [vmem:[%s609 + $0xc] sm:$0xf]
      %v614 = vld [vmem:[%s609 + $0x10] sm:$0xf]
      %v615 = vld [vmem:[%s609 + $0x14] sm:$0xf]
      %v616 = vld [vmem:[%s609 + $0x18] sm:$0xf]
      %v617 = vld [vmem:[%s609 + $0x1c] sm:$0xf]
      %v618 = vld [vmem:[%s609 + $0x20] sm:$0xf]
      %v619 = vld [vmem:[%s609 + $0x24] sm:$0xf]
      %v620 = vld [vmem:[%s609 + $0x28] sm:$0xf]
      %v621 = vld [vmem:[%s609 + $0x2c] sm:$0xf]
      %v622 = vld [vmem:[%s609 + $0x30] sm:$0xf]
      %v623 = vld [vmem:[%s609 + $0x34] sm:$0xf]
      %v624 = vld [vmem:[%s609 + $0x38] sm:$0xf]
      %v625 = vld [vmem:[%s609 + $0x3c] sm:$0xf]
      %v642 = vunpack.c.l.b16 %v610
      %v643 = vunpack.c.l.b16 %v611
      %v644 = vunpack.c.l.b16 %v612
      %v645 = vunpack.c.l.b16 %v613
      %v646 = vunpack.c.l.b16 %v614
      %v647 = vunpack.c.l.b16 %v615
      %v648 = vunpack.c.l.b16 %v616
      %v649 = vunpack.c.l.b16 %v617
      %v650 = vunpack.c.l.b16 %v618
      %v651 = vunpack.c.l.b16 %v619
      %v652 = vunpack.c.l.b16 %v620
      %v653 = vunpack.c.l.b16 %v621
      %v654 = vunpack.c.l.b16 %v622
      %v655 = vunpack.c.l.b16 %v623
      %v656 = vunpack.c.l.b16 %v624
      %v657 = vunpack.c.l.b16 %v625
      %v658 = vpack.c.b16 %v643, %v642
      %v659 = vpack.c.b16 %v645, %v644
      %v660 = vpack.c.b16 %v647, %v646
      %v661 = vpack.c.b16 %v649, %v648
      %v662 = vpack.c.b16 %v651, %v650
      %v663 = vpack.c.b16 %v653, %v652
      %v664 = vpack.c.b16 %v655, %v654
      %v665 = vpack.c.b16 %v657, %v656
      %674 = vmatprep.subr.bf16.mxu0 0
      %675 = vmatpush1.bf16.msra.mxu0 %v658
      %676 = vmatprep.subr.bf16.mxu0 0
      %677 = vmatpush1.bf16.msra.mxu0 %v659
      %678 = vmatprep.subr.bf16.mxu0 0
      %679 = vmatpush1.bf16.msra.mxu0 %v660
      %680 = vmatprep.subr.bf16.mxu0 0
      %681 = vmatpush1.bf16.msra.mxu0 %v661
      %682 = vmatprep.subr.bf16.mxu0 0
      %683 = vmatpush1.bf16.msra.mxu0 %v662
      %684 = vmatprep.subr.bf16.mxu0 0
      %685 = vmatpush1.bf16.msra.mxu0 %v663
      %686 = vmatprep.subr.bf16.mxu0 0
      %687 = vmatpush1.bf16.msra.mxu0 %v664
      %688 = vmatprep.subr.bf16.mxu0 0
      %689 = vmatpush1.bf16.msra.mxu0 %v665
      %690 = vmatprep.subr.bf16.mxu0 0
      %691 = vmatpush1.bf16.msra.mxu0 0
      %692 = vmatprep.subr.bf16.mxu0 0
      %693 = vmatpush1.bf16.msra.mxu0 0
      %694 = vmatprep.subr.bf16.mxu0 0
      %695 = vmatpush1.bf16.msra.mxu0 0
      %696 = vmatprep.subr.bf16.mxu0 0
      %697 = vmatpush1.bf16.msra.mxu0 0
      %698 = vmatprep.subr.bf16.mxu0 0
      %699 = vmatpush1.bf16.msra.mxu0 0
      %700 = vmatprep.subr.bf16.mxu0 0
      %701 = vmatpush1.bf16.msra.mxu0 0
      %702 = vmatprep.subr.bf16.mxu0 0
      %703 = vmatpush1.bf16.msra.mxu0 0
      %704 = vmatprep.subr.bf16.mxu0 0
      %705 = vmatpush1.bf16.msra.mxu0 0
      %706 = vmatprep.mubr.bf16.mxu0 0
      %707 = vmatmul.mubr.bf16.gmra.mrb[0].mxu0 %v605
      %v708 = vpop.f32.mrb[0].mxu0
      %v709 = vadd.f32 0.0, %v708
      %v710 = vpop.f32.mrb[0].mxu0
      %v711 = vpop.f32.mrb[0].mxu0
      %v712 = vadd.f32 0.0, %v711
      %v713 = vpop.f32.mrb[0].mxu0
      %714 = vmatprep.mubr.bf16.mxu0 0
      %715 = vmatmul.mubr.bf16.gmra.mrb[0].mxu0 %v606
      %v716 = vpop.f32.mrb[0].mxu0
      %v717 = vadd.f32 0.0, %v716
      %v718 = vpop.f32.mrb[0].mxu0
      %v719 = vpop.f32.mrb[0].mxu0
      %v720 = vadd.f32 0.0, %v719
      %v721 = vpop.f32.mrb[0].mxu0
      %722 = vmatprep.mubr.bf16.mxu0 0
      %723 = vmatmul.mubr.bf16.gmra.mrb[0].mxu0 %v607
      %v724 = vpop.f32.mrb[0].mxu0
      %v725 = vadd.f32 0.0, %v724
      %v726 = vpop.f32.mrb[0].mxu0
      %v727 = vpop.f32.mrb[0].mxu0
      %v728 = vadd.f32 0.0, %v727
      %v729 = vpop.f32.mrb[0].mxu0
      %730 = vmatprep.mubr.bf16.mxu0 0
      %731 = vmatmul.mubr.bf16.gmra.mrb[0].mxu0 %v608
      %v732 = vpop.f32.mrb[0].mxu0
      %v733 = vadd.f32 0.0, %v732
      %v734 = vpop.f32.mrb[0].mxu0
      %v735 = vpop.f32.mrb[0].mxu0
      %v736 = vadd.f32 0.0, %v735
      %v737 = vpop.f32.mrb[0].mxu0
      %738 = vdwg.mxu0
      %v739 = vadd.f32 %v567, %v709
      %v740 = vadd.f32 %v570, %v712
      %v741 = vadd.f32 %v575, %v717
      %v742 = vadd.f32 %v578, %v720
      %v743 = vadd.f32 %v583, %v725
      %v744 = vadd.f32 %v586, %v728
      %v745 = vadd.f32 %v591, %v733
      %v746 = vadd.f32 %v594, %v736
      %v747 = vld [vmem:[%s305] sm:$0xff]
      %v748 = vld [vmem:[%s305 + $0x10] sm:$0xff]
      %v749 = vld [vmem:[%s305 + $0x20] sm:$0xff]
      %v750 = vld [vmem:[%s305 + $0x30] sm:$0xff]
      %v751 = vld [vmem:[%s305 + $0x40] sm:$0xff]
      %v752 = vld [vmem:[%s305 + $0x50] sm:$0xff]
      %v753 = vld [vmem:[%s305 + $0x60] sm:$0xff]
      %v754 = vld [vmem:[%s305 + $0x70] sm:$0xff]
      %v755 = vpack.c.bf16 %v748, %v747
      %v756 = vpack.c.bf16 %v750, %v749
      %v757 = vpack.c.bf16 %v752, %v751
      %v758 = vpack.c.bf16 %v754, %v753
      %s759 = scalar_lea.vmem %s3, 192
      %v760 = vld [vmem:[%s759] sm:$0xf]
      %v761 = vld [vmem:[%s759 + $0x4] sm:$0xf]
      %v762 = vld [vmem:[%s759 + $0x8] sm:$0xf]
      %v763 = vld [vmem:[%s759 + $0xc] sm:$0xf]
      %v764 = vld [vmem:[%s759 + $0x10] sm:$0xf]
      %v765 = vld [vmem:[%s759 + $0x14] sm:$0xf]
      %v766 = vld [vmem:[%s759 + $0x18] sm:$0xf]
      %v767 = vld [vmem:[%s759 + $0x1c] sm:$0xf]
      %v768 = vld [vmem:[%s759 + $0x20] sm:$0xf]
      %v769 = vld [vmem:[%s759 + $0x24] sm:$0xf]
      %v770 = vld [vmem:[%s759 + $0x28] sm:$0xf]
      %v771 = vld [vmem:[%s759 + $0x2c] sm:$0xf]
      %v772 = vld [vmem:[%s759 + $0x30] sm:$0xf]
      %v773 = vld [vmem:[%s759 + $0x34] sm:$0xf]
      %v774 = vld [vmem:[%s759 + $0x38] sm:$0xf]
      %v775 = vld [vmem:[%s759 + $0x3c] sm:$0xf]
      %v792 = vunpack.c.l.b16 %v760
      %v793 = vunpack.c.l.b16 %v761
      %v794 = vunpack.c.l.b16 %v762
      %v795 = vunpack.c.l.b16 %v763
      %v796 = vunpack.c.l.b16 %v764
      %v797 = vunpack.c.l.b16 %v765
      %v798 = vunpack.c.l.b16 %v766
      %v799 = vunpack.c.l.b16 %v767
      %v800 = vunpack.c.l.b16 %v768
      %v801 = vunpack.c.l.b16 %v769
      %v802 = vunpack.c.l.b16 %v770
      %v803 = vunpack.c.l.b16 %v771
      %v804 = vunpack.c.l.b16 %v772
      %v805 = vunpack.c.l.b16 %v773
      %v806 = vunpack.c.l.b16 %v774
      %v807 = vunpack.c.l.b16 %v775
      %v808 = vpack.c.b16 %v793, %v792
      %v809 = vpack.c.b16 %v795, %v794
      %v810 = vpack.c.b16 %v797, %v796
      %v811 = vpack.c.b16 %v799, %v798
      %v812 = vpack.c.b16 %v801, %v800
      %v813 = vpack.c.b16 %v803, %v802
      %v814 = vpack.c.b16 %v805, %v804
      %v815 = vpack.c.b16 %v807, %v806
      %824 = vmatprep.subr.bf16.mxu0 0
      %825 = vmatpush1.bf16.msra.mxu0 %v808
      %826 = vmatprep.subr.bf16.mxu0 0
      %827 = vmatpush1.bf16.msra.mxu0 %v809
      %828 = vmatprep.subr.bf16.mxu0 0
      %829 = vmatpush1.bf16.msra.mxu0 %v810
      %830 = vmatprep.subr.bf16.mxu0 0
      %831 = vmatpush1.bf16.msra.mxu0 %v811
      %832 = vmatprep.subr.bf16.mxu0 0
      %833 = vmatpush1.bf16.msra.mxu0 %v812
      %834 = vmatprep.subr.bf16.mxu0 0
      %835 = vmatpush1.bf16.msra.mxu0 %v813
      %836 = vmatprep.subr.bf16.mxu0 0
      %837 = vmatpush1.bf16.msra.mxu0 %v814
      %838 = vmatprep.subr.bf16.mxu0 0
      %839 = vmatpush1.bf16.msra.mxu0 %v815
      %840 = vmatprep.subr.bf16.mxu0 0
      %841 = vmatpush1.bf16.msra.mxu0 0
      %842 = vmatprep.subr.bf16.mxu0 0
      %843 = vmatpush1.bf16.msra.mxu0 0
      %844 = vmatprep.subr.bf16.mxu0 0
      %845 = vmatpush1.bf16.msra.mxu0 0
      %846 = vmatprep.subr.bf16.mxu0 0
      %847 = vmatpush1.bf16.msra.mxu0 0
      %848 = vmatprep.subr.bf16.mxu0 0
      %849 = vmatpush1.bf16.msra.mxu0 0
      %850 = vmatprep.subr.bf16.mxu0 0
      %851 = vmatpush1.bf16.msra.mxu0 0
      %852 = vmatprep.subr.bf16.mxu0 0
      %853 = vmatpush1.bf16.msra.mxu0 0
      %854 = vmatprep.subr.bf16.mxu0 0
      %855 = vmatpush1.bf16.msra.mxu0 0
      %856 = vmatprep.mubr.bf16.mxu0 0
      %857 = vmatmul.mubr.bf16.gmra.mrb[0].mxu0 %v755
      %v858 = vpop.f32.mrb[0].mxu0
      %v859 = vadd.f32 0.0, %v858
      %v860 = vpop.f32.mrb[0].mxu0
      %v861 = vpop.f32.mrb[0].mxu0
      %v862 = vadd.f32 0.0, %v861
      %v863 = vpop.f32.mrb[0].mxu0
      %864 = vmatprep.mubr.bf16.mxu0 0
      %865 = vmatmul.mubr.bf16.gmra.mrb[0].mxu0 %v756
      %v866 = vpop.f32.mrb[0].mxu0
      %v867 = vadd.f32 0.0, %v866
      %v868 = vpop.f32.mrb[0].mxu0
      %v869 = vpop.f32.mrb[0].mxu0
      %v870 = vadd.f32 0.0, %v869
      %v871 = vpop.f32.mrb[0].mxu0
      %872 = vmatprep.mubr.bf16.mxu0 0
      %873 = vmatmul.mubr.bf16.gmra.mrb[0].mxu0 %v757
      %v874 = vpop.f32.mrb[0].mxu0
      %v875 = vadd.f32 0.0, %v874
      %v876 = vpop.f32.mrb[0].mxu0
      %v877 = vpop.f32.mrb[0].mxu0
      %v878 = vadd.f32 0.0, %v877
      %v879 = vpop.f32.mrb[0].mxu0
      %880 = vmatprep.mubr.bf16.mxu0 0
      %881 = vmatmul.mubr.bf16.gmra.mrb[0].mxu0 %v758
      %v882 = vpop.f32.mrb[0].mxu0
      %v883 = vadd.f32 0.0, %v882
      %v884 = vpop.f32.mrb[0].mxu0
      %v885 = vpop.f32.mrb[0].mxu0
      %v886 = vadd.f32 0.0, %v885
      %v887 = vpop.f32.mrb[0].mxu0
      %888 = vdwg.mxu0
      %v889 = vadd.f32 %v739, %v859
      %v890 = vadd.f32 %v740, %v862
      %v891 = vadd.f32 %v741, %v867
      %v892 = vadd.f32 %v742, %v870
      %v893 = vadd.f32 %v743, %v875
      %v894 = vadd.f32 %v744, %v878
      %v895 = vadd.f32 %v745, %v883
      %v896 = vadd.f32 %v746, %v886
      %v897 = vld [vmem:[%s305 + $0x1] sm:$0xff]
      %v898 = vld [vmem:[%s305 + $0x11] sm:$0xff]
      %v899 = vld [vmem:[%s305 + $0x21] sm:$0xff]
      %v900 = vld [vmem:[%s305 + $0x31] sm:$0xff]
      %v901 = vld [vmem:[%s305 + $0x41] sm:$0xff]
      %v902 = vld [vmem:[%s305 + $0x51] sm:$0xff]
      %v903 = vld [vmem:[%s305 + $0x61] sm:$0xff]
      %v904 = vld [vmem:[%s305 + $0x71] sm:$0xff]
      %v905 = vpack.c.bf16 %v898, %v897
      %v906 = vpack.c.bf16 %v900, %v899
      %v907 = vpack.c.bf16 %v902, %v901
      %v908 = vpack.c.bf16 %v904, %v903
      %s909 = scalar_lea.vmem %s3, 256
      %v910 = vld [vmem:[%s909] sm:$0xf]
      %v911 = vld [vmem:[%s909 + $0x4] sm:$0xf]
      %v912 = vld [vmem:[%s909 + $0x8] sm:$0xf]
      %v913 = vld [vmem:[%s909 + $0xc] sm:$0xf]
      %v914 = vld [vmem:[%s909 + $0x10] sm:$0xf]
      %v915 = vld [vmem:[%s909 + $0x14] sm:$0xf]
      %v916 = vld [vmem:[%s909 + $0x18] sm:$0xf]
      %v917 = vld [vmem:[%s909 + $0x1c] sm:$0xf]
      %v918 = vld [vmem:[%s909 + $0x20] sm:$0xf]
      %v919 = vld [vmem:[%s909 + $0x24] sm:$0xf]
      %v920 = vld [vmem:[%s909 + $0x28] sm:$0xf]
      %v921 = vld [vmem:[%s909 + $0x2c] sm:$0xf]
      %v922 = vld [vmem:[%s909 + $0x30] sm:$0xf]
      %v923 = vld [vmem:[%s909 + $0x34] sm:$0xf]
      %v924 = vld [vmem:[%s909 + $0x38] sm:$0xf]
      %v925 = vld [vmem:[%s909 + $0x3c] sm:$0xf]
      %v942 = vunpack.c.l.b16 %v910
      %v943 = vunpack.c.l.b16 %v911
      %v944 = vunpack.c.l.b16 %v912
      %v945 = vunpack.c.l.b16 %v913
      %v946 = vunpack.c.l.b16 %v914
      %v947 = vunpack.c.l.b16 %v915
      %v948 = vunpack.c.l.b16 %v916
      %v949 = vunpack.c.l.b16 %v917
      %v950 = vunpack.c.l.b16 %v918
      %v951 = vunpack.c.l.b16 %v919
      %v952 = vunpack.c.l.b16 %v920
      %v953 = vunpack.c.l.b16 %v921
      %v954 = vunpack.c.l.b16 %v922
      %v955 = vunpack.c.l.b16 %v923
      %v956 = vunpack.c.l.b16 %v924
      %v957 = vunpack.c.l.b16 %v925
      %v958 = vpack.c.b16 %v943, %v942
      %v959 = vpack.c.b16 %v945, %v944
      %v960 = vpack.c.b16 %v947, %v946
      %v961 = vpack.c.b16 %v949, %v948
      %v962 = vpack.c.b16 %v951, %v950
      %v963 = vpack.c.b16 %v953, %v952
      %v964 = vpack.c.b16 %v955, %v954
      %v965 = vpack.c.b16 %v957, %v956
      %974 = vmatprep.subr.bf16.mxu0 0
      %975 = vmatpush1.bf16.msra.mxu0 %v958
      %976 = vmatprep.subr.bf16.mxu0 0
      %977 = vmatpush1.bf16.msra.mxu0 %v959
      %978 = vmatprep.subr.bf16.mxu0 0
      %979 = vmatpush1.bf16.msra.mxu0 %v960
      %980 = vmatprep.subr.bf16.mxu0 0
      %981 = vmatpush1.bf16.msra.mxu0 %v961
      %982 = vmatprep.subr.bf16.mxu0 0
      %983 = vmatpush1.bf16.msra.mxu0 %v962
      %984 = vmatprep.subr.bf16.mxu0 0
      %985 = vmatpush1.bf16.msra.mxu0 %v963
      %986 = vmatprep.subr.bf16.mxu0 0
      %987 = vmatpush1.bf16.msra.mxu0 %v964
      %988 = vmatprep.subr.bf16.mxu0 0
      %989 = vmatpush1.bf16.msra.mxu0 %v965
      %990 = vmatprep.subr.bf16.mxu0 0
      %991 = vmatpush1.bf16.msra.mxu0 0
      %992 = vmatprep.subr.bf16.mxu0 0
      %993 = vmatpush1.bf16.msra.mxu0 0
      %994 = vmatprep.subr.bf16.mxu0 0
      %995 = vmatpush1.bf16.msra.mxu0 0
      %996 = vmatprep.subr.bf16.mxu0 0
      %997 = vmatpush1.bf16.msra.mxu0 0
      %998 = vmatprep.subr.bf16.mxu0 0
      %999 = vmatpush1.bf16.msra.mxu0 0
      %1000 = vmatprep.subr.bf16.mxu0 0
      %1001 = vmatpush1.bf16.msra.mxu0 0
      %1002 = vmatprep.subr.bf16.mxu0 0
      %1003 = vmatpush1.bf16.msra.mxu0 0
      %1004 = vmatprep.subr.bf16.mxu0 0
      %1005 = vmatpush1.bf16.msra.mxu0 0
      %1006 = vmatprep.mubr.bf16.mxu0 0
      %1007 = vmatmul.mubr.bf16.gmra.mrb[0].mxu0 %v905
      %v1008 = vpop.f32.mrb[0].mxu0
      %v1009 = vadd.f32 0.0, %v1008
      %v1010 = vpop.f32.mrb[0].mxu0
      %v1011 = vpop.f32.mrb[0].mxu0
      %v1012 = vadd.f32 0.0, %v1011
      %v1013 = vpop.f32.mrb[0].mxu0
      %1014 = vmatprep.mubr.bf16.mxu0 0
      %1015 = vmatmul.mubr.bf16.gmra.mrb[0].mxu0 %v906
      %v1016 = vpop.f32.mrb[0].mxu0
      %v1017 = vadd.f32 0.0, %v1016
      %v1018 = vpop.f32.mrb[0].mxu0
      %v1019 = vpop.f32.mrb[0].mxu0
      %v1020 = vadd.f32 0.0, %v1019
      %v1021 = vpop.f32.mrb[0].mxu0
      %1022 = vmatprep.mubr.bf16.mxu0 0
      %1023 = vmatmul.mubr.bf16.gmra.mrb[0].mxu0 %v907
      %v1024 = vpop.f32.mrb[0].mxu0
      %v1025 = vadd.f32 0.0, %v1024
      %v1026 = vpop.f32.mrb[0].mxu0
      %v1027 = vpop.f32.mrb[0].mxu0
      %v1028 = vadd.f32 0.0, %v1027
      %v1029 = vpop.f32.mrb[0].mxu0
      %1030 = vmatprep.mubr.bf16.mxu0 0
      %1031 = vmatmul.mubr.bf16.gmra.mrb[0].mxu0 %v908
      %v1032 = vpop.f32.mrb[0].mxu0
      %v1033 = vadd.f32 0.0, %v1032
      %v1034 = vpop.f32.mrb[0].mxu0
      %v1035 = vpop.f32.mrb[0].mxu0
      %v1036 = vadd.f32 0.0, %v1035
      %v1037 = vpop.f32.mrb[0].mxu0
      %1038 = vdwg.mxu0
      %v1039 = vadd.f32 %v889, %v1009
      %v1040 = vadd.f32 %v890, %v1012
      %v1041 = vadd.f32 %v891, %v1017
      %v1042 = vadd.f32 %v892, %v1020
      %v1043 = vadd.f32 %v893, %v1025
      %v1044 = vadd.f32 %v894, %v1028
      %v1045 = vadd.f32 %v895, %v1033
      %v1046 = vadd.f32 %v896, %v1036
      %v1047 = vld [vmem:[%s305 + $0x2] sm:$0xff]
      %v1048 = vld [vmem:[%s305 + $0x12] sm:$0xff]
      %v1049 = vld [vmem:[%s305 + $0x22] sm:$0xff]
      %v1050 = vld [vmem:[%s305 + $0x32] sm:$0xff]
      %v1051 = vld [vmem:[%s305 + $0x42] sm:$0xff]
      %v1052 = vld [vmem:[%s305 + $0x52] sm:$0xff]
      %v1053 = vld [vmem:[%s305 + $0x62] sm:$0xff]
      %v1054 = vld [vmem:[%s305 + $0x72] sm:$0xff]
      %v1055 = vpack.c.bf16 %v1048, %v1047
      %v1056 = vpack.c.bf16 %v1050, %v1049
      %v1057 = vpack.c.bf16 %v1052, %v1051
      %v1058 = vpack.c.bf16 %v1054, %v1053
      %s1059 = scalar_lea.vmem %s3, 320
      %v1060 = vld [vmem:[%s1059] sm:$0xf]
      %v1061 = vld [vmem:[%s1059 + $0x4] sm:$0xf]
      %v1062 = vld [vmem:[%s1059 + $0x8] sm:$0xf]
      %v1063 = vld [vmem:[%s1059 + $0xc] sm:$0xf]
      %v1064 = vld [vmem:[%s1059 + $0x10] sm:$0xf]
      %v1065 = vld [vmem:[%s1059 + $0x14] sm:$0xf]
      %v1066 = vld [vmem:[%s1059 + $0x18] sm:$0xf]
      %v1067 = vld [vmem:[%s1059 + $0x1c] sm:$0xf]
      %v1068 = vld [vmem:[%s1059 + $0x20] sm:$0xf]
      %v1069 = vld [vmem:[%s1059 + $0x24] sm:$0xf]
      %v1070 = vld [vmem:[%s1059 + $0x28] sm:$0xf]
      %v1071 = vld [vmem:[%s1059 + $0x2c] sm:$0xf]
      %v1072 = vld [vmem:[%s1059 + $0x30] sm:$0xf]
      %v1073 = vld [vmem:[%s1059 + $0x34] sm:$0xf]
      %v1074 = vld [vmem:[%s1059 + $0x38] sm:$0xf]
      %v1075 = vld [vmem:[%s1059 + $0x3c] sm:$0xf]
      %v1092 = vunpack.c.l.b16 %v1060
      %v1093 = vunpack.c.l.b16 %v1061
      %v1094 = vunpack.c.l.b16 %v1062
      %v1095 = vunpack.c.l.b16 %v1063
      %v1096 = vunpack.c.l.b16 %v1064
      %v1097 = vunpack.c.l.b16 %v1065
      %v1098 = vunpack.c.l.b16 %v1066
      %v1099 = vunpack.c.l.b16 %v1067
      %v1100 = vunpack.c.l.b16 %v1068
      %v1101 = vunpack.c.l.b16 %v1069
      %v1102 = vunpack.c.l.b16 %v1070
      %v1103 = vunpack.c.l.b16 %v1071
      %v1104 = vunpack.c.l.b16 %v1072
      %v1105 = vunpack.c.l.b16 %v1073
      %v1106 = vunpack.c.l.b16 %v1074
      %v1107 = vunpack.c.l.b16 %v1075
      %v1108 = vpack.c.b16 %v1093, %v1092
      %v1109 = vpack.c.b16 %v1095, %v1094
      %v1110 = vpack.c.b16 %v1097, %v1096
      %v1111 = vpack.c.b16 %v1099, %v1098
      %v1112 = vpack.c.b16 %v1101, %v1100
      %v1113 = vpack.c.b16 %v1103, %v1102
      %v1114 = vpack.c.b16 %v1105, %v1104
      %v1115 = vpack.c.b16 %v1107, %v1106
      %1124 = vmatprep.subr.bf16.mxu0 0
      %1125 = vmatpush1.bf16.msra.mxu0 %v1108
      %1126 = vmatprep.subr.bf16.mxu0 0
      %1127 = vmatpush1.bf16.msra.mxu0 %v1109
      %1128 = vmatprep.subr.bf16.mxu0 0
      %1129 = vmatpush1.bf16.msra.mxu0 %v1110
      %1130 = vmatprep.subr.bf16.mxu0 0
      %1131 = vmatpush1.bf16.msra.mxu0 %v1111
      %1132 = vmatprep.subr.bf16.mxu0 0
      %1133 = vmatpush1.bf16.msra.mxu0 %v1112
      %1134 = vmatprep.subr.bf16.mxu0 0
      %1135 = vmatpush1.bf16.msra.mxu0 %v1113
      %1136 = vmatprep.subr.bf16.mxu0 0
      %1137 = vmatpush1.bf16.msra.mxu0 %v1114
      %1138 = vmatprep.subr.bf16.mxu0 0
      %1139 = vmatpush1.bf16.msra.mxu0 %v1115
      %1140 = vmatprep.subr.bf16.mxu0 0
      %1141 = vmatpush1.bf16.msra.mxu0 0
      %1142 = vmatprep.subr.bf16.mxu0 0
      %1143 = vmatpush1.bf16.msra.mxu0 0
      %1144 = vmatprep.subr.bf16.mxu0 0
      %1145 = vmatpush1.bf16.msra.mxu0 0
      %1146 = vmatprep.subr.bf16.mxu0 0
      %1147 = vmatpush1.bf16.msra.mxu0 0
      %1148 = vmatprep.subr.bf16.mxu0 0
      %1149 = vmatpush1.bf16.msra.mxu0 0
      %1150 = vmatprep.subr.bf16.mxu0 0
      %1151 = vmatpush1.bf16.msra.mxu0 0
      %1152 = vmatprep.subr.bf16.mxu0 0
      %1153 = vmatpush1.bf16.msra.mxu0 0
      %1154 = vmatprep.subr.bf16.mxu0 0
      %1155 = vmatpush1.bf16.msra.mxu0 0
      %1156 = vmatprep.mubr.bf16.mxu0 0
      %1157 = vmatmul.mubr.bf16.gmra.mrb[0].mxu0 %v1055
      %v1158 = vpop.f32.mrb[0].mxu0
      %v1159 = vadd.f32 0.0, %v1158
      %v1160 = vpop.f32.mrb[0].mxu0
      %v1161 = vpop.f32.mrb[0].mxu0
      %v1162 = vadd.f32 0.0, %v1161
      %v1163 = vpop.f32.mrb[0].mxu0
      %1164 = vmatprep.mubr.bf16.mxu0 0
      %1165 = vmatmul.mubr.bf16.gmra.mrb[0].mxu0 %v1056
      %v1166 = vpop.f32.mrb[0].mxu0
      %v1167 = vadd.f32 0.0, %v1166
      %v1168 = vpop.f32.mrb[0].mxu0
      %v1169 = vpop.f32.mrb[0].mxu0
      %v1170 = vadd.f32 0.0, %v1169
      %v1171 = vpop.f32.mrb[0].mxu0
      %1172 = vmatprep.mubr.bf16.mxu0 0
      %1173 = vmatmul.mubr.bf16.gmra.mrb[0].mxu0 %v1057
      %v1174 = vpop.f32.mrb[0].mxu0
      %v1175 = vadd.f32 0.0, %v1174
      %v1176 = vpop.f32.mrb[0].mxu0
      %v1177 = vpop.f32.mrb[0].mxu0
      %v1178 = vadd.f32 0.0, %v1177
      %v1179 = vpop.f32.mrb[0].mxu0
      %1180 = vmatprep.mubr.bf16.mxu0 0
      %1181 = vmatmul.mubr.bf16.gmra.mrb[0].mxu0 %v1058
      %v1182 = vpop.f32.mrb[0].mxu0
      %v1183 = vadd.f32 0.0, %v1182
      %v1184 = vpop.f32.mrb[0].mxu0
      %v1185 = vpop.f32.mrb[0].mxu0
      %v1186 = vadd.f32 0.0, %v1185
      %v1187 = vpop.f32.mrb[0].mxu0
      %1188 = vdwg.mxu0
      %v1189 = vadd.f32 %v1039, %v1159
      %v1190 = vadd.f32 %v1040, %v1162
      %v1191 = vadd.f32 %v1041, %v1167
      %v1192 = vadd.f32 %v1042, %v1170
      %v1193 = vadd.f32 %v1043, %v1175
      %v1194 = vadd.f32 %v1044, %v1178
      %v1195 = vadd.f32 %v1045, %v1183
      %v1196 = vadd.f32 %v1046, %v1186
      %s1197 = scalar_lea.vmem [#allocation2], 32
      %v1198 = vld [vmem:[%s1197] sm:$0xff]
      %v1199 = vld [vmem:[%s1197 + $0x10] sm:$0xff]
      %v1200 = vld [vmem:[%s1197 + $0x20] sm:$0xff]
      %v1201 = vld [vmem:[%s1197 + $0x30] sm:$0xff]
      %v1202 = vld [vmem:[%s1197 + $0x40] sm:$0xff]
      %v1203 = vld [vmem:[%s1197 + $0x50] sm:$0xff]
      %v1204 = vld [vmem:[%s1197 + $0x60] sm:$0xff]
      %v1205 = vld [vmem:[%s1197 + $0x70] sm:$0xff]
      %v1206 = vpack.c.bf16 %v1199, %v1198
      %v1207 = vpack.c.bf16 %v1201, %v1200
      %v1208 = vpack.c.bf16 %v1203, %v1202
      %v1209 = vpack.c.bf16 %v1205, %v1204
      %s1210 = scalar_lea.vmem %s3, 384
      %v1211 = vld [vmem:[%s1210] sm:$0xf]
      %v1212 = vld [vmem:[%s1210 + $0x4] sm:$0xf]
      %v1213 = vld [vmem:[%s1210 + $0x8] sm:$0xf]
      %v1214 = vld [vmem:[%s1210 + $0xc] sm:$0xf]
      %v1215 = vld [vmem:[%s1210 + $0x10] sm:$0xf]
      %v1216 = vld [vmem:[%s1210 + $0x14] sm:$0xf]
      %v1217 = vld [vmem:[%s1210 + $0x18] sm:$0xf]
      %v1218 = vld [vmem:[%s1210 + $0x1c] sm:$0xf]
      %v1219 = vld [vmem:[%s1210 + $0x20] sm:$0xf]
      %v1220 = vld [vmem:[%s1210 + $0x24] sm:$0xf]
      %v1221 = vld [vmem:[%s1210 + $0x28] sm:$0xf]
      %v1222 = vld [vmem:[%s1210 + $0x2c] sm:$0xf]
      %v1223 = vld [vmem:[%s1210 + $0x30] sm:$0xf]
      %v1224 = vld [vmem:[%s1210 + $0x34] sm:$0xf]
      %v1225 = vld [vmem:[%s1210 + $0x38] sm:$0xf]
      %v1226 = vld [vmem:[%s1210 + $0x3c] sm:$0xf]
      %v1243 = vunpack.c.l.b16 %v1211
      %v1244 = vunpack.c.l.b16 %v1212
      %v1245 = vunpack.c.l.b16 %v1213
      %v1246 = vunpack.c.l.b16 %v1214
      %v1247 = vunpack.c.l.b16 %v1215
      %v1248 = vunpack.c.l.b16 %v1216
      %v1249 = vunpack.c.l.b16 %v1217
      %v1250 = vunpack.c.l.b16 %v1218
      %v1251 = vunpack.c.l.b16 %v1219
      %v1252 = vunpack.c.l.b16 %v1220
      %v1253 = vunpack.c.l.b16 %v1221
      %v1254 = vunpack.c.l.b16 %v1222
      %v1255 = vunpack.c.l.b16 %v1223
      %v1256 = vunpack.c.l.b16 %v1224
      %v1257 = vunpack.c.l.b16 %v1225
      %v1258 = vunpack.c.l.b16 %v1226
      %v1259 = vpack.c.b16 %v1244, %v1243
      %v1260 = vpack.c.b16 %v1246, %v1245
      %v1261 = vpack.c.b16 %v1248, %v1247
      %v1262 = vpack.c.b16 %v1250, %v1249
      %v1263 = vpack.c.b16 %v1252, %v1251
      %v1264 = vpack.c.b16 %v1254, %v1253
      %v1265 = vpack.c.b16 %v1256, %v1255
      %v1266 = vpack.c.b16 %v1258, %v1257
      %1275 = vmatprep.subr.bf16.mxu0 0
      %1276 = vmatpush1.bf16.msra.mxu0 %v1259
      %1277 = vmatprep.subr.bf16.mxu0 0
      %1278 = vmatpush1.bf16.msra.mxu0 %v1260
      %1279 = vmatprep.subr.bf16.mxu0 0
      %1280 = vmatpush1.bf16.msra.mxu0 %v1261
      %1281 = vmatprep.subr.bf16.mxu0 0
      %1282 = vmatpush1.bf16.msra.mxu0 %v1262
      %1283 = vmatprep.subr.bf16.mxu0 0
      %1284 = vmatpush1.bf16.msra.mxu0 %v1263
      %1285 = vmatprep.subr.bf16.mxu0 0
      %1286 = vmatpush1.bf16.msra.mxu0 %v1264
      %1287 = vmatprep.subr.bf16.mxu0 0
      %1288 = vmatpush1.bf16.msra.mxu0 %v1265
      %1289 = vmatprep.subr.bf16.mxu0 0
      %1290 = vmatpush1.bf16.msra.mxu0 %v1266
      %1291 = vmatprep.subr.bf16.mxu0 0
      %1292 = vmatpush1.bf16.msra.mxu0 0
      %1293 = vmatprep.subr.bf16.mxu0 0
      %1294 = vmatpush1.bf16.msra.mxu0 0
      %1295 = vmatprep.subr.bf16.mxu0 0
      %1296 = vmatpush1.bf16.msra.mxu0 0
      %1297 = vmatprep.subr.bf16.mxu0 0
      %1298 = vmatpush1.bf16.msra.mxu0 0
      %1299 = vmatprep.subr.bf16.mxu0 0
      %1300 = vmatpush1.bf16.msra.mxu0 0
      %1301 = vmatprep.subr.bf16.mxu0 0
      %1302 = vmatpush1.bf16.msra.mxu0 0
      %1303 = vmatprep.subr.bf16.mxu0 0
      %1304 = vmatpush1.bf16.msra.mxu0 0
      %1305 = vmatprep.subr.bf16.mxu0 0
      %1306 = vmatpush1.bf16.msra.mxu0 0
      %1307 = vmatprep.mubr.bf16.mxu0 0
      %1308 = vmatmul.mubr.bf16.gmra.mrb[0].mxu0 %v1206
      %v1309 = vpop.f32.mrb[0].mxu0
      %v1310 = vadd.f32 0.0, %v1309
      %v1311 = vpop.f32.mrb[0].mxu0
      %v1312 = vpop.f32.mrb[0].mxu0
      %v1313 = vadd.f32 0.0, %v1312
      %v1314 = vpop.f32.mrb[0].mxu0
      %1315 = vmatprep.mubr.bf16.mxu0 0
      %1316 = vmatmul.mubr.bf16.gmra.mrb[0].mxu0 %v1207
      %v1317 = vpop.f32.mrb[0].mxu0
      %v1318 = vadd.f32 0.0, %v1317
      %v1319 = vpop.f32.mrb[0].mxu0
      %v1320 = vpop.f32.mrb[0].mxu0
      %v1321 = vadd.f32 0.0, %v1320
      %v1322 = vpop.f32.mrb[0].mxu0
      %1323 = vmatprep.mubr.bf16.mxu0 0
      %1324 = vmatmul.mubr.bf16.gmra.mrb[0].mxu0 %v1208
      %v1325 = vpop.f32.mrb[0].mxu0
      %v1326 = vadd.f32 0.0, %v1325
      %v1327 = vpop.f32.mrb[0].mxu0
      %v1328 = vpop.f32.mrb[0].mxu0
      %v1329 = vadd.f32 0.0, %v1328
      %v1330 = vpop.f32.mrb[0].mxu0
      %1331 = vmatprep.mubr.bf16.mxu0 0
      %1332 = vmatmul.mubr.bf16.gmra.mrb[0].mxu0 %v1209
      %v1333 = vpop.f32.mrb[0].mxu0
      %v1334 = vadd.f32 0.0, %v1333
      %v1335 = vpop.f32.mrb[0].mxu0
      %v1336 = vpop.f32.mrb[0].mxu0
      %v1337 = vadd.f32 0.0, %v1336
      %v1338 = vpop.f32.mrb[0].mxu0
      %1339 = vdwg.mxu0
      %v1340 = vadd.f32 %v1189, %v1310
      %v1341 = vadd.f32 %v1190, %v1313
      %v1342 = vadd.f32 %v1191, %v1318
      %v1343 = vadd.f32 %v1192, %v1321
      %v1344 = vadd.f32 %v1193, %v1326
      %v1345 = vadd.f32 %v1194, %v1329
      %v1346 = vadd.f32 %v1195, %v1334
      %v1347 = vadd.f32 %v1196, %v1337
      %v1348 = vld [vmem:[%s1197 + $0x1] sm:$0xff]
      %v1349 = vld [vmem:[%s1197 + $0x11] sm:$0xff]
      %v1350 = vld [vmem:[%s1197 + $0x21] sm:$0xff]
      %v1351 = vld [vmem:[%s1197 + $0x31] sm:$0xff]
      %v1352 = vld [vmem:[%s1197 + $0x41] sm:$0xff]
      %v1353 = vld [vmem:[%s1197 + $0x51] sm:$0xff]
      %v1354 = vld [vmem:[%s1197 + $0x61] sm:$0xff]
      %v1355 = vld [vmem:[%s1197 + $0x71] sm:$0xff]
      %v1356 = vpack.c.bf16 %v1349, %v1348
      %v1357 = vpack.c.bf16 %v1351, %v1350
      %v1358 = vpack.c.bf16 %v1353, %v1352
      %v1359 = vpack.c.bf16 %v1355, %v1354
      %s1360 = scalar_lea.vmem %s3, 448
      %v1361 = vld [vmem:[%s1360] sm:$0xf]
      %v1362 = vld [vmem:[%s1360 + $0x4] sm:$0xf]
      %v1363 = vld [vmem:[%s1360 + $0x8] sm:$0xf]
      %v1364 = vld [vmem:[%s1360 + $0xc] sm:$0xf]
      %v1365 = vld [vmem:[%s1360 + $0x10] sm:$0xf]
      %v1366 = vld [vmem:[%s1360 + $0x14] sm:$0xf]
      %v1367 = vld [vmem:[%s1360 + $0x18] sm:$0xf]
      %v1368 = vld [vmem:[%s1360 + $0x1c] sm:$0xf]
      %v1369 = vld [vmem:[%s1360 + $0x20] sm:$0xf]
      %v1370 = vld [vmem:[%s1360 + $0x24] sm:$0xf]
      %v1371 = vld [vmem:[%s1360 + $0x28] sm:$0xf]
      %v1372 = vld [vmem:[%s1360 + $0x2c] sm:$0xf]
      %v1373 = vld [vmem:[%s1360 + $0x30] sm:$0xf]
      %v1374 = vld [vmem:[%s1360 + $0x34] sm:$0xf]
      %v1375 = vld [vmem:[%s1360 + $0x38] sm:$0xf]
      %v1376 = vld [vmem:[%s1360 + $0x3c] sm:$0xf]
      %v1393 = vunpack.c.l.b16 %v1361
      %v1394 = vunpack.c.l.b16 %v1362
      %v1395 = vunpack.c.l.b16 %v1363
      %v1396 = vunpack.c.l.b16 %v1364
      %v1397 = vunpack.c.l.b16 %v1365
      %v1398 = vunpack.c.l.b16 %v1366
      %v1399 = vunpack.c.l.b16 %v1367
      %v1400 = vunpack.c.l.b16 %v1368
      %v1401 = vunpack.c.l.b16 %v1369
      %v1402 = vunpack.c.l.b16 %v1370
      %v1403 = vunpack.c.l.b16 %v1371
      %v1404 = vunpack.c.l.b16 %v1372
      %v1405 = vunpack.c.l.b16 %v1373
      %v1406 = vunpack.c.l.b16 %v1374
      %v1407 = vunpack.c.l.b16 %v1375
      %v1408 = vunpack.c.l.b16 %v1376
      %v1409 = vpack.c.b16 %v1394, %v1393
      %v1410 = vpack.c.b16 %v1396, %v1395
      %v1411 = vpack.c.b16 %v1398, %v1397
      %v1412 = vpack.c.b16 %v1400, %v1399
      %v1413 = vpack.c.b16 %v1402, %v1401
      %v1414 = vpack.c.b16 %v1404, %v1403
      %v1415 = vpack.c.b16 %v1406, %v1405
      %v1416 = vpack.c.b16 %v1408, %v1407
      %1425 = vmatprep.subr.bf16.mxu0 0
      %1426 = vmatpush1.bf16.msra.mxu0 %v1409
      %1427 = vmatprep.subr.bf16.mxu0 0
      %1428 = vmatpush1.bf16.msra.mxu0 %v1410
      %1429 = vmatprep.subr.bf16.mxu0 0
      %1430 = vmatpush1.bf16.msra.mxu0 %v1411
      %1431 = vmatprep.subr.bf16.mxu0 0
      %1432 = vmatpush1.bf16.msra.mxu0 %v1412
      %1433 = vmatprep.subr.bf16.mxu0 0
      %1434 = vmatpush1.bf16.msra.mxu0 %v1413
      %1435 = vmatprep.subr.bf16.mxu0 0
      %1436 = vmatpush1.bf16.msra.mxu0 %v1414
      %1437 = vmatprep.subr.bf16.mxu0 0
      %1438 = vmatpush1.bf16.msra.mxu0 %v1415
      %1439 = vmatprep.subr.bf16.mxu0 0
      %1440 = vmatpush1.bf16.msra.mxu0 %v1416
      %1441 = vmatprep.subr.bf16.mxu0 0
      %1442 = vmatpush1.bf16.msra.mxu0 0
      %1443 = vmatprep.subr.bf16.mxu0 0
      %1444 = vmatpush1.bf16.msra.mxu0 0
      %1445 = vmatprep.subr.bf16.mxu0 0
      %1446 = vmatpush1.bf16.msra.mxu0 0
      %1447 = vmatprep.subr.bf16.mxu0 0
      %1448 = vmatpush1.bf16.msra.mxu0 0
      %1449 = vmatprep.subr.bf16.mxu0 0
      %1450 = vmatpush1.bf16.msra.mxu0 0
      %1451 = vmatprep.subr.bf16.mxu0 0
      %1452 = vmatpush1.bf16.msra.mxu0 0
      %1453 = vmatprep.subr.bf16.mxu0 0
      %1454 = vmatpush1.bf16.msra.mxu0 0
      %1455 = vmatprep.subr.bf16.mxu0 0
      %1456 = vmatpush1.bf16.msra.mxu0 0
      %1457 = vmatprep.mubr.bf16.mxu0 0
      %1458 = vmatmul.mubr.bf16.gmra.mrb[0].mxu0 %v1356
      %v1459 = vpop.f32.mrb[0].mxu0
      %v1460 = vadd.f32 0.0, %v1459
      %v1461 = vpop.f32.mrb[0].mxu0
      %v1462 = vpop.f32.mrb[0].mxu0
      %v1463 = vadd.f32 0.0, %v1462
      %v1464 = vpop.f32.mrb[0].mxu0
      %1465 = vmatprep.mubr.bf16.mxu0 0
      %1466 = vmatmul.mubr.bf16.gmra.mrb[0].mxu0 %v1357
      %v1467 = vpop.f32.mrb[0].mxu0
      %v1468 = vadd.f32 0.0, %v1467
      %v1469 = vpop.f32.mrb[0].mxu0
      %v1470 = vpop.f32.mrb[0].mxu0
      %v1471 = vadd.f32 0.0, %v1470
      %v1472 = vpop.f32.mrb[0].mxu0
      %1473 = vmatprep.mubr.bf16.mxu0 0
      %1474 = vmatmul.mubr.bf16.gmra.mrb[0].mxu0 %v1358
      %v1475 = vpop.f32.mrb[0].mxu0
      %v1476 = vadd.f32 0.0, %v1475
      %v1477 = vpop.f32.mrb[0].mxu0
      %v1478 = vpop.f32.mrb[0].mxu0
      %v1479 = vadd.f32 0.0, %v1478
      %v1480 = vpop.f32.mrb[0].mxu0
      %1481 = vmatprep.mubr.bf16.mxu0 0
      %1482 = vmatmul.mubr.bf16.gmra.mrb[0].mxu0 %v1359
      %v1483 = vpop.f32.mrb[0].mxu0
      %v1484 = vadd.f32 0.0, %v1483
      %v1485 = vpop.f32.mrb[0].mxu0
      %v1486 = vpop.f32.mrb[0].mxu0
      %v1487 = vadd.f32 0.0, %v1486
      %v1488 = vpop.f32.mrb[0].mxu0
      %1489 = vdwg.mxu0
      %v1490 = vadd.f32 %v1340, %v1460
      %v1491 = vadd.f32 %v1341, %v1463
      %v1492 = vadd.f32 %v1342, %v1468
      %v1493 = vadd.f32 %v1343, %v1471
      %v1494 = vadd.f32 %v1344, %v1476
      %v1495 = vadd.f32 %v1345, %v1479
      %v1496 = vadd.f32 %v1346, %v1484
      %v1497 = vadd.f32 %v1347, %v1487
      %v1498 = vld [vmem:[%s1197 + $0x2] sm:$0xff]
      %v1499 = vld [vmem:[%s1197 + $0x12] sm:$0xff]
      %v1500 = vld [vmem:[%s1197 + $0x22] sm:$0xff]
      %v1501 = vld [vmem:[%s1197 + $0x32] sm:$0xff]
      %v1502 = vld [vmem:[%s1197 + $0x42] sm:$0xff]
      %v1503 = vld [vmem:[%s1197 + $0x52] sm:$0xff]
      %v1504 = vld [vmem:[%s1197 + $0x62] sm:$0xff]
      %v1505 = vld [vmem:[%s1197 + $0x72] sm:$0xff]
      %v1506 = vpack.c.bf16 %v1499, %v1498
      %v1507 = vpack.c.bf16 %v1501, %v1500
      %v1508 = vpack.c.bf16 %v1503, %v1502
      %v1509 = vpack.c.bf16 %v1505, %v1504
      %s1510 = scalar_lea.vmem %s3, 512
      %v1511 = vld [vmem:[%s1510] sm:$0xf]
      %v1512 = vld [vmem:[%s1510 + $0x4] sm:$0xf]
      %v1513 = vld [vmem:[%s1510 + $0x8] sm:$0xf]
      %v1514 = vld [vmem:[%s1510 + $0xc] sm:$0xf]
      %v1515 = vld [vmem:[%s1510 + $0x10] sm:$0xf]
      %v1516 = vld [vmem:[%s1510 + $0x14] sm:$0xf]
      %v1517 = vld [vmem:[%s1510 + $0x18] sm:$0xf]
      %v1518 = vld [vmem:[%s1510 + $0x1c] sm:$0xf]
      %v1519 = vld [vmem:[%s1510 + $0x20] sm:$0xf]
      %v1520 = vld [vmem:[%s1510 + $0x24] sm:$0xf]
      %v1521 = vld [vmem:[%s1510 + $0x28] sm:$0xf]
      %v1522 = vld [vmem:[%s1510 + $0x2c] sm:$0xf]
      %v1523 = vld [vmem:[%s1510 + $0x30] sm:$0xf]
      %v1524 = vld [vmem:[%s1510 + $0x34] sm:$0xf]
      %v1525 = vld [vmem:[%s1510 + $0x38] sm:$0xf]
      %v1526 = vld [vmem:[%s1510 + $0x3c] sm:$0xf]
      %v1543 = vunpack.c.l.b16 %v1511
      %v1544 = vunpack.c.l.b16 %v1512
      %v1545 = vunpack.c.l.b16 %v1513
      %v1546 = vunpack.c.l.b16 %v1514
      %v1547 = vunpack.c.l.b16 %v1515
      %v1548 = vunpack.c.l.b16 %v1516
      %v1549 = vunpack.c.l.b16 %v1517
      %v1550 = vunpack.c.l.b16 %v1518
      %v1551 = vunpack.c.l.b16 %v1519
      %v1552 = vunpack.c.l.b16 %v1520
      %v1553 = vunpack.c.l.b16 %v1521
      %v1554 = vunpack.c.l.b16 %v1522
      %v1555 = vunpack.c.l.b16 %v1523
      %v1556 = vunpack.c.l.b16 %v1524
      %v1557 = vunpack.c.l.b16 %v1525
      %v1558 = vunpack.c.l.b16 %v1526
      %v1559 = vpack.c.b16 %v1544, %v1543
      %v1560 = vpack.c.b16 %v1546, %v1545
      %v1561 = vpack.c.b16 %v1548, %v1547
      %v1562 = vpack.c.b16 %v1550, %v1549
      %v1563 = vpack.c.b16 %v1552, %v1551
      %v1564 = vpack.c.b16 %v1554, %v1553
      %v1565 = vpack.c.b16 %v1556, %v1555
      %v1566 = vpack.c.b16 %v1558, %v1557
      %1575 = vmatprep.subr.bf16.mxu0 0
      %1576 = vmatpush1.bf16.msra.mxu0 %v1559
      %1577 = vmatprep.subr.bf16.mxu0 0
      %1578 = vmatpush1.bf16.msra.mxu0 %v1560
      %1579 = vmatprep.subr.bf16.mxu0 0
      %1580 = vmatpush1.bf16.msra.mxu0 %v1561
      %1581 = vmatprep.subr.bf16.mxu0 0
      %1582 = vmatpush1.bf16.msra.mxu0 %v1562
      %1583 = vmatprep.subr.bf16.mxu0 0
      %1584 = vmatpush1.bf16.msra.mxu0 %v1563
      %1585 = vmatprep.subr.bf16.mxu0 0
      %1586 = vmatpush1.bf16.msra.mxu0 %v1564
      %1587 = vmatprep.subr.bf16.mxu0 0
      %1588 = vmatpush1.bf16.msra.mxu0 %v1565
      %1589 = vmatprep.subr.bf16.mxu0 0
      %1590 = vmatpush1.bf16.msra.mxu0 %v1566
      %1591 = vmatprep.subr.bf16.mxu0 0
      %1592 = vmatpush1.bf16.msra.mxu0 0
      %1593 = vmatprep.subr.bf16.mxu0 0
      %1594 = vmatpush1.bf16.msra.mxu0 0
      %1595 = vmatprep.subr.bf16.mxu0 0
      %1596 = vmatpush1.bf16.msra.mxu0 0
      %1597 = vmatprep.subr.bf16.mxu0 0
      %1598 = vmatpush1.bf16.msra.mxu0 0
      %1599 = vmatprep.subr.bf16.mxu0 0
      %1600 = vmatpush1.bf16.msra.mxu0 0
      %1601 = vmatprep.subr.bf16.mxu0 0
      %1602 = vmatpush1.bf16.msra.mxu0 0
      %1603 = vmatprep.subr.bf16.mxu0 0
      %1604 = vmatpush1.bf16.msra.mxu0 0
      %1605 = vmatprep.subr.bf16.mxu0 0
      %1606 = vmatpush1.bf16.msra.mxu0 0
      %1607 = vmatprep.mubr.bf16.mxu0 0
      %1608 = vmatmul.mubr.bf16.gmra.mrb[0].mxu0 %v1506
      %v1609 = vpop.f32.mrb[0].mxu0
      %v1610 = vadd.f32 0.0, %v1609
      %v1611 = vpop.f32.mrb[0].mxu0
      %v1612 = vpop.f32.mrb[0].mxu0
      %v1613 = vadd.f32 0.0, %v1612
      %v1614 = vpop.f32.mrb[0].mxu0
      %1615 = vmatprep.mubr.bf16.mxu0 0
      %1616 = vmatmul.mubr.bf16.gmra.mrb[0].mxu0 %v1507
      %v1617 = vpop.f32.mrb[0].mxu0
      %v1618 = vadd.f32 0.0, %v1617
      %v1619 = vpop.f32.mrb[0].mxu0
      %v1620 = vpop.f32.mrb[0].mxu0
      %v1621 = vadd.f32 0.0, %v1620
      %v1622 = vpop.f32.mrb[0].mxu0
      %1623 = vmatprep.mubr.bf16.mxu0 0
      %1624 = vmatmul.mubr.bf16.gmra.mrb[0].mxu0 %v1508
      %v1625 = vpop.f32.mrb[0].mxu0
      %v1626 = vadd.f32 0.0, %v1625
      %v1627 = vpop.f32.mrb[0].mxu0
      %v1628 = vpop.f32.mrb[0].mxu0
      %v1629 = vadd.f32 0.0, %v1628
      %v1630 = vpop.f32.mrb[0].mxu0
      %1631 = vmatprep.mubr.bf16.mxu0 0
      %1632 = vmatmul.mubr.bf16.gmra.mrb[0].mxu0 %v1509
      %v1633 = vpop.f32.mrb[0].mxu0
      %v1634 = vadd.f32 0.0, %v1633
      %v1635 = vpop.f32.mrb[0].mxu0
      %v1636 = vpop.f32.mrb[0].mxu0
      %v1637 = vadd.f32 0.0, %v1636
      %v1638 = vpop.f32.mrb[0].mxu0
      %1639 = vdwg.mxu0
      %v1640 = vadd.f32 %v1490, %v1610
      %v1641 = vadd.f32 %v1491, %v1613
      %v1642 = vadd.f32 %v1492, %v1618
      %v1643 = vadd.f32 %v1493, %v1621
      %v1644 = vadd.f32 %v1494, %v1626
      %v1645 = vadd.f32 %v1495, %v1629
      %v1646 = vadd.f32 %v1496, %v1634
      %v1647 = vadd.f32 %v1497, %v1637
      %v1648 = vld [vmem:[%s4] sm:$0x1]
      %v1650 = vlaneseq
      %v1651 = vshrl.u32 %v1650, 7
      %v1652 = vsub.s32 0, %v1651
      %v1653 = vrot.slane %v1648, %v1652
      %v1655 = vadd.f32 %v1640, %v1653
      %v1656 = vadd.f32 %v1641, %v1653
      %v1657 = vadd.f32 %v1642, %v1653
      %v1658 = vadd.f32 %v1643, %v1653
      %v1659 = vadd.f32 %v1644, %v1653
      %v1660 = vadd.f32 %v1645, %v1653
      %v1661 = vadd.f32 %v1646, %v1653
      %v1662 = vadd.f32 %v1647, %v1653
      %1663 = vst [vmem:[%s224] sm:$0xff] %v1655
      %1664 = vst [vmem:[%s224 + $0x8] sm:$0xff] %v1656
      %1665 = vst [vmem:[%s224 + $0x10] sm:$0xff] %v1657
      %1666 = vst [vmem:[%s224 + $0x18] sm:$0xff] %v1658
      %1667 = vst [vmem:[%s224 + $0x20] sm:$0xff] %v1659
      %1668 = vst [vmem:[%s224 + $0x28] sm:$0xff] %v1660
      %1669 = vst [vmem:[%s224 + $0x30] sm:$0xff] %v1661
      %1670 = vst [vmem:[%s224 + $0x38] sm:$0xff] %v1662
      %p1671 = scmp.lt.s32.totalorder %s16, 1
      %s1672 = scalar_select %p1671, %s16, 1
      %s1673 = smul.addr %s1672, 8
      %s1674 = smul.addr %s1673, 8
      %s1675 = scalar_lea.vmem %s5, %s1674
      // Predicated region
      $region41: #{preact_reduction_block.3} parent=39 // pred_check
        %p1676 = pneg %p144
      $region42: #{preact_reduction_block.3} parent=39 // pred_check_branch
        %1678 = sbr.rel (%p1676) target = $region44
      $region43: #{preact_reduction_block.3} parent=39 // pred_region
        _
      $region44: #{preact_reduction_block.3} parent=39 // pred_fallthru
        _
    $region40: #{preact_reduction_block.3} parent=5 // pred_fallthru
      _
    %p1679 = scmp.le.s32.totalorder 2, %s11
    // Predicated region
    $region45: #{preact_reduction_block.3} parent=5 // pred_check
      %p1680 = pneg %p1679
    $region46: #{preact_reduction_block.3} parent=5 // pred_check_branch
      %1682 = sbr.rel (%p1680) target = $region48
    $region47: #{preact_reduction_block.3} parent=5 // pred_region
      %s1683 = ssub.s32 %s11, 2
      // Predicated region
      $region49: #{preact_reduction_block.3} parent=47 // pred_check
        %p1684 = pneg %p150
      $region50: #{preact_reduction_block.3} parent=47 // pred_check_branch
        %1686 = sbr.rel (%p1684) target = $region52
      $region51: #{preact_reduction_block.3} parent=47 // pred_region
        %p1687 = scmp.lt.s32.totalorder %s17, 1
        %s1688 = scalar_select %p1687, %s17, 1
        %s1689 = smul.addr %s1688, 8
        %s1690 = smul.addr %s1689, 8
        %s1691 = scalar_lea.vmem %s5, %s1690
      $region52: #{preact_reduction_block.3} parent=47 // pred_fallthru
        _
    $region48: #{preact_reduction_block.3} parent=5 // pred_fallthru
      _
  $region6: #{preact_reduction_block.3} parent=0 // loop_footer
    %s15 = sadd.s32 1, %s11
  $region7: #{preact_reduction_block.3} parent=0 // loop_footer_branch
    %10 = sbr.rel target = $region3
  $region8: #{preact_reduction_block.3} parent=0 // loop_exit
    _

// kernel: preact_reduction_block.2
$region0: #{preact_reduction_block.2}
  #allocation0 [shape = 'u32[]', space=smem, size = 0x4, offset = 0x4, fixed_abs, tag = 'smem constant byte address 0x4 - core index']
  #allocation1 [shape = 'u32[144,128]{1,0:T(1,128)}', space=vmem, size = 0x12000, scoped, tag = 'internal scratch']
  #allocation2 [shape = 'f32[4,9,9,128]{3,2,1,0:T(8,128)}', space=vmem, size = 0x48000, scoped, tag = 'scratch operand']
  %s0 = inlined_call_operand.vmem [shape: f32[8,8,8,128], index: 0, kind: input, shape index: {}]
  %s1 = inlined_call_operand.vmem [shape: f32[1,128], index: 1, kind: input, shape index: {}]
  %s2 = inlined_call_operand.vmem [shape: f32[1,128], index: 2, kind: input, shape index: {}]
  %s3 = inlined_call_operand.vmem [shape: bf16[9,128,128], index: 3, kind: input, shape index: {}]
  %s4 = inlined_call_operand.vmem [shape: f32[1,128], index: 4, kind: input, shape index: {}]
  %s5 = inlined_call_operand.vmem [shape: bf16[2,64,128], index: 5, kind: output, shape index: {0}]
  %s6 = inlined_call_operand.vmem [shape: f32[2,1,128], index: 6, kind: output, shape index: {1}]
  %s7 = inlined_call_operand.vmem [shape: f32[2,1,128], index: 7, kind: output, shape index: {2}]
  %8 = xla_tuple %s5, %s6, %s7
  %s9 = sld [smem:[#allocation0]]
  $region69: #{preact_reduction_block.2} parent=0
    _
  %s11 = ssub.s32 1, %s9
  %s12 = scalar_select 0, %s11, %s9
  loop: start=0, step=1, limit=4
  $region2: #{preact_reduction_block.2} parent=0 // loop_pre_header
    _
  $region3: #{preact_reduction_block.2} parent=0 // loop_header
    %s14 = sphi 0, %s18
    %p15 = scmp.ge.s32.totalorder %s14, 4
    %s24 = sphi 0, %s26
    %s27 = sphi 0, %s24
    %s28 = sphi 0, %s27
    %s44 = sphi 0, %s28
    %s48 = sphi 0, %s48
    %s50 = sphi 0, %s48
    %s51 = sphi 0, %s50
    %s65 = sphi 0, %s51
    %s69 = sphi 0, %s69
    %s71 = sphi 0, %s69
    %s72 = sphi 0, %s71
    %s86 = sphi 0, %s72
    %s90 = sphi 0, %s90
    %s92 = sphi 0, %s90
    %s93 = sphi 0, %s92
    %s107 = sphi 0, %s93
    %s111 = sphi 0, %s111
    %s113 = sphi 0, %s111
    %s114 = sphi 0, %s113
    %s128 = sphi 0, %s114
    %s134 = sphi 0, %s136
    %s137 = sphi 0, %s134
    %s138 = sphi 0, %s137
    %s154 = sphi 0, %s138
    %s160 = sphi 0, %s162
    %s163 = sphi 0, %s160
    %s164 = sphi 0, %s163
    %s180 = sphi 0, %s164
    %s186 = sphi 0, %s188
    %s189 = sphi 0, %s186
    %s190 = sphi 0, %s189
    %s206 = sphi 0, %s190
  $region4: #{preact_reduction_block.2} parent=0 // loop_header_branch
    %17 = sbr.rel (%p15) target = $region8
  $region5: #{preact_reduction_block.2} parent=0 // loop_body
    %s19 = ssub.s32 %s14, 1
    %s20 = ssub.s32 %s14, 2
    %s21 = sadd.s32 %s14, 1
    %s22 = ssub.s32 %s14, %s21
    %p23 = scmp.eq.s32.totalorder %s22, 0
    %s25 = sadd.s32 %s24, 1
    %s26 = scalar_select %p23, %s24, %s25
    %p29 = pneg %p23
    %p30 = scmp.eq.s32.totalorder %s14, 1
    %p31 = por %p29, %p30
    %p32 = scmp.ne.s32.totalorder %s24, %s27
    %p33 = scmp.eq.s32.totalorder %s14, 0
    %p34 = por %p32, %p33
    %p35 = scmp.ne.s32.totalorder %s24, %s27
    %p36 = scmp.eq.s32.totalorder %s19, 1
    %p37 = por %p35, %p36
    %p38 = scmp.ne.s32.totalorder %s27, %s28
    %p39 = scmp.eq.s32.totalorder %s19, 0
    %p40 = por %p38, %p39
    %p41 = scmp.ne.s32.totalorder %s27, %s28
    %p42 = scmp.eq.s32.totalorder %s20, 1
    %p43 = por %p41, %p42
    %p45 = scmp.ne.s32.totalorder %s28, %s44
    %p46 = scmp.eq.s32.totalorder %s20, 0
    %p47 = por %p45, %p46
    %s49 = sadd.s32 %s48, 1
    %p52 = scmp.eq.s32.totalorder %s14, 1
    %p53 = scmp.ne.s32.totalorder %s48, %s50
    %p54 = scmp.eq.s32.totalorder %s14, 0
    %p55 = por %p53, %p54
    %p56 = scmp.ne.s32.totalorder %s48, %s50
    %p57 = scmp.eq.s32.totalorder %s19, 1
    %p58 = por %p56, %p57
    %p59 = scmp.ne.s32.totalorder %s50, %s51
    %p60 = scmp.eq.s32.totalorder %s19, 0
    %p61 = por %p59, %p60
    %p62 = scmp.ne.s32.totalorder %s50, %s51
    %p63 = scmp.eq.s32.totalorder %s20, 1
    %p64 = por %p62, %p63
    %p66 = scmp.ne.s32.totalorder %s51, %s65
    %p67 = scmp.eq.s32.totalorder %s20, 0
    %p68 = por %p66, %p67
    %s70 = sadd.s32 %s69, 1
    %p73 = scmp.eq.s32.totalorder %s14, 1
    %p74 = scmp.ne.s32.totalorder %s69, %s71
    %p75 = scmp.eq.s32.totalorder %s14, 0
    %p76 = por %p74, %p75
    %p77 = scmp.ne.s32.totalorder %s69, %s71
    %p78 = scmp.eq.s32.totalorder %s19, 1
    %p79 = por %p77, %p78
    %p80 = scmp.ne.s32.totalorder %s71, %s72
    %p81 = scmp.eq.s32.totalorder %s19, 0
    %p82 = por %p80, %p81
    %p83 = scmp.ne.s32.totalorder %s71, %s72
    %p84 = scmp.eq.s32.totalorder %s20, 1
    %p85 = por %p83, %p84
    %p87 = scmp.ne.s32.totalorder %s72, %s86
    %p88 = scmp.eq.s32.totalorder %s20, 0
    %p89 = por %p87, %p88
    %s91 = sadd.s32 %s90, 1
    %p94 = scmp.eq.s32.totalorder %s14, 1
    %p95 = scmp.ne.s32.totalorder %s90, %s92
    %p96 = scmp.eq.s32.totalorder %s14, 0
    %p97 = por %p95, %p96
    %p98 = scmp.ne.s32.totalorder %s90, %s92
    %p99 = scmp.eq.s32.totalorder %s19, 1
    %p100 = por %p98, %p99
    %p101 = scmp.ne.s32.totalorder %s92, %s93
    %p102 = scmp.eq.s32.totalorder %s19, 0
    %p103 = por %p101, %p102
    %p104 = scmp.ne.s32.totalorder %s92, %s93
    %p105 = scmp.eq.s32.totalorder %s20, 1
    %p106 = por %p104, %p105
    %p108 = scmp.ne.s32.totalorder %s93, %s107
    %p109 = scmp.eq.s32.totalorder %s20, 0
    %p110 = por %p108, %p109
    %s112 = sadd.s32 %s111, 1
    %p115 = scmp.eq.s32.totalorder %s14, 1
    %p116 = scmp.ne.s32.totalorder %s111, %s113
    %p117 = scmp.eq.s32.totalorder %s14, 0
    %p118 = por %p116, %p117
    %p119 = scmp.ne.s32.totalorder %s111, %s113
    %p120 = scmp.eq.s32.totalorder %s19, 1
    %p121 = por %p119, %p120
    %p122 = scmp.ne.s32.totalorder %s113, %s114
    %p123 = scmp.eq.s32.totalorder %s19, 0
    %p124 = por %p122, %p123
    %p125 = scmp.ne.s32.totalorder %s113, %s114
    %p126 = scmp.eq.s32.totalorder %s20, 1
    %p127 = por %p125, %p126
    %p129 = scmp.ne.s32.totalorder %s114, %s128
    %p130 = scmp.eq.s32.totalorder %s20, 0
    %p131 = por %p129, %p130
    %s132 = ssub.s32 %s14, %s21
    %p133 = scmp.eq.s32.totalorder %s132, 0
    %s135 = sadd.s32 %s134, 1
    %s136 = scalar_select %p133, %s134, %s135
    %p139 = pneg %p133
    %p140 = scmp.eq.s32.totalorder %s14, 1
    %p141 = por %p139, %p140
    %p142 = scmp.ne.s32.totalorder %s134, %s137
    %p143 = scmp.eq.s32.totalorder %s14, 0
    %p144 = por %p142, %p143
    %p145 = scmp.ne.s32.totalorder %s134, %s137
    %p146 = scmp.eq.s32.totalorder %s19, 1
    %p147 = por %p145, %p146
    %p148 = scmp.ne.s32.totalorder %s137, %s138
    %p149 = scmp.eq.s32.totalorder %s19, 0
    %p150 = por %p148, %p149
    %p151 = scmp.ne.s32.totalorder %s137, %s138
    %p152 = scmp.eq.s32.totalorder %s20, 1
    %p153 = por %p151, %p152
    %p155 = scmp.ne.s32.totalorder %s138, %s154
    %p156 = scmp.eq.s32.totalorder %s20, 0
    %p157 = por %p155, %p156
    %s158 = ssub.s32 %s14, %s21
    %p159 = scmp.eq.s32.totalorder %s158, 0
    %s161 = sadd.s32 %s160, 1
    %s162 = scalar_select %p159, %s160, %s161
    %p165 = pneg %p159
    %p166 = scmp.eq.s32.totalorder %s14, 1
    %p167 = por %p165, %p166
    %p168 = scmp.ne.s32.totalorder %s160, %s163
    %p169 = scmp.eq.s32.totalorder %s14, 0
    %p170 = por %p168, %p169
    %p171 = scmp.ne.s32.totalorder %s160, %s163
    %p172 = scmp.eq.s32.totalorder %s19, 1
    %p173 = por %p171, %p172
    %p174 = scmp.ne.s32.totalorder %s163, %s164
    %p175 = scmp.eq.s32.totalorder %s19, 0
    %p176 = por %p174, %p175
    %p177 = scmp.ne.s32.totalorder %s163, %s164
    %p178 = scmp.eq.s32.totalorder %s20, 1
    %p179 = por %p177, %p178
    %p181 = scmp.ne.s32.totalorder %s164, %s180
    %p182 = scmp.eq.s32.totalorder %s20, 0
    %p183 = por %p181, %p182
    %s184 = ssub.s32 %s14, %s21
    %p185 = scmp.eq.s32.totalorder %s184, 0
    %s187 = sadd.s32 %s186, 1
    %s188 = scalar_select %p185, %s186, %s187
    %p191 = pneg %p185
    %p192 = scmp.eq.s32.totalorder %s14, 1
    %p193 = por %p191, %p192
    %p194 = scmp.ne.s32.totalorder %s186, %s189
    %p195 = scmp.eq.s32.totalorder %s14, 0
    %p196 = por %p194, %p195
    %p197 = scmp.ne.s32.totalorder %s186, %s189
    %p198 = scmp.eq.s32.totalorder %s19, 1
    %p199 = por %p197, %p198
    %p200 = scmp.ne.s32.totalorder %s189, %s190
    %p201 = scmp.eq.s32.totalorder %s19, 0
    %p202 = por %p200, %p201
    %p203 = scmp.ne.s32.totalorder %s189, %s190
    %p204 = scmp.eq.s32.totalorder %s20, 1
    %p205 = por %p203, %p204
    %p207 = scmp.ne.s32.totalorder %s190, %s206
    %p208 = scmp.eq.s32.totalorder %s20, 0
    %p209 = por %p207, %p208
    %p210 = scmp.le.s32.totalorder 1, %s14
    %p211 = scmp.lt.s32.totalorder %s14, 3
    %p212 = pnand %p210, %p211
    %p213 = pneg %p212
    // Predicated region
    $region9: #{preact_reduction_block.2} parent=5 // pred_check
      _
    $region10: #{preact_reduction_block.2} parent=5 // pred_check_branch
      %215 = sbr.rel (%p212) target = $region12
    $region11: #{preact_reduction_block.2} parent=5 // pred_region
      %s216 = ssub.s32 %s14, 1
      // Predicated region
      $region13: #{preact_reduction_block.2} parent=11 // pred_check
        %p217 = pneg %p61
      $region14: #{preact_reduction_block.2} parent=11 // pred_check_branch
        %219 = sbr.rel (%p217) target = $region16
      $region15: #{preact_reduction_block.2} parent=11 // pred_region
        _
      $region16: #{preact_reduction_block.2} parent=11 // pred_fallthru
        _
      // Predicated region
      $region17: #{preact_reduction_block.2} parent=11 // pred_check
        %p220 = pneg %p82
      $region18: #{preact_reduction_block.2} parent=11 // pred_check_branch
        %222 = sbr.rel (%p220) target = $region20
      $region19: #{preact_reduction_block.2} parent=11 // pred_region
        _
      $region20: #{preact_reduction_block.2} parent=11 // pred_fallthru
        _
      // Predicated region
      $region21: #{preact_reduction_block.2} parent=11 // pred_check
        %p223 = pneg %p103
      $region22: #{preact_reduction_block.2} parent=11 // pred_check_branch
        %225 = sbr.rel (%p223) target = $region24
      $region23: #{preact_reduction_block.2} parent=11 // pred_region
        _
      $region24: #{preact_reduction_block.2} parent=11 // pred_fallthru
        _
      // Predicated region
      $region25: #{preact_reduction_block.2} parent=11 // pred_check
        %p226 = pneg %p124
      $region26: #{preact_reduction_block.2} parent=11 // pred_check_branch
        %228 = sbr.rel (%p226) target = $region28
      $region27: #{preact_reduction_block.2} parent=11 // pred_region
        _
      $region28: #{preact_reduction_block.2} parent=11 // pred_fallthru
        _
    $region12: #{preact_reduction_block.2} parent=5 // pred_fallthru
      _
    %p229 = scmp.lt.s32.totalorder %s14, 2
    // Predicated region
    $region29: #{preact_reduction_block.2} parent=5 // pred_check
      %p230 = pneg %p229
    $region30: #{preact_reduction_block.2} parent=5 // pred_check_branch
      %232 = sbr.rel (%p230) target = $region32
    $region31: #{preact_reduction_block.2} parent=5 // pred_region
      // Predicated region
      $region33: #{preact_reduction_block.2} parent=31 // pred_check
        %p233 = pneg %p34
      $region34: #{preact_reduction_block.2} parent=31 // pred_check_branch
        %235 = sbr.rel (%p233) target = $region36
      $region35: #{preact_reduction_block.2} parent=31 // pred_region
        %s236 = smul.u32 4, %s14
        %p237 = scmp.lt.s32.totalorder %s236, 7
        %s238 = scalar_select %p237, %s236, 7
        %s239 = smul.addr %s238, 8
        %s240 = smul.addr %s239, 8
        %s241 = scalar_lea.vmem %s0, %s240
        %s242 = smul.u32 4, %s14
      $region36: #{preact_reduction_block.2} parent=31 // pred_fallthru
        _
    $region32: #{preact_reduction_block.2} parent=5 // pred_fallthru
      _
    %p243 = scmp.le.s32.totalorder 1, %s14
    %p244 = scmp.lt.s32.totalorder %s14, 3
    %p245 = pnand %p243, %p244
    %p246 = pneg %p245
    // Predicated region
    $region37: #{preact_reduction_block.2} parent=5 // pred_check
      _
    $region38: #{preact_reduction_block.2} parent=5 // pred_check_branch
      %248 = sbr.rel (%p245) target = $region40
    $region39: #{preact_reduction_block.2} parent=5 // pred_region
      %s249 = ssub.s32 %s14, 1
      %s250 = smul.u32 4, %s19
      %p251 = scmp.lt.s32.totalorder %s250, 7
      %s252 = scalar_select %p251, %s250, 7
      %s253 = smul.addr %s252, 8
      %s254 = smul.addr %s253, 8
      %s255 = scalar_lea.vmem %s0, %s254
      %p256 = pneg %p40
      %p257 = pneg %p37
      %p258 = pneg %p61
      %p259 = pneg %p58
      %p260 = pneg %p82
      %p261 = pneg %p79
      %p262 = pneg %p103
      %p263 = pneg %p100
      %p264 = pneg %p124
      %p265 = pneg %p121
      %p266 = pneg %p150
      %p267 = pneg %p147
      %p268 = scmp.lt.s32.totalorder %s19, 1
      %s269 = scalar_select %p268, %s19, 1
      %s270 = smul.addr %s269, 8
      %s271 = smul.addr %s270, 4
      %s272 = scalar_lea.vmem %s5, %s271
      %p273 = pneg %p176
      %p274 = pneg %p173
      %p275 = scmp.lt.s32.totalorder %s19, 1
      %s276 = scalar_select %p275, %s19, 1
      %s277 = scalar_lea.vmem %s6, %s276
      %p278 = pneg %p202
      %p279 = pneg %p199
      %p280 = scmp.lt.s32.totalorder %s19, 1
      %s281 = scalar_select %p280, %s19, 1
      %s282 = scalar_lea.vmem %s7, %s281
      %s283 = smul.u32 4, %s19
      %p284 = scmp.lt.s32.totalorder %s283, 7
      %s285 = scalar_select %p284, %s283, 7
      %s286 = smul.addr %s285, 8
      %s287 = smul.addr %s286, 8
      %s288 = scalar_lea.vmem %s0, %s287
      %s289 = smul.u32 4, %s19
      %p290 = scmp.lt.s32.totalorder %s19, 1
      %s291 = scalar_select %p290, %s19, 1
      %s292 = smul.addr %s291, 8
      %s293 = smul.addr %s292, 4
      %s294 = scalar_lea.vmem %s5, %s293
      %p295 = scmp.lt.s32.totalorder %s19, 1
      %s296 = scalar_select %p295, %s19, 1
      %s297 = scalar_lea.vmem %s6, %s296
      %p298 = scmp.lt.s32.totalorder %s19, 1
      %s299 = scalar_select %p298, %s19, 1
      %s300 = scalar_lea.vmem %s7, %s299
      %v302 = vld [vmem:[%s288] sm:$0xff]
      %v303 = vld [vmem:[%s288 + $0x8] sm:$0xff]
      %v304 = vld [vmem:[%s288 + $0x10] sm:$0xff]
      %v305 = vld [vmem:[%s288 + $0x18] sm:$0xff]
      %v306 = vld [vmem:[%s288 + $0x20] sm:$0xff]
      %v307 = vld [vmem:[%s288 + $0x28] sm:$0xff]
      %v308 = vld [vmem:[%s288 + $0x30] sm:$0xff]
      %v309 = vld [vmem:[%s288 + $0x38] sm:$0xff]
      %v310 = vld [vmem:[%s288 + $0x40] sm:$0xff]
      %v311 = vld [vmem:[%s288 + $0x48] sm:$0xff]
      %v312 = vld [vmem:[%s288 + $0x50] sm:$0xff]
      %v313 = vld [vmem:[%s288 + $0x58] sm:$0xff]
      %v314 = vld [vmem:[%s288 + $0x60] sm:$0xff]
      %v315 = vld [vmem:[%s288 + $0x68] sm:$0xff]
      %v316 = vld [vmem:[%s288 + $0x70] sm:$0xff]
      %v317 = vld [vmem:[%s288 + $0x78] sm:$0xff]
      %v318 = vld [vmem:[%s288 + $0x80] sm:$0xff]
      %v319 = vld [vmem:[%s288 + $0x88] sm:$0xff]
      %v320 = vld [vmem:[%s288 + $0x90] sm:$0xff]
      %v321 = vld [vmem:[%s288 + $0x98] sm:$0xff]
      %v322 = vld [vmem:[%s288 + $0xa0] sm:$0xff]
      %v323 = vld [vmem:[%s288 + $0xa8] sm:$0xff]
      %v324 = vld [vmem:[%s288 + $0xb0] sm:$0xff]
      %v325 = vld [vmem:[%s288 + $0xb8] sm:$0xff]
      %v326 = vld [vmem:[%s288 + $0xc0] sm:$0xff]
      %v327 = vld [vmem:[%s288 + $0xc8] sm:$0xff]
      %v328 = vld [vmem:[%s288 + $0xd0] sm:$0xff]
      %v329 = vld [vmem:[%s288 + $0xd8] sm:$0xff]
      %v330 = vld [vmem:[%s288 + $0xe0] sm:$0xff]
      %v331 = vld [vmem:[%s288 + $0xe8] sm:$0xff]
      %v332 = vld [vmem:[%s288 + $0xf0] sm:$0xff]
      %v333 = vld [vmem:[%s288 + $0xf8] sm:$0xff]
      %v334 = vld [vmem:[%s1] sm:$0x1]
      %v336 = vlaneseq
      %v337 = vshrl.u32 %v336, 7
      %v338 = vsub.s32 0, %v337
      %v339 = vrot.slane %v334, %v338
      %v341 = vmul.f32 %v302, %v339
      %v342 = vmul.f32 %v303, %v339
      %v343 = vmul.f32 %v304, %v339
      %v344 = vmul.f32 %v305, %v339
      %v345 = vmul.f32 %v306, %v339
      %v346 = vmul.f32 %v307, %v339
      %v347 = vmul.f32 %v308, %v339
      %v348 = vmul.f32 %v309, %v339
      %v349 = vmul.f32 %v310, %v339
      %v350 = vmul.f32 %v311, %v339
      %v351 = vmul.f32 %v312, %v339
      %v352 = vmul.f32 %v313, %v339
      %v353 = vmul.f32 %v314, %v339
      %v354 = vmul.f32 %v315, %v339
      %v355 = vmul.f32 %v316, %v339
      %v356 = vmul.f32 %v317, %v339
      %v357 = vmul.f32 %v318, %v339
      %v358 = vmul.f32 %v319, %v339
      %v359 = vmul.f32 %v320, %v339
      %v360 = vmul.f32 %v321, %v339
      %v361 = vmul.f32 %v322, %v339
      %v362 = vmul.f32 %v323, %v339
      %v363 = vmul.f32 %v324, %v339
      %v364 = vmul.f32 %v325, %v339
      %v365 = vmul.f32 %v326, %v339
      %v366 = vmul.f32 %v327, %v339
      %v367 = vmul.f32 %v328, %v339
      %v368 = vmul.f32 %v329, %v339
      %v369 = vmul.f32 %v330, %v339
      %v370 = vmul.f32 %v331, %v339
      %v371 = vmul.f32 %v332, %v339
      %v372 = vmul.f32 %v333, %v339
      %v373 = vld [vmem:[%s2] sm:$0x1]
      %v375 = vlaneseq
      %v376 = vshrl.u32 %v375, 7
      %v377 = vsub.s32 0, %v376
      %v378 = vrot.slane %v373, %v377
      %v380 = vadd.f32 %v341, %v378
      %v381 = vadd.f32 %v342, %v378
      %v382 = vadd.f32 %v343, %v378
      %v383 = vadd.f32 %v344, %v378
      %v384 = vadd.f32 %v345, %v378
      %v385 = vadd.f32 %v346, %v378
      %v386 = vadd.f32 %v347, %v378
      %v387 = vadd.f32 %v348, %v378
      %v388 = vadd.f32 %v349, %v378
      %v389 = vadd.f32 %v350, %v378
      %v390 = vadd.f32 %v351, %v378
      %v391 = vadd.f32 %v352, %v378
      %v392 = vadd.f32 %v353, %v378
      %v393 = vadd.f32 %v354, %v378
      %v394 = vadd.f32 %v355, %v378
      %v395 = vadd.f32 %v356, %v378
      %v396 = vadd.f32 %v357, %v378
      %v397 = vadd.f32 %v358, %v378
      %v398 = vadd.f32 %v359, %v378
      %v399 = vadd.f32 %v360, %v378
      %v400 = vadd.f32 %v361, %v378
      %v401 = vadd.f32 %v362, %v378
      %v402 = vadd.f32 %v363, %v378
      %v403 = vadd.f32 %v364, %v378
      %v404 = vadd.f32 %v365, %v378
      %v405 = vadd.f32 %v366, %v378
      %v406 = vadd.f32 %v367, %v378
      %v407 = vadd.f32 %v368, %v378
      %v408 = vadd.f32 %v369, %v378
      %v409 = vadd.f32 %v370, %v378
      %v410 = vadd.f32 %v371, %v378
      %v411 = vadd.f32 %v372, %v378
      %v412 = vmax.f32 %v380, 0.0
      %v413 = vmax.f32 %v381, 0.0
      %v414 = vmax.f32 %v382, 0.0
      %v415 = vmax.f32 %v383, 0.0
      %v416 = vmax.f32 %v384, 0.0
      %v417 = vmax.f32 %v385, 0.0
      %v418 = vmax.f32 %v386, 0.0
      %v419 = vmax.f32 %v387, 0.0
      %v420 = vmax.f32 %v388, 0.0
      %v421 = vmax.f32 %v389, 0.0
      %v422 = vmax.f32 %v390, 0.0
      %v423 = vmax.f32 %v391, 0.0
      %v424 = vmax.f32 %v392, 0.0
      %v425 = vmax.f32 %v393, 0.0
      %v426 = vmax.f32 %v394, 0.0
      %v427 = vmax.f32 %v395, 0.0
      %v428 = vmax.f32 %v396, 0.0
      %v429 = vmax.f32 %v397, 0.0
      %v430 = vmax.f32 %v398, 0.0
      %v431 = vmax.f32 %v399, 0.0
      %v432 = vmax.f32 %v400, 0.0
      %v433 = vmax.f32 %v401, 0.0
      %v434 = vmax.f32 %v402, 0.0
      %v435 = vmax.f32 %v403, 0.0
      %v436 = vmax.f32 %v404, 0.0
      %v437 = vmax.f32 %v405, 0.0
      %v438 = vmax.f32 %v406, 0.0
      %v439 = vmax.f32 %v407, 0.0
      %v440 = vmax.f32 %v408, 0.0
      %v441 = vmax.f32 %v409, 0.0
      %v442 = vmax.f32 %v410, 0.0
      %v443 = vmax.f32 %v411, 0.0
      %444 = vst [vmem:[#allocation2] sm:$0xff] 0.0
      %445 = vst [vmem:[#allocation2 + $0x8] sm:$0x1] 0.0
      %446 = vst [vmem:[#allocation2 + $0x90] sm:$0xff] 0.0
      %447 = vst [vmem:[#allocation2 + $0x98] sm:$0x1] 0.0
      %448 = vst [vmem:[#allocation2 + $0x120] sm:$0xff] 0.0
      %449 = vst [vmem:[#allocation2 + $0x128] sm:$0x1] 0.0
      %450 = vst [vmem:[#allocation2 + $0x1b0] sm:$0xff] 0.0
      %451 = vst [vmem:[#allocation2 + $0x1b8] sm:$0x1] 0.0
      %s452 = scalar_lea.vmem [#allocation2], 128
      %453 = vst [vmem:[%s452] sm:$0xff] 0.0
      %454 = vst [vmem:[%s452 + $0x8] sm:$0x1] 0.0
      %455 = vst [vmem:[%s452 + $0x90] sm:$0xff] 0.0
      %456 = vst [vmem:[%s452 + $0x98] sm:$0x1] 0.0
      %457 = vst [vmem:[%s452 + $0x120] sm:$0xff] 0.0
      %458 = vst [vmem:[%s452 + $0x128] sm:$0x1] 0.0
      %459 = vst [vmem:[%s452 + $0x1b0] sm:$0xff] 0.0
      %460 = vst [vmem:[%s452 + $0x1b8] sm:$0x1] 0.0
      %461 = vst [vmem:[#allocation2] sm:$0x1] 0.0
      %462 = vst [vmem:[#allocation2 + $0x10] sm:$0x1] 0.0
      %463 = vst [vmem:[#allocation2 + $0x20] sm:$0x1] 0.0
      %464 = vst [vmem:[#allocation2 + $0x30] sm:$0x1] 0.0
      %465 = vst [vmem:[#allocation2 + $0x40] sm:$0x1] 0.0
      %466 = vst [vmem:[#allocation2 + $0x50] sm:$0x1] 0.0
      %467 = vst [vmem:[#allocation2 + $0x60] sm:$0x1] 0.0
      %468 = vst [vmem:[#allocation2 + $0x70] sm:$0x1] 0.0
      %469 = vst [vmem:[#allocation2 + $0x80] sm:$0x1] 0.0
      %470 = vst [vmem:[#allocation2 + $0x90] sm:$0x1] 0.0
      %471 = vst [vmem:[#allocation2 + $0xa0] sm:$0x1] 0.0
      %472 = vst [vmem:[#allocation2 + $0xb0] sm:$0x1] 0.0
      %473 = vst [vmem:[#allocation2 + $0xc0] sm:$0x1] 0.0
      %474 = vst [vmem:[#allocation2 + $0xd0] sm:$0x1] 0.0
      %475 = vst [vmem:[#allocation2 + $0xe0] sm:$0x1] 0.0
      %476 = vst [vmem:[#allocation2 + $0xf0] sm:$0x1] 0.0
      %477 = vst [vmem:[#allocation2 + $0x100] sm:$0x1] 0.0
      %478 = vst [vmem:[#allocation2 + $0x110] sm:$0x1] 0.0
      %479 = vst [vmem:[#allocation2 + $0x120] sm:$0x1] 0.0
      %480 = vst [vmem:[#allocation2 + $0x130] sm:$0x1] 0.0
      %481 = vst [vmem:[#allocation2 + $0x140] sm:$0x1] 0.0
      %482 = vst [vmem:[#allocation2 + $0x150] sm:$0x1] 0.0
      %483 = vst [vmem:[#allocation2 + $0x160] sm:$0x1] 0.0
      %484 = vst [vmem:[#allocation2 + $0x170] sm:$0x1] 0.0
      %485 = vst [vmem:[#allocation2 + $0x180] sm:$0x1] 0.0
      %486 = vst [vmem:[#allocation2 + $0x190] sm:$0x1] 0.0
      %487 = vst [vmem:[#allocation2 + $0x1a0] sm:$0x1] 0.0
      %488 = vst [vmem:[#allocation2 + $0x1b0] sm:$0x1] 0.0
      %489 = vst [vmem:[#allocation2 + $0x1c0] sm:$0x1] 0.0
      %490 = vst [vmem:[#allocation2 + $0x1d0] sm:$0x1] 0.0
      %491 = vst [vmem:[#allocation2 + $0x1e0] sm:$0x1] 0.0
      %492 = vst [vmem:[#allocation2 + $0x1f0] sm:$0x1] 0.0
      %493 = vst [vmem:[#allocation2 + $0x200] sm:$0x1] 0.0
      %494 = vst [vmem:[#allocation2 + $0x210] sm:$0x1] 0.0
      %495 = vst [vmem:[#allocation2 + $0x220] sm:$0x1] 0.0
      %496 = vst [vmem:[#allocation2 + $0x230] sm:$0x1] 0.0
      %497 = vst [vmem:[#allocation2 + $0x8] sm:$0x1] 0.0
      %498 = vst [vmem:[#allocation2 + $0x18] sm:$0x1] 0.0
      %499 = vst [vmem:[#allocation2 + $0x28] sm:$0x1] 0.0
      %500 = vst [vmem:[#allocation2 + $0x38] sm:$0x1] 0.0
      %501 = vst [vmem:[#allocation2 + $0x48] sm:$0x1] 0.0
      %502 = vst [vmem:[#allocation2 + $0x58] sm:$0x1] 0.0
      %503 = vst [vmem:[#allocation2 + $0x68] sm:$0x1] 0.0
      %504 = vst [vmem:[#allocation2 + $0x78] sm:$0x1] 0.0
      %505 = vst [vmem:[#allocation2 + $0x88] sm:$0x1] 0.0
      %506 = vst [vmem:[#allocation2 + $0x98] sm:$0x1] 0.0
      %507 = vst [vmem:[#allocation2 + $0xa8] sm:$0x1] 0.0
      %508 = vst [vmem:[#allocation2 + $0xb8] sm:$0x1] 0.0
      %509 = vst [vmem:[#allocation2 + $0xc8] sm:$0x1] 0.0
      %510 = vst [vmem:[#allocation2 + $0xd8] sm:$0x1] 0.0
      %511 = vst [vmem:[#allocation2 + $0xe8] sm:$0x1] 0.0
      %512 = vst [vmem:[#allocation2 + $0xf8] sm:$0x1] 0.0
      %513 = vst [vmem:[#allocation2 + $0x108] sm:$0x1] 0.0
      %514 = vst [vmem:[#allocation2 + $0x118] sm:$0x1] 0.0
      %515 = vst [vmem:[#allocation2 + $0x128] sm:$0x1] 0.0
      %516 = vst [vmem:[#allocation2 + $0x138] sm:$0x1] 0.0
      %517 = vst [vmem:[#allocation2 + $0x148] sm:$0x1] 0.0
      %518 = vst [vmem:[#allocation2 + $0x158] sm:$0x1] 0.0
      %519 = vst [vmem:[#allocation2 + $0x168] sm:$0x1] 0.0
      %520 = vst [vmem:[#allocation2 + $0x178] sm:$0x1] 0.0
      %521 = vst [vmem:[#allocation2 + $0x188] sm:$0x1] 0.0
      %522 = vst [vmem:[#allocation2 + $0x198] sm:$0x1] 0.0
      %523 = vst [vmem:[#allocation2 + $0x1a8] sm:$0x1] 0.0
      %524 = vst [vmem:[#allocation2 + $0x1b8] sm:$0x1] 0.0
      %525 = vst [vmem:[#allocation2 + $0x1c8] sm:$0x1] 0.0
      %526 = vst [vmem:[#allocation2 + $0x1d8] sm:$0x1] 0.0
      %527 = vst [vmem:[#allocation2 + $0x1e8] sm:$0x1] 0.0
      %528 = vst [vmem:[#allocation2 + $0x1f8] sm:$0x1] 0.0
      %529 = vst [vmem:[#allocation2 + $0x208] sm:$0x1] 0.0
      %530 = vst [vmem:[#allocation2 + $0x218] sm:$0x1] 0.0
      %531 = vst [vmem:[#allocation2 + $0x228] sm:$0x1] 0.0
      %532 = vst [vmem:[#allocation2 + $0x238] sm:$0x1] 0.0
      %s533 = scalar_lea.vmem [#allocation2], 432
      %534 = vst [vmem:[%s533] sm:$0xff] %v412
      %535 = vst [vmem:[%s533 + $0x10] sm:$0xff] %v413
      %536 = vst [vmem:[%s533 + $0x20] sm:$0xff] %v414
      %537 = vst [vmem:[%s533 + $0x30] sm:$0xff] %v415
      %538 = vst [vmem:[%s533 + $0x40] sm:$0xff] %v416
      %539 = vst [vmem:[%s533 + $0x50] sm:$0xff] %v417
      %540 = vst [vmem:[%s533 + $0x60] sm:$0xff] %v418
      %541 = vst [vmem:[%s533 + $0x70] sm:$0xff] %v419
      %s542 = scalar_lea.vmem [#allocation2], 288
      %543 = vst [vmem:[%s542 + $0x1] sm:$0xff] %v420
      %544 = vst [vmem:[%s542 + $0x11] sm:$0xff] %v421
      %545 = vst [vmem:[%s542 + $0x21] sm:$0xff] %v422
      %546 = vst [vmem:[%s542 + $0x31] sm:$0xff] %v423
      %547 = vst [vmem:[%s542 + $0x41] sm:$0xff] %v424
      %548 = vst [vmem:[%s542 + $0x51] sm:$0xff] %v425
      %549 = vst [vmem:[%s542 + $0x61] sm:$0xff] %v426
      %550 = vst [vmem:[%s542 + $0x71] sm:$0xff] %v427
      %s551 = scalar_lea.vmem [#allocation2], 160
      %552 = vst [vmem:[%s551] sm:$0xff] %v428
      %553 = vst [vmem:[%s551 + $0x10] sm:$0xff] %v429
      %554 = vst [vmem:[%s551 + $0x20] sm:$0xff] %v430
      %555 = vst [vmem:[%s551 + $0x30] sm:$0xff] %v431
      %556 = vst [vmem:[%s551 + $0x40] sm:$0xff] %v432
      %557 = vst [vmem:[%s551 + $0x50] sm:$0xff] %v433
      %558 = vst [vmem:[%s551 + $0x60] sm:$0xff] %v434
      %559 = vst [vmem:[%s551 + $0x70] sm:$0xff] %v435
      %s560 = scalar_lea.vmem [#allocation2], 16
      %561 = vst [vmem:[%s560 + $0x1] sm:$0xff] %v436
      %562 = vst [vmem:[%s560 + $0x11] sm:$0xff] %v437
      %563 = vst [vmem:[%s560 + $0x21] sm:$0xff] %v438
      %564 = vst [vmem:[%s560 + $0x31] sm:$0xff] %v439
      %565 = vst [vmem:[%s560 + $0x41] sm:$0xff] %v440
      %566 = vst [vmem:[%s560 + $0x51] sm:$0xff] %v441
      %567 = vst [vmem:[%s560 + $0x61] sm:$0xff] %v442
      %568 = vst [vmem:[%s560 + $0x71] sm:$0xff] %v443
      %v569 = vld [vmem:[#allocation2] sm:$0xff]
      %v570 = vld [vmem:[#allocation2 + $0x10] sm:$0xff]
      %v571 = vld [vmem:[#allocation2 + $0x20] sm:$0xff]
      %v572 = vld [vmem:[#allocation2 + $0x30] sm:$0xff]
      %v573 = vld [vmem:[#allocation2 + $0x40] sm:$0xff]
      %v574 = vld [vmem:[#allocation2 + $0x50] sm:$0xff]
      %v575 = vld [vmem:[#allocation2 + $0x60] sm:$0xff]
      %v576 = vld [vmem:[#allocation2 + $0x70] sm:$0xff]
      %v577 = vpack.c.bf16 %v570, %v569
      %v578 = vpack.c.bf16 %v572, %v571
      %v579 = vpack.c.bf16 %v574, %v573
      %v580 = vpack.c.bf16 %v576, %v575
      %v581 = vld [vmem:[%s3] sm:$0xf]
      %v582 = vld [vmem:[%s3 + $0x4] sm:$0xf]
      %v583 = vld [vmem:[%s3 + $0x8] sm:$0xf]
      %v584 = vld [vmem:[%s3 + $0xc] sm:$0xf]
      %v585 = vld [vmem:[%s3 + $0x10] sm:$0xf]
      %v586 = vld [vmem:[%s3 + $0x14] sm:$0xf]
      %v587 = vld [vmem:[%s3 + $0x18] sm:$0xf]
      %v588 = vld [vmem:[%s3 + $0x1c] sm:$0xf]
      %v589 = vld [vmem:[%s3 + $0x20] sm:$0xf]
      %v590 = vld [vmem:[%s3 + $0x24] sm:$0xf]
      %v591 = vld [vmem:[%s3 + $0x28] sm:$0xf]
      %v592 = vld [vmem:[%s3 + $0x2c] sm:$0xf]
      %v593 = vld [vmem:[%s3 + $0x30] sm:$0xf]
      %v594 = vld [vmem:[%s3 + $0x34] sm:$0xf]
      %v595 = vld [vmem:[%s3 + $0x38] sm:$0xf]
      %v596 = vld [vmem:[%s3 + $0x3c] sm:$0xf]
      %s597 = scalar_lea.vmem [#allocation2], 144
      %v598 = vld [vmem:[%s597] sm:$0xff]
      %v599 = vld [vmem:[%s597 + $0x10] sm:$0xff]
      %v600 = vld [vmem:[%s597 + $0x20] sm:$0xff]
      %v601 = vld [vmem:[%s597 + $0x30] sm:$0xff]
      %v602 = vld [vmem:[%s597 + $0x40] sm:$0xff]
      %v603 = vld [vmem:[%s597 + $0x50] sm:$0xff]
      %v604 = vld [vmem:[%s597 + $0x60] sm:$0xff]
      %v605 = vld [vmem:[%s597 + $0x70] sm:$0xff]
      %v606 = vpack.c.bf16 %v599, %v598
      %v607 = vpack.c.bf16 %v601, %v600
      %v608 = vpack.c.bf16 %v603, %v602
      %v609 = vpack.c.bf16 %v605, %v604
      %s610 = scalar_lea.vmem %s3, 64
      %v611 = vld [vmem:[%s610] sm:$0xf]
      %v612 = vld [vmem:[%s610 + $0x4] sm:$0xf]
      %v613 = vld [vmem:[%s610 + $0x8] sm:$0xf]
      %v614 = vld [vmem:[%s610 + $0xc] sm:$0xf]
      %v615 = vld [vmem:[%s610 + $0x10] sm:$0xf]
      %v616 = vld [vmem:[%s610 + $0x14] sm:$0xf]
      %v617 = vld [vmem:[%s610 + $0x18] sm:$0xf]
      %v618 = vld [vmem:[%s610 + $0x1c] sm:$0xf]
      %v619 = vld [vmem:[%s610 + $0x20] sm:$0xf]
      %v620 = vld [vmem:[%s610 + $0x24] sm:$0xf]
      %v621 = vld [vmem:[%s610 + $0x28] sm:$0xf]
      %v622 = vld [vmem:[%s610 + $0x2c] sm:$0xf]
      %v623 = vld [vmem:[%s610 + $0x30] sm:$0xf]
      %v624 = vld [vmem:[%s610 + $0x34] sm:$0xf]
      %v625 = vld [vmem:[%s610 + $0x38] sm:$0xf]
      %v626 = vld [vmem:[%s610 + $0x3c] sm:$0xf]
      %v643 = vunpack.c.l.b16 %v611
      %v644 = vunpack.c.l.b16 %v612
      %v645 = vunpack.c.l.b16 %v613
      %v646 = vunpack.c.l.b16 %v614
      %v647 = vunpack.c.l.b16 %v615
      %v648 = vunpack.c.l.b16 %v616
      %v649 = vunpack.c.l.b16 %v617
      %v650 = vunpack.c.l.b16 %v618
      %v651 = vunpack.c.l.b16 %v619
      %v652 = vunpack.c.l.b16 %v620
      %v653 = vunpack.c.l.b16 %v621
      %v654 = vunpack.c.l.b16 %v622
      %v655 = vunpack.c.l.b16 %v623
      %v656 = vunpack.c.l.b16 %v624
      %v657 = vunpack.c.l.b16 %v625
      %v658 = vunpack.c.l.b16 %v626
      %v659 = vpack.c.b16 %v644, %v643
      %v660 = vpack.c.b16 %v646, %v645
      %v661 = vpack.c.b16 %v648, %v647
      %v662 = vpack.c.b16 %v650, %v649
      %v663 = vpack.c.b16 %v652, %v651
      %v664 = vpack.c.b16 %v654, %v653
      %v665 = vpack.c.b16 %v656, %v655
      %v666 = vpack.c.b16 %v658, %v657
      %675 = vmatprep.subr.bf16.mxu0 0
      %676 = vmatpush1.bf16.msra.mxu0 %v659
      %677 = vmatprep.subr.bf16.mxu0 0
      %678 = vmatpush1.bf16.msra.mxu0 %v660
      %679 = vmatprep.subr.bf16.mxu0 0
      %680 = vmatpush1.bf16.msra.mxu0 %v661
      %681 = vmatprep.subr.bf16.mxu0 0
      %682 = vmatpush1.bf16.msra.mxu0 %v662
      %683 = vmatprep.subr.bf16.mxu0 0
      %684 = vmatpush1.bf16.msra.mxu0 %v663
      %685 = vmatprep.subr.bf16.mxu0 0
      %686 = vmatpush1.bf16.msra.mxu0 %v664
      %687 = vmatprep.subr.bf16.mxu0 0
      %688 = vmatpush1.bf16.msra.mxu0 %v665
      %689 = vmatprep.subr.bf16.mxu0 0
      %690 = vmatpush1.bf16.msra.mxu0 %v666
      %691 = vmatprep.subr.bf16.mxu0 0
      %692 = vmatpush1.bf16.msra.mxu0 0
      %693 = vmatprep.subr.bf16.mxu0 0
      %694 = vmatpush1.bf16.msra.mxu0 0
      %695 = vmatprep.subr.bf16.mxu0 0
      %696 = vmatpush1.bf16.msra.mxu0 0
      %697 = vmatprep.subr.bf16.mxu0 0
      %698 = vmatpush1.bf16.msra.mxu0 0
      %699 = vmatprep.subr.bf16.mxu0 0
      %700 = vmatpush1.bf16.msra.mxu0 0
      %701 = vmatprep.subr.bf16.mxu0 0
      %702 = vmatpush1.bf16.msra.mxu0 0
      %703 = vmatprep.subr.bf16.mxu0 0
      %704 = vmatpush1.bf16.msra.mxu0 0
      %705 = vmatprep.subr.bf16.mxu0 0
      %706 = vmatpush1.bf16.msra.mxu0 0
      %707 = vmatprep.mubr.bf16.mxu0 0
      %708 = vmatmul.mubr.bf16.gmra.mrb[0].mxu0 %v606
      %v709 = vpop.f32.mrb[0].mxu0
      %v710 = vadd.f32 0.0, %v709
      %v711 = vpop.f32.mrb[0].mxu0
      %v712 = vpop.f32.mrb[0].mxu0
      %v713 = vadd.f32 0.0, %v712
      %v714 = vpop.f32.mrb[0].mxu0
      %715 = vmatprep.mubr.bf16.mxu0 0
      %716 = vmatmul.mubr.bf16.gmra.mrb[0].mxu0 %v607
      %v717 = vpop.f32.mrb[0].mxu0
      %v718 = vadd.f32 0.0, %v717
      %v719 = vpop.f32.mrb[0].mxu0
      %v720 = vpop.f32.mrb[0].mxu0
      %v721 = vadd.f32 0.0, %v720
      %v722 = vpop.f32.mrb[0].mxu0
      %723 = vmatprep.mubr.bf16.mxu0 0
      %724 = vmatmul.mubr.bf16.gmra.mrb[0].mxu0 %v608
      %v725 = vpop.f32.mrb[0].mxu0
      %v726 = vadd.f32 0.0, %v725
      %v727 = vpop.f32.mrb[0].mxu0
      %v728 = vpop.f32.mrb[0].mxu0
      %v729 = vadd.f32 0.0, %v728
      %v730 = vpop.f32.mrb[0].mxu0
      %731 = vmatprep.mubr.bf16.mxu0 0
      %732 = vmatmul.mubr.bf16.gmra.mrb[0].mxu0 %v609
      %v733 = vpop.f32.mrb[0].mxu0
      %v734 = vadd.f32 0.0, %v733
      %v735 = vpop.f32.mrb[0].mxu0
      %v736 = vpop.f32.mrb[0].mxu0
      %v737 = vadd.f32 0.0, %v736
      %v738 = vpop.f32.mrb[0].mxu0
      %739 = vdwg.mxu0
      %v756 = vunpack.c.l.b16 %v581
      %v757 = vunpack.c.l.b16 %v582
      %v758 = vunpack.c.l.b16 %v583
      %v759 = vunpack.c.l.b16 %v584
      %v760 = vunpack.c.l.b16 %v585
      %v761 = vunpack.c.l.b16 %v586
      %v762 = vunpack.c.l.b16 %v587
      %v763 = vunpack.c.l.b16 %v588
      %v764 = vunpack.c.l.b16 %v589
      %v765 = vunpack.c.l.b16 %v590
      %v766 = vunpack.c.l.b16 %v591
      %v767 = vunpack.c.l.b16 %v592
      %v768 = vunpack.c.l.b16 %v593
      %v769 = vunpack.c.l.b16 %v594
      %v770 = vunpack.c.l.b16 %v595
      %v771 = vunpack.c.l.b16 %v596
      %v772 = vpack.c.b16 %v757, %v756
      %v773 = vpack.c.b16 %v759, %v758
      %v774 = vpack.c.b16 %v761, %v760
      %v775 = vpack.c.b16 %v763, %v762
      %v776 = vpack.c.b16 %v765, %v764
      %v777 = vpack.c.b16 %v767, %v766
      %v778 = vpack.c.b16 %v769, %v768
      %v779 = vpack.c.b16 %v771, %v770
      %788 = vmatprep.subr.bf16.mxu0 0
      %789 = vmatpush1.bf16.msra.mxu0 %v772
      %790 = vmatprep.subr.bf16.mxu0 0
      %791 = vmatpush1.bf16.msra.mxu0 %v773
      %792 = vmatprep.subr.bf16.mxu0 0
      %793 = vmatpush1.bf16.msra.mxu0 %v774
      %794 = vmatprep.subr.bf16.mxu0 0
      %795 = vmatpush1.bf16.msra.mxu0 %v775
      %796 = vmatprep.subr.bf16.mxu0 0
      %797 = vmatpush1.bf16.msra.mxu0 %v776
      %798 = vmatprep.subr.bf16.mxu0 0
      %799 = vmatpush1.bf16.msra.mxu0 %v777
      %800 = vmatprep.subr.bf16.mxu0 0
      %801 = vmatpush1.bf16.msra.mxu0 %v778
      %802 = vmatprep.subr.bf16.mxu0 0
      %803 = vmatpush1.bf16.msra.mxu0 %v779
      %804 = vmatprep.subr.bf16.mxu0 0
      %805 = vmatpush1.bf16.msra.mxu0 0
      %806 = vmatprep.subr.bf16.mxu0 0
      %807 = vmatpush1.bf16.msra.mxu0 0
      %808 = vmatprep.subr.bf16.mxu0 0
      %809 = vmatpush1.bf16.msra.mxu0 0
      %810 = vmatprep.subr.bf16.mxu0 0
      %811 = vmatpush1.bf16.msra.mxu0 0
      %812 = vmatprep.subr.bf16.mxu0 0
      %813 = vmatpush1.bf16.msra.mxu0 0
      %814 = vmatprep.subr.bf16.mxu0 0
      %815 = vmatpush1.bf16.msra.mxu0 0
      %816 = vmatprep.subr.bf16.mxu0 0
      %817 = vmatpush1.bf16.msra.mxu0 0
      %818 = vmatprep.subr.bf16.mxu0 0
      %819 = vmatpush1.bf16.msra.mxu0 0
      %820 = vmatprep.mubr.bf16.mxu0 0
      %821 = vmatmul.mubr.bf16.gmra.mrb[0].mxu0 %v577
      %v822 = vpop.f32.mrb[0].mxu0
      %v823 = vadd.f32 %v710, %v822
      %v824 = vpop.f32.mrb[0].mxu0
      %v825 = vpop.f32.mrb[0].mxu0
      %v826 = vadd.f32 %v713, %v825
      %v827 = vpop.f32.mrb[0].mxu0
      %828 = vmatprep.mubr.bf16.mxu0 0
      %829 = vmatmul.mubr.bf16.gmra.mrb[0].mxu0 %v578
      %v830 = vpop.f32.mrb[0].mxu0
      %v831 = vadd.f32 %v718, %v830
      %v832 = vpop.f32.mrb[0].mxu0
      %v833 = vpop.f32.mrb[0].mxu0
      %v834 = vadd.f32 %v721, %v833
      %v835 = vpop.f32.mrb[0].mxu0
      %836 = vmatprep.mubr.bf16.mxu0 0
      %837 = vmatmul.mubr.bf16.gmra.mrb[0].mxu0 %v579
      %v838 = vpop.f32.mrb[0].mxu0
      %v839 = vadd.f32 %v726, %v838
      %v840 = vpop.f32.mrb[0].mxu0
      %v841 = vpop.f32.mrb[0].mxu0
      %v842 = vadd.f32 %v729, %v841
      %v843 = vpop.f32.mrb[0].mxu0
      %844 = vmatprep.mubr.bf16.mxu0 0
      %845 = vmatmul.mubr.bf16.gmra.mrb[0].mxu0 %v580
      %v846 = vpop.f32.mrb[0].mxu0
      %v847 = vadd.f32 %v734, %v846
      %v848 = vpop.f32.mrb[0].mxu0
      %v849 = vpop.f32.mrb[0].mxu0
      %v850 = vadd.f32 %v737, %v849
      %v851 = vpop.f32.mrb[0].mxu0
      %852 = vdwg.mxu0
      %v853 = vld [vmem:[#allocation2 + $0x1] sm:$0xff]
      %v854 = vld [vmem:[#allocation2 + $0x11] sm:$0xff]
      %v855 = vld [vmem:[#allocation2 + $0x21] sm:$0xff]
      %v856 = vld [vmem:[#allocation2 + $0x31] sm:$0xff]
      %v857 = vld [vmem:[#allocation2 + $0x41] sm:$0xff]
      %v858 = vld [vmem:[#allocation2 + $0x51] sm:$0xff]
      %v859 = vld [vmem:[#allocation2 + $0x61] sm:$0xff]
      %v860 = vld [vmem:[#allocation2 + $0x71] sm:$0xff]
      %v861 = vpack.c.bf16 %v854, %v853
      %v862 = vpack.c.bf16 %v856, %v855
      %v863 = vpack.c.bf16 %v858, %v857
      %v864 = vpack.c.bf16 %v860, %v859
      %s865 = scalar_lea.vmem %s3, 128
      %v866 = vld [vmem:[%s865] sm:$0xf]
      %v867 = vld [vmem:[%s865 + $0x4] sm:$0xf]
      %v868 = vld [vmem:[%s865 + $0x8] sm:$0xf]
      %v869 = vld [vmem:[%s865 + $0xc] sm:$0xf]
      %v870 = vld [vmem:[%s865 + $0x10] sm:$0xf]
      %v871 = vld [vmem:[%s865 + $0x14] sm:$0xf]
      %v872 = vld [vmem:[%s865 + $0x18] sm:$0xf]
      %v873 = vld [vmem:[%s865 + $0x1c] sm:$0xf]
      %v874 = vld [vmem:[%s865 + $0x20] sm:$0xf]
      %v875 = vld [vmem:[%s865 + $0x24] sm:$0xf]
      %v876 = vld [vmem:[%s865 + $0x28] sm:$0xf]
      %v877 = vld [vmem:[%s865 + $0x2c] sm:$0xf]
      %v878 = vld [vmem:[%s865 + $0x30] sm:$0xf]
      %v879 = vld [vmem:[%s865 + $0x34] sm:$0xf]
      %v880 = vld [vmem:[%s865 + $0x38] sm:$0xf]
      %v881 = vld [vmem:[%s865 + $0x3c] sm:$0xf]
      %v898 = vunpack.c.l.b16 %v866
      %v899 = vunpack.c.l.b16 %v867
      %v900 = vunpack.c.l.b16 %v868
      %v901 = vunpack.c.l.b16 %v869
      %v902 = vunpack.c.l.b16 %v870
      %v903 = vunpack.c.l.b16 %v871
      %v904 = vunpack.c.l.b16 %v872
      %v905 = vunpack.c.l.b16 %v873
      %v906 = vunpack.c.l.b16 %v874
      %v907 = vunpack.c.l.b16 %v875
      %v908 = vunpack.c.l.b16 %v876
      %v909 = vunpack.c.l.b16 %v877
      %v910 = vunpack.c.l.b16 %v878
      %v911 = vunpack.c.l.b16 %v879
      %v912 = vunpack.c.l.b16 %v880
      %v913 = vunpack.c.l.b16 %v881
      %v914 = vpack.c.b16 %v899, %v898
      %v915 = vpack.c.b16 %v901, %v900
      %v916 = vpack.c.b16 %v903, %v902
      %v917 = vpack.c.b16 %v905, %v904
      %v918 = vpack.c.b16 %v907, %v906
      %v919 = vpack.c.b16 %v909, %v908
      %v920 = vpack.c.b16 %v911, %v910
      %v921 = vpack.c.b16 %v913, %v912
      %930 = vmatprep.subr.bf16.mxu0 0
      %931 = vmatpush1.bf16.msra.mxu0 %v914
      %932 = vmatprep.subr.bf16.mxu0 0
      %933 = vmatpush1.bf16.msra.mxu0 %v915
      %934 = vmatprep.subr.bf16.mxu0 0
      %935 = vmatpush1.bf16.msra.mxu0 %v916
      %936 = vmatprep.subr.bf16.mxu0 0
      %937 = vmatpush1.bf16.msra.mxu0 %v917
      %938 = vmatprep.subr.bf16.mxu0 0
      %939 = vmatpush1.bf16.msra.mxu0 %v918
      %940 = vmatprep.subr.bf16.mxu0 0
      %941 = vmatpush1.bf16.msra.mxu0 %v919
      %942 = vmatprep.subr.bf16.mxu0 0
      %943 = vmatpush1.bf16.msra.mxu0 %v920
      %944 = vmatprep.subr.bf16.mxu0 0
      %945 = vmatpush1.bf16.msra.mxu0 %v921
      %946 = vmatprep.subr.bf16.mxu0 0
      %947 = vmatpush1.bf16.msra.mxu0 0
      %948 = vmatprep.subr.bf16.mxu0 0
      %949 = vmatpush1.bf16.msra.mxu0 0
      %950 = vmatprep.subr.bf16.mxu0 0
      %951 = vmatpush1.bf16.msra.mxu0 0
      %952 = vmatprep.subr.bf16.mxu0 0
      %953 = vmatpush1.bf16.msra.mxu0 0
      %954 = vmatprep.subr.bf16.mxu0 0
      %955 = vmatpush1.bf16.msra.mxu0 0
      %956 = vmatprep.subr.bf16.mxu0 0
      %957 = vmatpush1.bf16.msra.mxu0 0
      %958 = vmatprep.subr.bf16.mxu0 0
      %959 = vmatpush1.bf16.msra.mxu0 0
      %960 = vmatprep.subr.bf16.mxu0 0
      %961 = vmatpush1.bf16.msra.mxu0 0
      %962 = vmatprep.mubr.bf16.mxu0 0
      %963 = vmatmul.mubr.bf16.gmra.mrb[0].mxu0 %v861
      %v964 = vpop.f32.mrb[0].mxu0
      %v965 = vadd.f32 0.0, %v964
      %v966 = vpop.f32.mrb[0].mxu0
      %v967 = vpop.f32.mrb[0].mxu0
      %v968 = vadd.f32 0.0, %v967
      %v969 = vpop.f32.mrb[0].mxu0
      %970 = vmatprep.mubr.bf16.mxu0 0
      %971 = vmatmul.mubr.bf16.gmra.mrb[0].mxu0 %v862
      %v972 = vpop.f32.mrb[0].mxu0
      %v973 = vadd.f32 0.0, %v972
      %v974 = vpop.f32.mrb[0].mxu0
      %v975 = vpop.f32.mrb[0].mxu0
      %v976 = vadd.f32 0.0, %v975
      %v977 = vpop.f32.mrb[0].mxu0
      %978 = vmatprep.mubr.bf16.mxu0 0
      %979 = vmatmul.mubr.bf16.gmra.mrb[0].mxu0 %v863
      %v980 = vpop.f32.mrb[0].mxu0
      %v981 = vadd.f32 0.0, %v980
      %v982 = vpop.f32.mrb[0].mxu0
      %v983 = vpop.f32.mrb[0].mxu0
      %v984 = vadd.f32 0.0, %v983
      %v985 = vpop.f32.mrb[0].mxu0
      %986 = vmatprep.mubr.bf16.mxu0 0
      %987 = vmatmul.mubr.bf16.gmra.mrb[0].mxu0 %v864
      %v988 = vpop.f32.mrb[0].mxu0
      %v989 = vadd.f32 0.0, %v988
      %v990 = vpop.f32.mrb[0].mxu0
      %v991 = vpop.f32.mrb[0].mxu0
      %v992 = vadd.f32 0.0, %v991
      %v993 = vpop.f32.mrb[0].mxu0
      %994 = vdwg.mxu0
      %v995 = vadd.f32 %v823, %v965
      %v996 = vadd.f32 %v826, %v968
      %v997 = vadd.f32 %v831, %v973
      %v998 = vadd.f32 %v834, %v976
      %v999 = vadd.f32 %v839, %v981
      %v1000 = vadd.f32 %v842, %v984
      %v1001 = vadd.f32 %v847, %v989
      %v1002 = vadd.f32 %v850, %v992
      %v1003 = vld [vmem:[%s542] sm:$0xff]
      %v1004 = vld [vmem:[%s542 + $0x10] sm:$0xff]
      %v1005 = vld [vmem:[%s542 + $0x20] sm:$0xff]
      %v1006 = vld [vmem:[%s542 + $0x30] sm:$0xff]
      %v1007 = vld [vmem:[%s542 + $0x40] sm:$0xff]
      %v1008 = vld [vmem:[%s542 + $0x50] sm:$0xff]
      %v1009 = vld [vmem:[%s542 + $0x60] sm:$0xff]
      %v1010 = vld [vmem:[%s542 + $0x70] sm:$0xff]
      %v1011 = vpack.c.bf16 %v1004, %v1003
      %v1012 = vpack.c.bf16 %v1006, %v1005
      %v1013 = vpack.c.bf16 %v1008, %v1007
      %v1014 = vpack.c.bf16 %v1010, %v1009
      %s1015 = scalar_lea.vmem %s3, 192
      %v1016 = vld [vmem:[%s1015] sm:$0xf]
      %v1017 = vld [vmem:[%s1015 + $0x4] sm:$0xf]
      %v1018 = vld [vmem:[%s1015 + $0x8] sm:$0xf]
      %v1019 = vld [vmem:[%s1015 + $0xc] sm:$0xf]
      %v1020 = vld [vmem:[%s1015 + $0x10] sm:$0xf]
      %v1021 = vld [vmem:[%s1015 + $0x14] sm:$0xf]
      %v1022 = vld [vmem:[%s1015 + $0x18] sm:$0xf]
      %v1023 = vld [vmem:[%s1015 + $0x1c] sm:$0xf]
      %v1024 = vld [vmem:[%s1015 + $0x20] sm:$0xf]
      %v1025 = vld [vmem:[%s1015 + $0x24] sm:$0xf]
      %v1026 = vld [vmem:[%s1015 + $0x28] sm:$0xf]
      %v1027 = vld [vmem:[%s1015 + $0x2c] sm:$0xf]
      %v1028 = vld [vmem:[%s1015 + $0x30] sm:$0xf]
      %v1029 = vld [vmem:[%s1015 + $0x34] sm:$0xf]
      %v1030 = vld [vmem:[%s1015 + $0x38] sm:$0xf]
      %v1031 = vld [vmem:[%s1015 + $0x3c] sm:$0xf]
      %v1048 = vunpack.c.l.b16 %v1016
      %v1049 = vunpack.c.l.b16 %v1017
      %v1050 = vunpack.c.l.b16 %v1018
      %v1051 = vunpack.c.l.b16 %v1019
      %v1052 = vunpack.c.l.b16 %v1020
      %v1053 = vunpack.c.l.b16 %v1021
      %v1054 = vunpack.c.l.b16 %v1022
      %v1055 = vunpack.c.l.b16 %v1023
      %v1056 = vunpack.c.l.b16 %v1024
      %v1057 = vunpack.c.l.b16 %v1025
      %v1058 = vunpack.c.l.b16 %v1026
      %v1059 = vunpack.c.l.b16 %v1027
      %v1060 = vunpack.c.l.b16 %v1028
      %v1061 = vunpack.c.l.b16 %v1029
      %v1062 = vunpack.c.l.b16 %v1030
      %v1063 = vunpack.c.l.b16 %v1031
      %v1064 = vpack.c.b16 %v1049, %v1048
      %v1065 = vpack.c.b16 %v1051, %v1050
      %v1066 = vpack.c.b16 %v1053, %v1052
      %v1067 = vpack.c.b16 %v1055, %v1054
      %v1068 = vpack.c.b16 %v1057, %v1056
      %v1069 = vpack.c.b16 %v1059, %v1058
      %v1070 = vpack.c.b16 %v1061, %v1060
      %v1071 = vpack.c.b16 %v1063, %v1062
      %1080 = vmatprep.subr.bf16.mxu0 0
      %1081 = vmatpush1.bf16.msra.mxu0 %v1064
      %1082 = vmatprep.subr.bf16.mxu0 0
      %1083 = vmatpush1.bf16.msra.mxu0 %v1065
      %1084 = vmatprep.subr.bf16.mxu0 0
      %1085 = vmatpush1.bf16.msra.mxu0 %v1066
      %1086 = vmatprep.subr.bf16.mxu0 0
      %1087 = vmatpush1.bf16.msra.mxu0 %v1067
      %1088 = vmatprep.subr.bf16.mxu0 0
      %1089 = vmatpush1.bf16.msra.mxu0 %v1068
      %1090 = vmatprep.subr.bf16.mxu0 0
      %1091 = vmatpush1.bf16.msra.mxu0 %v1069
      %1092 = vmatprep.subr.bf16.mxu0 0
      %1093 = vmatpush1.bf16.msra.mxu0 %v1070
      %1094 = vmatprep.subr.bf16.mxu0 0
      %1095 = vmatpush1.bf16.msra.mxu0 %v1071
      %1096 = vmatprep.subr.bf16.mxu0 0
      %1097 = vmatpush1.bf16.msra.mxu0 0
      %1098 = vmatprep.subr.bf16.mxu0 0
      %1099 = vmatpush1.bf16.msra.mxu0 0
      %1100 = vmatprep.subr.bf16.mxu0 0
      %1101 = vmatpush1.bf16.msra.mxu0 0
      %1102 = vmatprep.subr.bf16.mxu0 0
      %1103 = vmatpush1.bf16.msra.mxu0 0
      %1104 = vmatprep.subr.bf16.mxu0 0
      %1105 = vmatpush1.bf16.msra.mxu0 0
      %1106 = vmatprep.subr.bf16.mxu0 0
      %1107 = vmatpush1.bf16.msra.mxu0 0
      %1108 = vmatprep.subr.bf16.mxu0 0
      %1109 = vmatpush1.bf16.msra.mxu0 0
      %1110 = vmatprep.subr.bf16.mxu0 0
      %1111 = vmatpush1.bf16.msra.mxu0 0
      %1112 = vmatprep.mubr.bf16.mxu0 0
      %1113 = vmatmul.mubr.bf16.gmra.mrb[0].mxu0 %v1011
      %v1114 = vpop.f32.mrb[0].mxu0
      %v1115 = vadd.f32 0.0, %v1114
      %v1116 = vpop.f32.mrb[0].mxu0
      %v1117 = vpop.f32.mrb[0].mxu0
      %v1118 = vadd.f32 0.0, %v1117
      %v1119 = vpop.f32.mrb[0].mxu0
      %1120 = vmatprep.mubr.bf16.mxu0 0
      %1121 = vmatmul.mubr.bf16.gmra.mrb[0].mxu0 %v1012
      %v1122 = vpop.f32.mrb[0].mxu0
      %v1123 = vadd.f32 0.0, %v1122
      %v1124 = vpop.f32.mrb[0].mxu0
      %v1125 = vpop.f32.mrb[0].mxu0
      %v1126 = vadd.f32 0.0, %v1125
      %v1127 = vpop.f32.mrb[0].mxu0
      %1128 = vmatprep.mubr.bf16.mxu0 0
      %1129 = vmatmul.mubr.bf16.gmra.mrb[0].mxu0 %v1013
      %v1130 = vpop.f32.mrb[0].mxu0
      %v1131 = vadd.f32 0.0, %v1130
      %v1132 = vpop.f32.mrb[0].mxu0
      %v1133 = vpop.f32.mrb[0].mxu0
      %v1134 = vadd.f32 0.0, %v1133
      %v1135 = vpop.f32.mrb[0].mxu0
      %1136 = vmatprep.mubr.bf16.mxu0 0
      %1137 = vmatmul.mubr.bf16.gmra.mrb[0].mxu0 %v1014
      %v1138 = vpop.f32.mrb[0].mxu0
      %v1139 = vadd.f32 0.0, %v1138
      %v1140 = vpop.f32.mrb[0].mxu0
      %v1141 = vpop.f32.mrb[0].mxu0
      %v1142 = vadd.f32 0.0, %v1141
      %v1143 = vpop.f32.mrb[0].mxu0
      %1144 = vdwg.mxu0
      %v1145 = vadd.f32 %v995, %v1115
      %v1146 = vadd.f32 %v996, %v1118
      %v1147 = vadd.f32 %v997, %v1123
      %v1148 = vadd.f32 %v998, %v1126
      %v1149 = vadd.f32 %v999, %v1131
      %v1150 = vadd.f32 %v1000, %v1134
      %v1151 = vadd.f32 %v1001, %v1139
      %v1152 = vadd.f32 %v1002, %v1142
      %v1153 = vld [vmem:[%s533] sm:$0xff]
      %v1154 = vld [vmem:[%s533 + $0x10] sm:$0xff]
      %v1155 = vld [vmem:[%s533 + $0x20] sm:$0xff]
      %v1156 = vld [vmem:[%s533 + $0x30] sm:$0xff]
      %v1157 = vld [vmem:[%s533 + $0x40] sm:$0xff]
      %v1158 = vld [vmem:[%s533 + $0x50] sm:$0xff]
      %v1159 = vld [vmem:[%s533 + $0x60] sm:$0xff]
      %v1160 = vld [vmem:[%s533 + $0x70] sm:$0xff]
      %v1161 = vpack.c.bf16 %v1154, %v1153
      %v1162 = vpack.c.bf16 %v1156, %v1155
      %v1163 = vpack.c.bf16 %v1158, %v1157
      %v1164 = vpack.c.bf16 %v1160, %v1159
      %s1165 = scalar_lea.vmem %s3, 256
      %v1166 = vld [vmem:[%s1165] sm:$0xf]
      %v1167 = vld [vmem:[%s1165 + $0x4] sm:$0xf]
      %v1168 = vld [vmem:[%s1165 + $0x8] sm:$0xf]
      %v1169 = vld [vmem:[%s1165 + $0xc] sm:$0xf]
      %v1170 = vld [vmem:[%s1165 + $0x10] sm:$0xf]
      %v1171 = vld [vmem:[%s1165 + $0x14] sm:$0xf]
      %v1172 = vld [vmem:[%s1165 + $0x18] sm:$0xf]
      %v1173 = vld [vmem:[%s1165 + $0x1c] sm:$0xf]
      %v1174 = vld [vmem:[%s1165 + $0x20] sm:$0xf]
      %v1175 = vld [vmem:[%s1165 + $0x24] sm:$0xf]
      %v1176 = vld [vmem:[%s1165 + $0x28] sm:$0xf]
      %v1177 = vld [vmem:[%s1165 + $0x2c] sm:$0xf]
      %v1178 = vld [vmem:[%s1165 + $0x30] sm:$0xf]
      %v1179 = vld [vmem:[%s1165 + $0x34] sm:$0xf]
      %v1180 = vld [vmem:[%s1165 + $0x38] sm:$0xf]
      %v1181 = vld [vmem:[%s1165 + $0x3c] sm:$0xf]
      %v1198 = vunpack.c.l.b16 %v1166
      %v1199 = vunpack.c.l.b16 %v1167
      %v1200 = vunpack.c.l.b16 %v1168
      %v1201 = vunpack.c.l.b16 %v1169
      %v1202 = vunpack.c.l.b16 %v1170
      %v1203 = vunpack.c.l.b16 %v1171
      %v1204 = vunpack.c.l.b16 %v1172
      %v1205 = vunpack.c.l.b16 %v1173
      %v1206 = vunpack.c.l.b16 %v1174
      %v1207 = vunpack.c.l.b16 %v1175
      %v1208 = vunpack.c.l.b16 %v1176
      %v1209 = vunpack.c.l.b16 %v1177
      %v1210 = vunpack.c.l.b16 %v1178
      %v1211 = vunpack.c.l.b16 %v1179
      %v1212 = vunpack.c.l.b16 %v1180
      %v1213 = vunpack.c.l.b16 %v1181
      %v1214 = vpack.c.b16 %v1199, %v1198
      %v1215 = vpack.c.b16 %v1201, %v1200
      %v1216 = vpack.c.b16 %v1203, %v1202
      %v1217 = vpack.c.b16 %v1205, %v1204
      %v1218 = vpack.c.b16 %v1207, %v1206
      %v1219 = vpack.c.b16 %v1209, %v1208
      %v1220 = vpack.c.b16 %v1211, %v1210
      %v1221 = vpack.c.b16 %v1213, %v1212
      %1230 = vmatprep.subr.bf16.mxu0 0
      %1231 = vmatpush1.bf16.msra.mxu0 %v1214
      %1232 = vmatprep.subr.bf16.mxu0 0
      %1233 = vmatpush1.bf16.msra.mxu0 %v1215
      %1234 = vmatprep.subr.bf16.mxu0 0
      %1235 = vmatpush1.bf16.msra.mxu0 %v1216
      %1236 = vmatprep.subr.bf16.mxu0 0
      %1237 = vmatpush1.bf16.msra.mxu0 %v1217
      %1238 = vmatprep.subr.bf16.mxu0 0
      %1239 = vmatpush1.bf16.msra.mxu0 %v1218
      %1240 = vmatprep.subr.bf16.mxu0 0
      %1241 = vmatpush1.bf16.msra.mxu0 %v1219
      %1242 = vmatprep.subr.bf16.mxu0 0
      %1243 = vmatpush1.bf16.msra.mxu0 %v1220
      %1244 = vmatprep.subr.bf16.mxu0 0
      %1245 = vmatpush1.bf16.msra.mxu0 %v1221
      %1246 = vmatprep.subr.bf16.mxu0 0
      %1247 = vmatpush1.bf16.msra.mxu0 0
      %1248 = vmatprep.subr.bf16.mxu0 0
      %1249 = vmatpush1.bf16.msra.mxu0 0
      %1250 = vmatprep.subr.bf16.mxu0 0
      %1251 = vmatpush1.bf16.msra.mxu0 0
      %1252 = vmatprep.subr.bf16.mxu0 0
      %1253 = vmatpush1.bf16.msra.mxu0 0
      %1254 = vmatprep.subr.bf16.mxu0 0
      %1255 = vmatpush1.bf16.msra.mxu0 0
      %1256 = vmatprep.subr.bf16.mxu0 0
      %1257 = vmatpush1.bf16.msra.mxu0 0
      %1258 = vmatprep.subr.bf16.mxu0 0
      %1259 = vmatpush1.bf16.msra.mxu0 0
      %1260 = vmatprep.subr.bf16.mxu0 0
      %1261 = vmatpush1.bf16.msra.mxu0 0
      %1262 = vmatprep.mubr.bf16.mxu0 0
      %1263 = vmatmul.mubr.bf16.gmra.mrb[0].mxu0 %v1161
      %v1264 = vpop.f32.mrb[0].mxu0
      %v1265 = vadd.f32 0.0, %v1264
      %v1266 = vpop.f32.mrb[0].mxu0
      %v1267 = vpop.f32.mrb[0].mxu0
      %v1268 = vadd.f32 0.0, %v1267
      %v1269 = vpop.f32.mrb[0].mxu0
      %1270 = vmatprep.mubr.bf16.mxu0 0
      %1271 = vmatmul.mubr.bf16.gmra.mrb[0].mxu0 %v1162
      %v1272 = vpop.f32.mrb[0].mxu0
      %v1273 = vadd.f32 0.0, %v1272
      %v1274 = vpop.f32.mrb[0].mxu0
      %v1275 = vpop.f32.mrb[0].mxu0
      %v1276 = vadd.f32 0.0, %v1275
      %v1277 = vpop.f32.mrb[0].mxu0
      %1278 = vmatprep.mubr.bf16.mxu0 0
      %1279 = vmatmul.mubr.bf16.gmra.mrb[0].mxu0 %v1163
      %v1280 = vpop.f32.mrb[0].mxu0
      %v1281 = vadd.f32 0.0, %v1280
      %v1282 = vpop.f32.mrb[0].mxu0
      %v1283 = vpop.f32.mrb[0].mxu0
      %v1284 = vadd.f32 0.0, %v1283
      %v1285 = vpop.f32.mrb[0].mxu0
      %1286 = vmatprep.mubr.bf16.mxu0 0
      %1287 = vmatmul.mubr.bf16.gmra.mrb[0].mxu0 %v1164
      %v1288 = vpop.f32.mrb[0].mxu0
      %v1289 = vadd.f32 0.0, %v1288
      %v1290 = vpop.f32.mrb[0].mxu0
      %v1291 = vpop.f32.mrb[0].mxu0
      %v1292 = vadd.f32 0.0, %v1291
      %v1293 = vpop.f32.mrb[0].mxu0
      %1294 = vdwg.mxu0
      %v1295 = vadd.f32 %v1145, %v1265
      %v1296 = vadd.f32 %v1146, %v1268
      %v1297 = vadd.f32 %v1147, %v1273
      %v1298 = vadd.f32 %v1148, %v1276
      %v1299 = vadd.f32 %v1149, %v1281
      %v1300 = vadd.f32 %v1150, %v1284
      %v1301 = vadd.f32 %v1151, %v1289
      %v1302 = vadd.f32 %v1152, %v1292
      %v1303 = vld [vmem:[%s542 + $0x1] sm:$0xff]
      %v1304 = vld [vmem:[%s542 + $0x11] sm:$0xff]
      %v1305 = vld [vmem:[%s542 + $0x21] sm:$0xff]
      %v1306 = vld [vmem:[%s542 + $0x31] sm:$0xff]
      %v1307 = vld [vmem:[%s542 + $0x41] sm:$0xff]
      %v1308 = vld [vmem:[%s542 + $0x51] sm:$0xff]
      %v1309 = vld [vmem:[%s542 + $0x61] sm:$0xff]
      %v1310 = vld [vmem:[%s542 + $0x71] sm:$0xff]
      %v1311 = vpack.c.bf16 %v1304, %v1303
      %v1312 = vpack.c.bf16 %v1306, %v1305
      %v1313 = vpack.c.bf16 %v1308, %v1307
      %v1314 = vpack.c.bf16 %v1310, %v1309
      %s1315 = scalar_lea.vmem %s3, 320
      %v1316 = vld [vmem:[%s1315] sm:$0xf]
      %v1317 = vld [vmem:[%s1315 + $0x4] sm:$0xf]
      %v1318 = vld [vmem:[%s1315 + $0x8] sm:$0xf]
      %v1319 = vld [vmem:[%s1315 + $0xc] sm:$0xf]
      %v1320 = vld [vmem:[%s1315 + $0x10] sm:$0xf]
      %v1321 = vld [vmem:[%s1315 + $0x14] sm:$0xf]
      %v1322 = vld [vmem:[%s1315 + $0x18] sm:$0xf]
      %v1323 = vld [vmem:[%s1315 + $0x1c] sm:$0xf]
      %v1324 = vld [vmem:[%s1315 + $0x20] sm:$0xf]
      %v1325 = vld [vmem:[%s1315 + $0x24] sm:$0xf]
      %v1326 = vld [vmem:[%s1315 + $0x28] sm:$0xf]
      %v1327 = vld [vmem:[%s1315 + $0x2c] sm:$0xf]
      %v1328 = vld [vmem:[%s1315 + $0x30] sm:$0xf]
      %v1329 = vld [vmem:[%s1315 + $0x34] sm:$0xf]
      %v1330 = vld [vmem:[%s1315 + $0x38] sm:$0xf]
      %v1331 = vld [vmem:[%s1315 + $0x3c] sm:$0xf]
      %v1348 = vunpack.c.l.b16 %v1316
      %v1349 = vunpack.c.l.b16 %v1317
      %v1350 = vunpack.c.l.b16 %v1318
      %v1351 = vunpack.c.l.b16 %v1319
      %v1352 = vunpack.c.l.b16 %v1320
      %v1353 = vunpack.c.l.b16 %v1321
      %v1354 = vunpack.c.l.b16 %v1322
      %v1355 = vunpack.c.l.b16 %v1323
      %v1356 = vunpack.c.l.b16 %v1324
      %v1357 = vunpack.c.l.b16 %v1325
      %v1358 = vunpack.c.l.b16 %v1326
      %v1359 = vunpack.c.l.b16 %v1327
      %v1360 = vunpack.c.l.b16 %v1328
      %v1361 = vunpack.c.l.b16 %v1329
      %v1362 = vunpack.c.l.b16 %v1330
      %v1363 = vunpack.c.l.b16 %v1331
      %v1364 = vpack.c.b16 %v1349, %v1348
      %v1365 = vpack.c.b16 %v1351, %v1350
      %v1366 = vpack.c.b16 %v1353, %v1352
      %v1367 = vpack.c.b16 %v1355, %v1354
      %v1368 = vpack.c.b16 %v1357, %v1356
      %v1369 = vpack.c.b16 %v1359, %v1358
      %v1370 = vpack.c.b16 %v1361, %v1360
      %v1371 = vpack.c.b16 %v1363, %v1362
      %1380 = vmatprep.subr.bf16.mxu0 0
      %1381 = vmatpush1.bf16.msra.mxu0 %v1364
      %1382 = vmatprep.subr.bf16.mxu0 0
      %1383 = vmatpush1.bf16.msra.mxu0 %v1365
      %1384 = vmatprep.subr.bf16.mxu0 0
      %1385 = vmatpush1.bf16.msra.mxu0 %v1366
      %1386 = vmatprep.subr.bf16.mxu0 0
      %1387 = vmatpush1.bf16.msra.mxu0 %v1367
      %1388 = vmatprep.subr.bf16.mxu0 0
      %1389 = vmatpush1.bf16.msra.mxu0 %v1368
      %1390 = vmatprep.subr.bf16.mxu0 0
      %1391 = vmatpush1.bf16.msra.mxu0 %v1369
      %1392 = vmatprep.subr.bf16.mxu0 0
      %1393 = vmatpush1.bf16.msra.mxu0 %v1370
      %1394 = vmatprep.subr.bf16.mxu0 0
      %1395 = vmatpush1.bf16.msra.mxu0 %v1371
      %1396 = vmatprep.subr.bf16.mxu0 0
      %1397 = vmatpush1.bf16.msra.mxu0 0
      %1398 = vmatprep.subr.bf16.mxu0 0
      %1399 = vmatpush1.bf16.msra.mxu0 0
      %1400 = vmatprep.subr.bf16.mxu0 0
      %1401 = vmatpush1.bf16.msra.mxu0 0
      %1402 = vmatprep.subr.bf16.mxu0 0
      %1403 = vmatpush1.bf16.msra.mxu0 0
      %1404 = vmatprep.subr.bf16.mxu0 0
      %1405 = vmatpush1.bf16.msra.mxu0 0
      %1406 = vmatprep.subr.bf16.mxu0 0
      %1407 = vmatpush1.bf16.msra.mxu0 0
      %1408 = vmatprep.subr.bf16.mxu0 0
      %1409 = vmatpush1.bf16.msra.mxu0 0
      %1410 = vmatprep.subr.bf16.mxu0 0
      %1411 = vmatpush1.bf16.msra.mxu0 0
      %1412 = vmatprep.mubr.bf16.mxu0 0
      %1413 = vmatmul.mubr.bf16.gmra.mrb[0].mxu0 %v1311
      %v1414 = vpop.f32.mrb[0].mxu0
      %v1415 = vadd.f32 0.0, %v1414
      %v1416 = vpop.f32.mrb[0].mxu0
      %v1417 = vpop.f32.mrb[0].mxu0
      %v1418 = vadd.f32 0.0, %v1417
      %v1419 = vpop.f32.mrb[0].mxu0
      %1420 = vmatprep.mubr.bf16.mxu0 0
      %1421 = vmatmul.mubr.bf16.gmra.mrb[0].mxu0 %v1312
      %v1422 = vpop.f32.mrb[0].mxu0
      %v1423 = vadd.f32 0.0, %v1422
      %v1424 = vpop.f32.mrb[0].mxu0
      %v1425 = vpop.f32.mrb[0].mxu0
      %v1426 = vadd.f32 0.0, %v1425
      %v1427 = vpop.f32.mrb[0].mxu0
      %1428 = vmatprep.mubr.bf16.mxu0 0
      %1429 = vmatmul.mubr.bf16.gmra.mrb[0].mxu0 %v1313
      %v1430 = vpop.f32.mrb[0].mxu0
      %v1431 = vadd.f32 0.0, %v1430
      %v1432 = vpop.f32.mrb[0].mxu0
      %v1433 = vpop.f32.mrb[0].mxu0
      %v1434 = vadd.f32 0.0, %v1433
      %v1435 = vpop.f32.mrb[0].mxu0
      %1436 = vmatprep.mubr.bf16.mxu0 0
      %1437 = vmatmul.mubr.bf16.gmra.mrb[0].mxu0 %v1314
      %v1438 = vpop.f32.mrb[0].mxu0
      %v1439 = vadd.f32 0.0, %v1438
      %v1440 = vpop.f32.mrb[0].mxu0
      %v1441 = vpop.f32.mrb[0].mxu0
      %v1442 = vadd.f32 0.0, %v1441
      %v1443 = vpop.f32.mrb[0].mxu0
      %1444 = vdwg.mxu0
      %v1445 = vadd.f32 %v1295, %v1415
      %v1446 = vadd.f32 %v1296, %v1418
      %v1447 = vadd.f32 %v1297, %v1423
      %v1448 = vadd.f32 %v1298, %v1426
      %v1449 = vadd.f32 %v1299, %v1431
      %v1450 = vadd.f32 %v1300, %v1434
      %v1451 = vadd.f32 %v1301, %v1439
      %v1452 = vadd.f32 %v1302, %v1442
      %v1453 = vld [vmem:[%s560] sm:$0xff]
      %v1454 = vld [vmem:[%s560 + $0x10] sm:$0xff]
      %v1455 = vld [vmem:[%s560 + $0x20] sm:$0xff]
      %v1456 = vld [vmem:[%s560 + $0x30] sm:$0xff]
      %v1457 = vld [vmem:[%s560 + $0x40] sm:$0xff]
      %v1458 = vld [vmem:[%s560 + $0x50] sm:$0xff]
      %v1459 = vld [vmem:[%s560 + $0x60] sm:$0xff]
      %v1460 = vld [vmem:[%s560 + $0x70] sm:$0xff]
      %v1461 = vpack.c.bf16 %v1454, %v1453
      %v1462 = vpack.c.bf16 %v1456, %v1455
      %v1463 = vpack.c.bf16 %v1458, %v1457
      %v1464 = vpack.c.bf16 %v1460, %v1459
      %s1465 = scalar_lea.vmem %s3, 384
      %v1466 = vld [vmem:[%s1465] sm:$0xf]
      %v1467 = vld [vmem:[%s1465 + $0x4] sm:$0xf]
      %v1468 = vld [vmem:[%s1465 + $0x8] sm:$0xf]
      %v1469 = vld [vmem:[%s1465 + $0xc] sm:$0xf]
      %v1470 = vld [vmem:[%s1465 + $0x10] sm:$0xf]
      %v1471 = vld [vmem:[%s1465 + $0x14] sm:$0xf]
      %v1472 = vld [vmem:[%s1465 + $0x18] sm:$0xf]
      %v1473 = vld [vmem:[%s1465 + $0x1c] sm:$0xf]
      %v1474 = vld [vmem:[%s1465 + $0x20] sm:$0xf]
      %v1475 = vld [vmem:[%s1465 + $0x24] sm:$0xf]
      %v1476 = vld [vmem:[%s1465 + $0x28] sm:$0xf]
      %v1477 = vld [vmem:[%s1465 + $0x2c] sm:$0xf]
      %v1478 = vld [vmem:[%s1465 + $0x30] sm:$0xf]
      %v1479 = vld [vmem:[%s1465 + $0x34] sm:$0xf]
      %v1480 = vld [vmem:[%s1465 + $0x38] sm:$0xf]
      %v1481 = vld [vmem:[%s1465 + $0x3c] sm:$0xf]
      %v1498 = vunpack.c.l.b16 %v1466
      %v1499 = vunpack.c.l.b16 %v1467
      %v1500 = vunpack.c.l.b16 %v1468
      %v1501 = vunpack.c.l.b16 %v1469
      %v1502 = vunpack.c.l.b16 %v1470
      %v1503 = vunpack.c.l.b16 %v1471
      %v1504 = vunpack.c.l.b16 %v1472
      %v1505 = vunpack.c.l.b16 %v1473
      %v1506 = vunpack.c.l.b16 %v1474
      %v1507 = vunpack.c.l.b16 %v1475
      %v1508 = vunpack.c.l.b16 %v1476
      %v1509 = vunpack.c.l.b16 %v1477
      %v1510 = vunpack.c.l.b16 %v1478
      %v1511 = vunpack.c.l.b16 %v1479
      %v1512 = vunpack.c.l.b16 %v1480
      %v1513 = vunpack.c.l.b16 %v1481
      %v1514 = vpack.c.b16 %v1499, %v1498
      %v1515 = vpack.c.b16 %v1501, %v1500
      %v1516 = vpack.c.b16 %v1503, %v1502
      %v1517 = vpack.c.b16 %v1505, %v1504
      %v1518 = vpack.c.b16 %v1507, %v1506
      %v1519 = vpack.c.b16 %v1509, %v1508
      %v1520 = vpack.c.b16 %v1511, %v1510
      %v1521 = vpack.c.b16 %v1513, %v1512
      %1530 = vmatprep.subr.bf16.mxu0 0
      %1531 = vmatpush1.bf16.msra.mxu0 %v1514
      %1532 = vmatprep.subr.bf16.mxu0 0
      %1533 = vmatpush1.bf16.msra.mxu0 %v1515
      %1534 = vmatprep.subr.bf16.mxu0 0
      %1535 = vmatpush1.bf16.msra.mxu0 %v1516
      %1536 = vmatprep.subr.bf16.mxu0 0
      %1537 = vmatpush1.bf16.msra.mxu0 %v1517
      %1538 = vmatprep.subr.bf16.mxu0 0
      %1539 = vmatpush1.bf16.msra.mxu0 %v1518
      %1540 = vmatprep.subr.bf16.mxu0 0
      %1541 = vmatpush1.bf16.msra.mxu0 %v1519
      %1542 = vmatprep.subr.bf16.mxu0 0
      %1543 = vmatpush1.bf16.msra.mxu0 %v1520
      %1544 = vmatprep.subr.bf16.mxu0 0
      %1545 = vmatpush1.bf16.msra.mxu0 %v1521
      %1546 = vmatprep.subr.bf16.mxu0 0
      %1547 = vmatpush1.bf16.msra.mxu0 0
      %1548 = vmatprep.subr.bf16.mxu0 0
      %1549 = vmatpush1.bf16.msra.mxu0 0
      %1550 = vmatprep.subr.bf16.mxu0 0
      %1551 = vmatpush1.bf16.msra.mxu0 0
      %1552 = vmatprep.subr.bf16.mxu0 0
      %1553 = vmatpush1.bf16.msra.mxu0 0
      %1554 = vmatprep.subr.bf16.mxu0 0
      %1555 = vmatpush1.bf16.msra.mxu0 0
      %1556 = vmatprep.subr.bf16.mxu0 0
      %1557 = vmatpush1.bf16.msra.mxu0 0
      %1558 = vmatprep.subr.bf16.mxu0 0
      %1559 = vmatpush1.bf16.msra.mxu0 0
      %1560 = vmatprep.subr.bf16.mxu0 0
      %1561 = vmatpush1.bf16.msra.mxu0 0
      %1562 = vmatprep.mubr.bf16.mxu0 0
      %1563 = vmatmul.mubr.bf16.gmra.mrb[0].mxu0 %v1461
      %v1564 = vpop.f32.mrb[0].mxu0
      %v1565 = vadd.f32 0.0, %v1564
      %v1566 = vpop.f32.mrb[0].mxu0
      %v1567 = vpop.f32.mrb[0].mxu0
      %v1568 = vadd.f32 0.0, %v1567
      %v1569 = vpop.f32.mrb[0].mxu0
      %1570 = vmatprep.mubr.bf16.mxu0 0
      %1571 = vmatmul.mubr.bf16.gmra.mrb[0].mxu0 %v1462
      %v1572 = vpop.f32.mrb[0].mxu0
      %v1573 = vadd.f32 0.0, %v1572
      %v1574 = vpop.f32.mrb[0].mxu0
      %v1575 = vpop.f32.mrb[0].mxu0
      %v1576 = vadd.f32 0.0, %v1575
      %v1577 = vpop.f32.mrb[0].mxu0
      %1578 = vmatprep.mubr.bf16.mxu0 0
      %1579 = vmatmul.mubr.bf16.gmra.mrb[0].mxu0 %v1463
      %v1580 = vpop.f32.mrb[0].mxu0
      %v1581 = vadd.f32 0.0, %v1580
      %v1582 = vpop.f32.mrb[0].mxu0
      %v1583 = vpop.f32.mrb[0].mxu0
      %v1584 = vadd.f32 0.0, %v1583
      %v1585 = vpop.f32.mrb[0].mxu0
      %1586 = vmatprep.mubr.bf16.mxu0 0
      %1587 = vmatmul.mubr.bf16.gmra.mrb[0].mxu0 %v1464
      %v1588 = vpop.f32.mrb[0].mxu0
      %v1589 = vadd.f32 0.0, %v1588
      %v1590 = vpop.f32.mrb[0].mxu0
      %v1591 = vpop.f32.mrb[0].mxu0
      %v1592 = vadd.f32 0.0, %v1591
      %v1593 = vpop.f32.mrb[0].mxu0
      %1594 = vdwg.mxu0
      %v1595 = vadd.f32 %v1445, %v1565
      %v1596 = vadd.f32 %v1446, %v1568
      %v1597 = vadd.f32 %v1447, %v1573
      %v1598 = vadd.f32 %v1448, %v1576
      %v1599 = vadd.f32 %v1449, %v1581
      %v1600 = vadd.f32 %v1450, %v1584
      %v1601 = vadd.f32 %v1451, %v1589
      %v1602 = vadd.f32 %v1452, %v1592
      %v1603 = vld [vmem:[%s551] sm:$0xff]
      %v1604 = vld [vmem:[%s551 + $0x10] sm:$0xff]
      %v1605 = vld [vmem:[%s551 + $0x20] sm:$0xff]
      %v1606 = vld [vmem:[%s551 + $0x30] sm:$0xff]
      %v1607 = vld [vmem:[%s551 + $0x40] sm:$0xff]
      %v1608 = vld [vmem:[%s551 + $0x50] sm:$0xff]
      %v1609 = vld [vmem:[%s551 + $0x60] sm:$0xff]
      %v1610 = vld [vmem:[%s551 + $0x70] sm:$0xff]
      %v1611 = vpack.c.bf16 %v1604, %v1603
      %v1612 = vpack.c.bf16 %v1606, %v1605
      %v1613 = vpack.c.bf16 %v1608, %v1607
      %v1614 = vpack.c.bf16 %v1610, %v1609
      %s1615 = scalar_lea.vmem %s3, 448
      %v1616 = vld [vmem:[%s1615] sm:$0xf]
      %v1617 = vld [vmem:[%s1615 + $0x4] sm:$0xf]
      %v1618 = vld [vmem:[%s1615 + $0x8] sm:$0xf]
      %v1619 = vld [vmem:[%s1615 + $0xc] sm:$0xf]
      %v1620 = vld [vmem:[%s1615 + $0x10] sm:$0xf]
      %v1621 = vld [vmem:[%s1615 + $0x14] sm:$0xf]
      %v1622 = vld [vmem:[%s1615 + $0x18] sm:$0xf]
      %v1623 = vld [vmem:[%s1615 + $0x1c] sm:$0xf]
      %v1624 = vld [vmem:[%s1615 + $0x20] sm:$0xf]
      %v1625 = vld [vmem:[%s1615 + $0x24] sm:$0xf]
      %v1626 = vld [vmem:[%s1615 + $0x28] sm:$0xf]
      %v1627 = vld [vmem:[%s1615 + $0x2c] sm:$0xf]
      %v1628 = vld [vmem:[%s1615 + $0x30] sm:$0xf]
      %v1629 = vld [vmem:[%s1615 + $0x34] sm:$0xf]
      %v1630 = vld [vmem:[%s1615 + $0x38] sm:$0xf]
      %v1631 = vld [vmem:[%s1615 + $0x3c] sm:$0xf]
      %v1648 = vunpack.c.l.b16 %v1616
      %v1649 = vunpack.c.l.b16 %v1617
      %v1650 = vunpack.c.l.b16 %v1618
      %v1651 = vunpack.c.l.b16 %v1619
      %v1652 = vunpack.c.l.b16 %v1620
      %v1653 = vunpack.c.l.b16 %v1621
      %v1654 = vunpack.c.l.b16 %v1622
      %v1655 = vunpack.c.l.b16 %v1623
      %v1656 = vunpack.c.l.b16 %v1624
      %v1657 = vunpack.c.l.b16 %v1625
      %v1658 = vunpack.c.l.b16 %v1626
      %v1659 = vunpack.c.l.b16 %v1627
      %v1660 = vunpack.c.l.b16 %v1628
      %v1661 = vunpack.c.l.b16 %v1629
      %v1662 = vunpack.c.l.b16 %v1630
      %v1663 = vunpack.c.l.b16 %v1631
      %v1664 = vpack.c.b16 %v1649, %v1648
      %v1665 = vpack.c.b16 %v1651, %v1650
      %v1666 = vpack.c.b16 %v1653, %v1652
      %v1667 = vpack.c.b16 %v1655, %v1654
      %v1668 = vpack.c.b16 %v1657, %v1656
      %v1669 = vpack.c.b16 %v1659, %v1658
      %v1670 = vpack.c.b16 %v1661, %v1660
      %v1671 = vpack.c.b16 %v1663, %v1662
      %1680 = vmatprep.subr.bf16.mxu0 0
      %1681 = vmatpush1.bf16.msra.mxu0 %v1664
      %1682 = vmatprep.subr.bf16.mxu0 0
      %1683 = vmatpush1.bf16.msra.mxu0 %v1665
      %1684 = vmatprep.subr.bf16.mxu0 0
      %1685 = vmatpush1.bf16.msra.mxu0 %v1666
      %1686 = vmatprep.subr.bf16.mxu0 0
      %1687 = vmatpush1.bf16.msra.mxu0 %v1667
      %1688 = vmatprep.subr.bf16.mxu0 0
      %1689 = vmatpush1.bf16.msra.mxu0 %v1668
      %1690 = vmatprep.subr.bf16.mxu0 0
      %1691 = vmatpush1.bf16.msra.mxu0 %v1669
      %1692 = vmatprep.subr.bf16.mxu0 0
      %1693 = vmatpush1.bf16.msra.mxu0 %v1670
      %1694 = vmatprep.subr.bf16.mxu0 0
      %1695 = vmatpush1.bf16.msra.mxu0 %v1671
      %1696 = vmatprep.subr.bf16.mxu0 0
      %1697 = vmatpush1.bf16.msra.mxu0 0
      %1698 = vmatprep.subr.bf16.mxu0 0
      %1699 = vmatpush1.bf16.msra.mxu0 0
      %1700 = vmatprep.subr.bf16.mxu0 0
      %1701 = vmatpush1.bf16.msra.mxu0 0
      %1702 = vmatprep.subr.bf16.mxu0 0
      %1703 = vmatpush1.bf16.msra.mxu0 0
      %1704 = vmatprep.subr.bf16.mxu0 0
      %1705 = vmatpush1.bf16.msra.mxu0 0
      %1706 = vmatprep.subr.bf16.mxu0 0
      %1707 = vmatpush1.bf16.msra.mxu0 0
      %1708 = vmatprep.subr.bf16.mxu0 0
      %1709 = vmatpush1.bf16.msra.mxu0 0
      %1710 = vmatprep.subr.bf16.mxu0 0
      %1711 = vmatpush1.bf16.msra.mxu0 0
      %1712 = vmatprep.mubr.bf16.mxu0 0
      %1713 = vmatmul.mubr.bf16.gmra.mrb[0].mxu0 %v1611
      %v1714 = vpop.f32.mrb[0].mxu0
      %v1715 = vadd.f32 0.0, %v1714
      %v1716 = vpop.f32.mrb[0].mxu0
      %v1717 = vpop.f32.mrb[0].mxu0
      %v1718 = vadd.f32 0.0, %v1717
      %v1719 = vpop.f32.mrb[0].mxu0
      %1720 = vmatprep.mubr.bf16.mxu0 0
      %1721 = vmatmul.mubr.bf16.gmra.mrb[0].mxu0 %v1612
      %v1722 = vpop.f32.mrb[0].mxu0
      %v1723 = vadd.f32 0.0, %v1722
      %v1724 = vpop.f32.mrb[0].mxu0
      %v1725 = vpop.f32.mrb[0].mxu0
      %v1726 = vadd.f32 0.0, %v1725
      %v1727 = vpop.f32.mrb[0].mxu0
      %1728 = vmatprep.mubr.bf16.mxu0 0
      %1729 = vmatmul.mubr.bf16.gmra.mrb[0].mxu0 %v1613
      %v1730 = vpop.f32.mrb[0].mxu0
      %v1731 = vadd.f32 0.0, %v1730
      %v1732 = vpop.f32.mrb[0].mxu0
      %v1733 = vpop.f32.mrb[0].mxu0
      %v1734 = vadd.f32 0.0, %v1733
      %v1735 = vpop.f32.mrb[0].mxu0
      %1736 = vmatprep.mubr.bf16.mxu0 0
      %1737 = vmatmul.mubr.bf16.gmra.mrb[0].mxu0 %v1614
      %v1738 = vpop.f32.mrb[0].mxu0
      %v1739 = vadd.f32 0.0, %v1738
      %v1740 = vpop.f32.mrb[0].mxu0
      %v1741 = vpop.f32.mrb[0].mxu0
      %v1742 = vadd.f32 0.0, %v1741
      %v1743 = vpop.f32.mrb[0].mxu0
      %1744 = vdwg.mxu0
      %v1745 = vadd.f32 %v1595, %v1715
      %v1746 = vadd.f32 %v1596, %v1718
      %v1747 = vadd.f32 %v1597, %v1723
      %v1748 = vadd.f32 %v1598, %v1726
      %v1749 = vadd.f32 %v1599, %v1731
      %v1750 = vadd.f32 %v1600, %v1734
      %v1751 = vadd.f32 %v1601, %v1739
      %v1752 = vadd.f32 %v1602, %v1742
      %v1753 = vld [vmem:[%s560 + $0x1] sm:$0xff]
      %v1754 = vld [vmem:[%s560 + $0x11] sm:$0xff]
      %v1755 = vld [vmem:[%s560 + $0x21] sm:$0xff]
      %v1756 = vld [vmem:[%s560 + $0x31] sm:$0xff]
      %v1757 = vld [vmem:[%s560 + $0x41] sm:$0xff]
      %v1758 = vld [vmem:[%s560 + $0x51] sm:$0xff]
      %v1759 = vld [vmem:[%s560 + $0x61] sm:$0xff]
      %v1760 = vld [vmem:[%s560 + $0x71] sm:$0xff]
      %v1761 = vpack.c.bf16 %v1754, %v1753
      %v1762 = vpack.c.bf16 %v1756, %v1755
      %v1763 = vpack.c.bf16 %v1758, %v1757
      %v1764 = vpack.c.bf16 %v1760, %v1759
      %s1765 = scalar_lea.vmem %s3, 512
      %v1766 = vld [vmem:[%s1765] sm:$0xf]
      %v1767 = vld [vmem:[%s1765 + $0x4] sm:$0xf]
      %v1768 = vld [vmem:[%s1765 + $0x8] sm:$0xf]
      %v1769 = vld [vmem:[%s1765 + $0xc] sm:$0xf]
      %v1770 = vld [vmem:[%s1765 + $0x10] sm:$0xf]
      %v1771 = vld [vmem:[%s1765 + $0x14] sm:$0xf]
      %v1772 = vld [vmem:[%s1765 + $0x18] sm:$0xf]
      %v1773 = vld [vmem:[%s1765 + $0x1c] sm:$0xf]
      %v1774 = vld [vmem:[%s1765 + $0x20] sm:$0xf]
      %v1775 = vld [vmem:[%s1765 + $0x24] sm:$0xf]
      %v1776 = vld [vmem:[%s1765 + $0x28] sm:$0xf]
      %v1777 = vld [vmem:[%s1765 + $0x2c] sm:$0xf]
      %v1778 = vld [vmem:[%s1765 + $0x30] sm:$0xf]
      %v1779 = vld [vmem:[%s1765 + $0x34] sm:$0xf]
      %v1780 = vld [vmem:[%s1765 + $0x38] sm:$0xf]
      %v1781 = vld [vmem:[%s1765 + $0x3c] sm:$0xf]
      %v1798 = vunpack.c.l.b16 %v1766
      %v1799 = vunpack.c.l.b16 %v1767
      %v1800 = vunpack.c.l.b16 %v1768
      %v1801 = vunpack.c.l.b16 %v1769
      %v1802 = vunpack.c.l.b16 %v1770
      %v1803 = vunpack.c.l.b16 %v1771
      %v1804 = vunpack.c.l.b16 %v1772
      %v1805 = vunpack.c.l.b16 %v1773
      %v1806 = vunpack.c.l.b16 %v1774
      %v1807 = vunpack.c.l.b16 %v1775
      %v1808 = vunpack.c.l.b16 %v1776
      %v1809 = vunpack.c.l.b16 %v1777
      %v1810 = vunpack.c.l.b16 %v1778
      %v1811 = vunpack.c.l.b16 %v1779
      %v1812 = vunpack.c.l.b16 %v1780
      %v1813 = vunpack.c.l.b16 %v1781
      %v1814 = vpack.c.b16 %v1799, %v1798
      %v1815 = vpack.c.b16 %v1801, %v1800
      %v1816 = vpack.c.b16 %v1803, %v1802
      %v1817 = vpack.c.b16 %v1805, %v1804
      %v1818 = vpack.c.b16 %v1807, %v1806
      %v1819 = vpack.c.b16 %v1809, %v1808
      %v1820 = vpack.c.b16 %v1811, %v1810
      %v1821 = vpack.c.b16 %v1813, %v1812
      %1830 = vmatprep.subr.bf16.mxu0 0
      %1831 = vmatpush1.bf16.msra.mxu0 %v1814
      %1832 = vmatprep.subr.bf16.mxu0 0
      %1833 = vmatpush1.bf16.msra.mxu0 %v1815
      %1834 = vmatprep.subr.bf16.mxu0 0
      %1835 = vmatpush1.bf16.msra.mxu0 %v1816
      %1836 = vmatprep.subr.bf16.mxu0 0
      %1837 = vmatpush1.bf16.msra.mxu0 %v1817
      %1838 = vmatprep.subr.bf16.mxu0 0
      %1839 = vmatpush1.bf16.msra.mxu0 %v1818
      %1840 = vmatprep.subr.bf16.mxu0 0
      %1841 = vmatpush1.bf16.msra.mxu0 %v1819
      %1842 = vmatprep.subr.bf16.mxu0 0
      %1843 = vmatpush1.bf16.msra.mxu0 %v1820
      %1844 = vmatprep.subr.bf16.mxu0 0
      %1845 = vmatpush1.bf16.msra.mxu0 %v1821
      %1846 = vmatprep.subr.bf16.mxu0 0
      %1847 = vmatpush1.bf16.msra.mxu0 0
      %1848 = vmatprep.subr.bf16.mxu0 0
      %1849 = vmatpush1.bf16.msra.mxu0 0
      %1850 = vmatprep.subr.bf16.mxu0 0
      %1851 = vmatpush1.bf16.msra.mxu0 0
      %1852 = vmatprep.subr.bf16.mxu0 0
      %1853 = vmatpush1.bf16.msra.mxu0 0
      %1854 = vmatprep.subr.bf16.mxu0 0
      %1855 = vmatpush1.bf16.msra.mxu0 0
      %1856 = vmatprep.subr.bf16.mxu0 0
      %1857 = vmatpush1.bf16.msra.mxu0 0
      %1858 = vmatprep.subr.bf16.mxu0 0
      %1859 = vmatpush1.bf16.msra.mxu0 0
      %1860 = vmatprep.subr.bf16.mxu0 0
      %1861 = vmatpush1.bf16.msra.mxu0 0
      %1862 = vmatprep.mubr.bf16.mxu0 0
      %1863 = vmatmul.mubr.bf16.gmra.mrb[0].mxu0 %v1761
      %v1864 = vpop.f32.mrb[0].mxu0
      %v1865 = vadd.f32 0.0, %v1864
      %v1866 = vpop.f32.mrb[0].mxu0
      %v1867 = vpop.f32.mrb[0].mxu0
      %v1868 = vadd.f32 0.0, %v1867
      %v1869 = vpop.f32.mrb[0].mxu0
      %1870 = vmatprep.mubr.bf16.mxu0 0
      %1871 = vmatmul.mubr.bf16.gmra.mrb[0].mxu0 %v1762
      %v1872 = vpop.f32.mrb[0].mxu0
      %v1873 = vadd.f32 0.0, %v1872
      %v1874 = vpop.f32.mrb[0].mxu0
      %v1875 = vpop.f32.mrb[0].mxu0
      %v1876 = vadd.f32 0.0, %v1875
      %v1877 = vpop.f32.mrb[0].mxu0
      %1878 = vmatprep.mubr.bf16.mxu0 0
      %1879 = vmatmul.mubr.bf16.gmra.mrb[0].mxu0 %v1763
      %v1880 = vpop.f32.mrb[0].mxu0
      %v1881 = vadd.f32 0.0, %v1880
      %v1882 = vpop.f32.mrb[0].mxu0
      %v1883 = vpop.f32.mrb[0].mxu0
      %v1884 = vadd.f32 0.0, %v1883
      %v1885 = vpop.f32.mrb[0].mxu0
      %1886 = vmatprep.mubr.bf16.mxu0 0
      %1887 = vmatmul.mubr.bf16.gmra.mrb[0].mxu0 %v1764
      %v1888 = vpop.f32.mrb[0].mxu0
      %v1889 = vadd.f32 0.0, %v1888
      %v1890 = vpop.f32.mrb[0].mxu0
      %v1891 = vpop.f32.mrb[0].mxu0
      %v1892 = vadd.f32 0.0, %v1891
      %v1893 = vpop.f32.mrb[0].mxu0
      %1894 = vdwg.mxu0
      %v1895 = vadd.f32 %v1745, %v1865
      %v1896 = vadd.f32 %v1746, %v1868
      %v1897 = vadd.f32 %v1747, %v1873
      %v1898 = vadd.f32 %v1748, %v1876
      %v1899 = vadd.f32 %v1749, %v1881
      %v1900 = vadd.f32 %v1750, %v1884
      %v1901 = vadd.f32 %v1751, %v1889
      %v1902 = vadd.f32 %v1752, %v1892
      %v1903 = vld [vmem:[%s4] sm:$0x1]
      %v1905 = vlaneseq
      %v1906 = vshrl.u32 %v1905, 7
      %v1907 = vsub.s32 0, %v1906
      %v1908 = vrot.slane %v1903, %v1907
      %v1910 = vadd.f32 %v1895, %v1908
      %v1911 = vadd.f32 %v1896, %v1908
      %v1912 = vadd.f32 %v1897, %v1908
      %v1913 = vadd.f32 %v1898, %v1908
      %v1914 = vadd.f32 %v1899, %v1908
      %v1915 = vadd.f32 %v1900, %v1908
      %v1916 = vadd.f32 %v1901, %v1908
      %v1917 = vadd.f32 %v1902, %v1908
      %v1918 = vpack.c.bf16 %v1911, %v1910
      %v1919 = vpack.c.bf16 %v1913, %v1912
      %v1920 = vpack.c.bf16 %v1915, %v1914
      %v1921 = vpack.c.bf16 %v1917, %v1916
      %v1926 = vunpack.c.l.b16 %v1918
      %v1927 = vunpack.c.h.b16 %v1918
      %v1928 = vunpack.c.l.b16 %v1919
      %v1929 = vunpack.c.h.b16 %v1919
      %v1930 = vunpack.c.l.b16 %v1920
      %v1931 = vunpack.c.h.b16 %v1920
      %v1932 = vunpack.c.l.b16 %v1921
      %v1933 = vunpack.c.h.b16 %v1921
      %v1934 = vpack.c.b16 %v1926, %v1926
      %v1935 = vpack.c.b16 %v1927, %v1927
      %v1936 = vpack.c.b16 %v1928, %v1928
      %v1937 = vpack.c.b16 %v1929, %v1929
      %v1938 = vpack.c.b16 %v1930, %v1930
      %v1939 = vpack.c.b16 %v1931, %v1931
      %v1940 = vpack.c.b16 %v1932, %v1932
      %v1941 = vpack.c.b16 %v1933, %v1933
      %1950 = vst [vmem:[%s294] sm:$0xf] %v1934
      %1951 = vst [vmem:[%s294 + $0x4] sm:$0xf] %v1935
      %1952 = vst [vmem:[%s294 + $0x8] sm:$0xf] %v1936
      %1953 = vst [vmem:[%s294 + $0xc] sm:$0xf] %v1937
      %1954 = vst [vmem:[%s294 + $0x10] sm:$0xf] %v1938
      %1955 = vst [vmem:[%s294 + $0x14] sm:$0xf] %v1939
      %1956 = vst [vmem:[%s294 + $0x18] sm:$0xf] %v1940
      %1957 = vst [vmem:[%s294 + $0x1c] sm:$0xf] %v1941
      %v1958 = vadd.f32 %v1895, %v1896
      %v1959 = vadd.f32 %v1958, %v1897
      %v1960 = vadd.f32 %v1959, %v1898
      %v1961 = vadd.f32 %v1960, %v1899
      %v1962 = vadd.f32 %v1961, %v1900
      %v1963 = vadd.f32 %v1962, %v1901
      %v1964 = vadd.f32 %v1963, %v1902
      %v1965 = vrot.slane %v1964, 4
      %v1966 = vadd.f32 %v1964, %v1965
      %v1967 = vrot.slane %v1966, 2
      %v1968 = vadd.f32 %v1966, %v1967
      %v1969 = vrot.slane %v1968, 1
      %v1970 = vadd.f32 %v1968, %v1969
      %1971 = vst [vmem:[%s297] sm:$0x1] %v1970
      %v1972 = vmul.f32 %v1895, %v1895
      %v1973 = vmul.f32 %v1896, %v1896
      %v1974 = vmul.f32 %v1897, %v1897
      %v1975 = vmul.f32 %v1898, %v1898
      %v1976 = vmul.f32 %v1899, %v1899
      %v1977 = vmul.f32 %v1900, %v1900
      %v1978 = vmul.f32 %v1901, %v1901
      %v1979 = vmul.f32 %v1902, %v1902
      %v1980 = vadd.f32 %v1972, %v1973
      %v1981 = vadd.f32 %v1980, %v1974
      %v1982 = vadd.f32 %v1981, %v1975
      %v1983 = vadd.f32 %v1982, %v1976
      %v1984 = vadd.f32 %v1983, %v1977
      %v1985 = vadd.f32 %v1984, %v1978
      %v1986 = vadd.f32 %v1985, %v1979
      %v1987 = vrot.slane %v1986, 4
      %v1988 = vadd.f32 %v1986, %v1987
      %v1989 = vrot.slane %v1988, 2
      %v1990 = vadd.f32 %v1988, %v1989
      %v1991 = vrot.slane %v1990, 1
      %v1992 = vadd.f32 %v1990, %v1991
      %1993 = vst [vmem:[%s300] sm:$0x1] %v1992
      %p1994 = scmp.lt.s32.totalorder %s19, 1
      %s1995 = scalar_select %p1994, %s19, 1
      %s1996 = smul.addr %s1995, 8
      %s1997 = smul.addr %s1996, 4
      %s1998 = scalar_lea.vmem %s5, %s1997
      %p1999 = scmp.lt.s32.totalorder %s19, 1
      %s2000 = scalar_select %p1999, %s19, 1
      %s2001 = scalar_lea.vmem %s6, %s2000
      %p2002 = scmp.lt.s32.totalorder %s19, 1
      %s2003 = scalar_select %p2002, %s19, 1
      %s2004 = scalar_lea.vmem %s7, %s2003
      // Predicated region
      $region41: #{preact_reduction_block.2} parent=39 // pred_check
        %p2005 = pneg %p147
      $region42: #{preact_reduction_block.2} parent=39 // pred_check_branch
        %2007 = sbr.rel (%p2005) target = $region44
      $region43: #{preact_reduction_block.2} parent=39 // pred_region
        _
      $region44: #{preact_reduction_block.2} parent=39 // pred_fallthru
        _
      // Predicated region
      $region45: #{preact_reduction_block.2} parent=39 // pred_check
        %p2008 = pneg %p173
      $region46: #{preact_reduction_block.2} parent=39 // pred_check_branch
        %2010 = sbr.rel (%p2008) target = $region48
      $region47: #{preact_reduction_block.2} parent=39 // pred_region
        _
      $region48: #{preact_reduction_block.2} parent=39 // pred_fallthru
        _
      // Predicated region
      $region49: #{preact_reduction_block.2} parent=39 // pred_check
        %p2011 = pneg %p199
      $region50: #{preact_reduction_block.2} parent=39 // pred_check_branch
        %2013 = sbr.rel (%p2011) target = $region52
      $region51: #{preact_reduction_block.2} parent=39 // pred_region
        _
      $region52: #{preact_reduction_block.2} parent=39 // pred_fallthru
        _
    $region40: #{preact_reduction_block.2} parent=5 // pred_fallthru
      _
    %p2014 = scmp.le.s32.totalorder 2, %s14
    // Predicated region
    $region53: #{preact_reduction_block.2} parent=5 // pred_check
      %p2015 = pneg %p2014
    $region54: #{preact_reduction_block.2} parent=5 // pred_check_branch
      %2017 = sbr.rel (%p2015) target = $region56
    $region55: #{preact_reduction_block.2} parent=5 // pred_region
      %s2018 = ssub.s32 %s14, 2
      // Predicated region
      $region57: #{preact_reduction_block.2} parent=55 // pred_check
        %p2019 = pneg %p153
      $region58: #{preact_reduction_block.2} parent=55 // pred_check_branch
        %2021 = sbr.rel (%p2019) target = $region60
      $region59: #{preact_reduction_block.2} parent=55 // pred_region
        %p2022 = scmp.lt.s32.totalorder %s20, 1
        %s2023 = scalar_select %p2022, %s20, 1
        %s2024 = smul.addr %s2023, 8
        %s2025 = smul.addr %s2024, 4
        %s2026 = scalar_lea.vmem %s5, %s2025
      $region60: #{preact_reduction_block.2} parent=55 // pred_fallthru
        _
      // Predicated region
      $region61: #{preact_reduction_block.2} parent=55 // pred_check
        %p2027 = pneg %p179
      $region62: #{preact_reduction_block.2} parent=55 // pred_check_branch
        %2029 = sbr.rel (%p2027) target = $region64
      $region63: #{preact_reduction_block.2} parent=55 // pred_region
        %p2030 = scmp.lt.s32.totalorder %s20, 1
        %s2031 = scalar_select %p2030, %s20, 1
        %s2032 = scalar_lea.vmem %s6, %s2031
      $region64: #{preact_reduction_block.2} parent=55 // pred_fallthru
        _
      // Predicated region
      $region65: #{preact_reduction_block.2} parent=55 // pred_check
        %p2033 = pneg %p205
      $region66: #{preact_reduction_block.2} parent=55 // pred_check_branch
        %2035 = sbr.rel (%p2033) target = $region68
      $region67: #{preact_reduction_block.2} parent=55 // pred_region
        %p2036 = scmp.lt.s32.totalorder %s20, 1
        %s2037 = scalar_select %p2036, %s20, 1
        %s2038 = scalar_lea.vmem %s7, %s2037
      $region68: #{preact_reduction_block.2} parent=55 // pred_fallthru
        _
    $region56: #{preact_reduction_block.2} parent=5 // pred_fallthru
      _
  $region6: #{preact_reduction_block.2} parent=0 // loop_footer
    %s18 = sadd.s32 1, %s14
  $region7: #{preact_reduction_block.2} parent=0 // loop_footer_branch
    %13 = sbr.rel target = $region3
  $region8: #{preact_reduction_block.2} parent=0 // loop_exit
    _

</llo_original>
